<compile_context>
chip_gen: v6e
topology: v6e:2x2x1
jax: 0.10.0
libtpu: 0.0.40
codegen_flags: <defaults>
</compile_context>

<pallas_src>
import functools

import jax
import jax.numpy as jnp
from jax import lax
from jax.experimental import pallas as pl
from jax.experimental.pallas import tpu as pltpu

# Fixed Sobel-like kernels (exactly the PyTorch buffer; the same 4 kernels are
# reused for every channel because of kernels.repeat(channels,1,1,1) + groups=C).
SOBEL_KERNELS = (
    ((-1, 0, 1), (-2, 0, 2), (-1, 0, 1)),
    ((-1, -2, -1), (0, 0, 0), (1, 2, 1)),
    ((-2, -1, 0), (-1, 0, 1), (0, 1, 2)),
    ((0, 1, 2), (-1, 0, 1), (-2, -1, 0)),
)

_OFFSETS = tuple((dh, dw) for dh in (-1, 0, 1) for dw in (-1, 0, 1))


def _shift_flat(a, s):
    """b[..., p] = a[..., p + s], zeros shifted in at the ends of the flat axis."""
    if s == 0:
        return a
    hw = a.shape[-1]
    zeros = jnp.zeros(a.shape[:-1] + (abs(s),), a.dtype)
    if s > 0:
        return jnp.concatenate([a[..., s:], zeros], axis=-1)
    return jnp.concatenate([zeros, a[..., :hw + s]], axis=-1)


def _tap(a, dh, dw, W, mask_l, mask_r):
    """tap[..., h*W+w] = a[..., (h+dh)*W + (w+dw)] with zero padding outside HxW.

    Row over/underflow maps to flat positions outside [0, H*W) and is therefore
    already zero-filled by _shift_flat; only the column wrap needs a mask.
    """
    t = _shift_flat(a, dh * W + dw)
    if dw == -1:
        t = jnp.where(mask_l, t, 0.0)
    elif dw == 1:
        t = jnp.where(mask_r, t, 0.0)
    return t


def sobel_edge_attention_kernel(w_ref, b_ref, cw_ref, x_ref, o_ref, *, H, W):
    # w_ref : (C*C*9,)  SMEM, pre_conv weight flattened in (o, i, kh, kw) order
    # b_ref : (C,)      SMEM, pre_conv bias
    # cw_ref: (2,)      SMEM, conv1x1 scalar weight / bias
    # x_ref : (Bblk, C, H*W) VMEM block (flattened planes, lane-dense)
    # o_ref : (Bblk, C, H*W) VMEM block
    Bblk, C, HW = x_ref.shape

    # Column masks (shared by both conv stages -- same padding geometry).
    col = lax.broadcasted_iota(jnp.int32, (1, HW), 1) % W
    mask_l = col >= 1          # w - 1 >= 0
    mask_r = col <= W - 2      # w + 1 <= W - 1

    # Per-channel planes stacked on a *major* axis so channel extraction is free.
    x_all = jnp.stack([x_ref[:, i, :] for i in range(C)], axis=0)  # (C, Bblk, HW)

    # ---- pre_conv: dense 3x3 conv as scalar-weighted VPU FMAs (tiny C) -------
    # y[o] = b[o] + sum_{i,dh,dw} w[o,i,dh+1,dw+1] * x[i] shifted by (dh, dw).
    y_ch = [b_ref[o] + jnp.zeros((Bblk, HW), jnp.float32) for o in range(C)]
    for dh, dw in _OFFSETS:
        t = _tap(x_all, dh, dw, W, mask_l, mask_r)   # one shift for all channels
        for o in range(C):
            for i in range(C):
                wgt = w_ref[((o * C + i) * 3 + (dh + 1)) * 3 + (dw + 1)]
                y_ch[o] = y_ch[o] + wgt * t[i]
    y = jnp.stack(y_ch, axis=0)                      # (C, Bblk, HW)

    # ---- depthwise Sobel: one pass over 9 shared taps, 4 direction accums ----
    e = [jnp.zeros_like(y) for _ in range(4)]
    for dh, dw in _OFFSETS:
        coefs = [SOBEL_KERNELS[d][dh + 1][dw + 1] for d in range(4)]
        if not any(coefs):
            continue                                  # center tap: all coefs 0
        t = _tap(y, dh, dw, W, mask_l, mask_r)
        for d, cf in enumerate(coefs):
            if cf:
                e[d] = e[d] + float(cf) * t
    x_edge = jnp.abs(e[0])
    for d in range(1, 4):
        x_edge = jnp.maximum(x_edge, jnp.abs(e[d]))   # (C, Bblk, HW)

    # ---- channel pooling + 1x1 conv (scalar affine) + sigmoid gate -----------
    avg_pool = jnp.sum(x_edge, axis=0) * (1.0 / C)    # (Bblk, HW)
    max_pool = jnp.max(x_edge, axis=0)                # (Bblk, HW)
    m2 = jax.nn.sigmoid((avg_pool + max_pool) * cw_ref[0] + cw_ref[1])

    # Gate the original input; dense, lane-aligned (multiple-of-128) store.
    o_ref[...] = x_ref[...] * m2[:, None, :]


def sobel_edge_attention(x_nchw, w_pre, b_pre, w1, b1):
    """x_nchw: (B, C, H, W) f32; w_pre: (C, C, 3, 3) OIHW; b_pre: (C,); w1, b1 scalars."""
    B, C, H, W = x_nchw.shape
    HW = H * W
    # Only free reshapes on the wrapper side: no padding, no transposes.
    x_flat = x_nchw.reshape(B, C, HW).astype(jnp.float32)
    w_flat = w_pre.astype(jnp.float32).reshape(C * C * 9)   # (o, i, kh, kw) row-major
    b_flat = b_pre.astype(jnp.float32).reshape(C)
    cw = jnp.stack([jnp.asarray(w1, jnp.float32).reshape(()),
                    jnp.asarray(b1, jnp.float32).reshape(())])

    # Batch blocking: >= 2 grid steps when possible (feeds both TCs on v7x via
    # "parallel"), up to 8 images per step (fills sublanes / amortizes the
    # ~0.35us per-step pipeline overhead).
    if B >= 16:
        bblk = 8
    elif B >= 2:
        bblk = B // 2
    else:
        bblk = 1
    while B % bblk:
        bblk -= 1
    nb = B // bblk

    block_bytes = bblk * C * HW * 4
    vmem_limit = int(min(64 * 2 ** 20, max(16 * 2 ** 20, 8 * block_bytes)))

    kernel = functools.partial(sobel_edge_attention_kernel, H=H, W=W)
    out = pl.pallas_call(
        kernel,
        out_shape=jax.ShapeDtypeStruct((B, C, HW), jnp.float32),
        grid_spec=pltpu.PrefetchScalarGridSpec(
            num_scalar_prefetch=0,
            grid=(nb,),
            in_specs=[
                pl.BlockSpec(memory_space=pltpu.MemorySpace.SMEM),   # pre_conv weight
                pl.BlockSpec(memory_space=pltpu.MemorySpace.SMEM),   # pre_conv bias
                pl.BlockSpec(memory_space=pltpu.MemorySpace.SMEM),   # conv1x1 (w, b)
                pl.BlockSpec((bblk, C, HW), lambda b: (b, 0, 0)),    # x
            ],
            out_specs=pl.BlockSpec((bblk, C, HW), lambda b: (b, 0, 0)),
        ),
        compiler_params=pltpu.CompilerParams(
            dimension_semantics=("parallel",),
            vmem_limit_bytes=vmem_limit),
    )(w_flat, b_flat, cw, x_flat)
    return out.reshape(B, C, H, W)


def ref_forward(x, w_pre, b_pre, w1, b1):
    """Pure-JAX NCHW reference mirroring the PyTorch forward."""
    B, C, H, W = x.shape
    xc = lax.conv_general_dilated(
        x, w_pre, (1, 1), ((1, 1), (1, 1)),
        dimension_numbers=("NCHW", "OIHW", "NCHW"),
        precision=lax.Precision.HIGHEST) + b_pre[None, :, None, None]
    sob = jnp.asarray(SOBEL_KERNELS, jnp.float32)[:, None]           # (4,1,3,3)
    sob_rep = jnp.tile(sob, (C, 1, 1, 1))                            # (4C,1,3,3)
    em = lax.conv_general_dilated(
        xc, sob_rep, (1, 1), ((1, 1), (1, 1)),
        dimension_numbers=("NCHW", "OIHW", "NCHW"),
        feature_group_count=C, precision=lax.Precision.HIGHEST)
    em = em.reshape(B, C, 4, H, W)
    x_edge = jnp.abs(em).max(axis=2)
    avg_pool = x_edge.mean(axis=1, keepdims=True)
    max_pool = x_edge.max(axis=1, keepdims=True)
    m2 = jax.nn.sigmoid((avg_pool + max_pool) * w1 + b1)
    return x * m2


if __name__ == "__main__":
    B, C, H, W = 2, 4, 16, 16
    key = jax.random.PRNGKey(0)
    kx, kw, kb, kc = jax.random.split(key, 4)

    x = jax.random.normal(kx, (B, C, H, W), jnp.float32)
    # pre_conv: kaiming_normal_(mode='fan_out') -> std = sqrt(2 / (C_out * 3 * 3)).
    w_pre = jax.random.normal(kw, (C, C, 3, 3), jnp.float32) * jnp.sqrt(2.0 / (C * 9))
    # The module zero-inits the bias, but the forward semantics include it; use a
    # nonzero bias to exercise that path (it does NOT cancel at image borders).
    b_pre = 0.1 * jax.random.normal(kb, (C,), jnp.float32)
    # conv1x1: weight shape (1,1,1,1), fan_out = 1 -> std = sqrt(2); bias = 0.
    w1 = jax.random.normal(kc, (), jnp.float32) * jnp.sqrt(2.0)
    b1 = jnp.float32(0.0)

    out = sobel_edge_attention(x, w_pre, b_pre, w1, b1)
    out = jax.block_until_ready(out)

    ref = ref_forward(x, w_pre, b_pre, w1, b1)
    assert out.shape == (B, C, H, W)
    err = float(jnp.max(jnp.abs(out - ref)))
    assert jnp.allclose(out, ref, rtol=1e-4, atol=1e-4), err
    print("KERNEL_OK")
</pallas_src>

<mosaic_0001>
module attributes {stable_mosaic.version = 11 : i64} {
  func.func @sobel_edge_attention_kernel(%arg0: i32, %arg1: memref<144xf32, #tpu.memory_space<smem>>, %arg2: memref<4xf32, #tpu.memory_space<smem>>, %arg3: memref<2xf32, #tpu.memory_space<smem>>, %arg4: memref<1x4x256xf32, #tpu.memory_space<vmem>>, %arg5: memref<1x4x256xf32, #tpu.memory_space<vmem>>) attributes {dimension_semantics = [#tpu.dimension_semantics<parallel>], iteration_bounds = array<i64: 2>, scalar_prefetch = 0 : i64, scratch_operands = 0 : i64, tpu.core_type = #tpu.core_type<tc>, window_params = [{transform_indices = @transform_0, window_bounds = array<i64: 144>}, {transform_indices = @transform_1, window_bounds = array<i64: 4>}, {transform_indices = @transform_2, window_bounds = array<i64: 2>}, {transform_indices = @transform_3, window_bounds = array<i64: 1, 4, 256>}, {transform_indices = @transform_4, window_bounds = array<i64: 1, 4, 256>}]} {
    %0 = tpu.iota {dimensions = array<i32: 1>} : vector<1x256xi32>
    %c16_i32 = arith.constant 16 : i32
    %c0_i32 = arith.constant 0 : i32
    %1 = arith.cmpi eq, %c16_i32, %c0_i32 : i32
    %c1_i32 = arith.constant 1 : i32
    %2 = arith.select %1, %c1_i32, %c16_i32 : i32
    %3 = vector.broadcast %2 : i32 to vector<1x256xi32>
    %4 = arith.remsi %0, %3 : vector<1x256xi32>
    %c0_i32_0 = arith.constant 0 : i32
    %5 = vector.broadcast %c0_i32_0 : i32 to vector<1x256xi32>
    %6 = arith.cmpi ne, %4, %5 : vector<1x256xi32>
    %c0_i32_1 = arith.constant 0 : i32
    %7 = vector.broadcast %c0_i32_1 : i32 to vector<1x256xi32>
    %8 = arith.cmpi slt, %4, %7 : vector<1x256xi32>
    %c0_i32_2 = arith.constant 0 : i32
    %9 = arith.cmpi slt, %2, %c0_i32_2 : i32
    %10 = vector.broadcast %9 : i1 to vector<1x256xi1>
    %11 = vector.broadcast %10 : vector<1x256xi1> to vector<1x256xi1>
    %12 = arith.xori %8, %11 : vector<1x256xi1>
    %13 = arith.andi %12, %6 : vector<1x256xi1>
    %14 = vector.broadcast %2 : i32 to vector<1x256xi32>
    %15 = arith.addi %4, %14 : vector<1x256xi32>
    %16 = arith.select %13, %15, %4 : vector<1x256xi1>, vector<1x256xi32>
    %c1_i32_3 = arith.constant 1 : i32
    %17 = vector.broadcast %c1_i32_3 : i32 to vector<1x256xi32>
    %18 = arith.cmpi sge, %16, %17 : vector<1x256xi32>
    %c14_i32 = arith.constant 14 : i32
    %19 = vector.broadcast %c14_i32 : i32 to vector<1x256xi32>
    %20 = arith.cmpi sle, %16, %19 : vector<1x256xi32>
    %c0 = arith.constant 0 : index
    %c0_4 = arith.constant 0 : index
    %c0_5 = arith.constant 0 : index
    %21 = vector.load %arg4[%c0, %c0_4, %c0_5] : memref<1x4x256xf32, #tpu.memory_space<vmem>>, vector<1x1x256xf32>
    %22 = vector.shape_cast %21 : vector<1x1x256xf32> to vector<1x256xf32>
    %c0_6 = arith.constant 0 : index
    %c1 = arith.constant 1 : index
    %c0_7 = arith.constant 0 : index
    %23 = vector.load %arg4[%c0_6, %c1, %c0_7] : memref<1x4x256xf32, #tpu.memory_space<vmem>>, vector<1x1x256xf32>
    %24 = vector.shape_cast %23 : vector<1x1x256xf32> to vector<1x256xf32>
    %c0_8 = arith.constant 0 : index
    %c2 = arith.constant 2 : index
    %c0_9 = arith.constant 0 : index
    %25 = vector.load %arg4[%c0_8, %c2, %c0_9] : memref<1x4x256xf32, #tpu.memory_space<vmem>>, vector<1x1x256xf32>
    %26 = vector.shape_cast %25 : vector<1x1x256xf32> to vector<1x256xf32>
    %c0_10 = arith.constant 0 : index
    %c3 = arith.constant 3 : index
    %c0_11 = arith.constant 0 : index
    %27 = vector.load %arg4[%c0_10, %c3, %c0_11] : memref<1x4x256xf32, #tpu.memory_space<vmem>>, vector<1x1x256xf32>
    %28 = vector.shape_cast %27 : vector<1x1x256xf32> to vector<1x256xf32>
    %29 = vector.shape_cast %22 : vector<1x256xf32> to vector<1x1x256xf32>
    %30 = vector.shape_cast %24 : vector<1x256xf32> to vector<1x1x256xf32>
    %31 = vector.shape_cast %26 : vector<1x256xf32> to vector<1x1x256xf32>
    %32 = vector.shape_cast %28 : vector<1x256xf32> to vector<1x1x256xf32>
    %33 = tpu.concatenate %29, %30, %31, %32 in 0 : vector<1x1x256xf32>, vector<1x1x256xf32>, vector<1x1x256xf32>, vector<1x1x256xf32> -> vector<4x1x256xf32>
    %c0_12 = arith.constant 0 : index
    %34 = memref.load %arg2[%c0_12] : memref<4xf32, #tpu.memory_space<smem>>
    %cst = arith.constant 0.000000e+00 : f32
    %35 = vector.broadcast %cst : f32 to vector<1x256xf32>
    %36 = vector.broadcast %34 : f32 to vector<1x256xf32>
    %37 = arith.addf %36, %35 : vector<1x256xf32>
    %c1_13 = arith.constant 1 : index
    %38 = memref.load %arg2[%c1_13] : memref<4xf32, #tpu.memory_space<smem>>
    %cst_14 = arith.constant 0.000000e+00 : f32
    %39 = vector.broadcast %cst_14 : f32 to vector<1x256xf32>
    %40 = vector.broadcast %38 : f32 to vector<1x256xf32>
    %41 = arith.addf %40, %39 : vector<1x256xf32>
    %c2_15 = arith.constant 2 : index
    %42 = memref.load %arg2[%c2_15] : memref<4xf32, #tpu.memory_space<smem>>
    %cst_16 = arith.constant 0.000000e+00 : f32
    %43 = vector.broadcast %cst_16 : f32 to vector<1x256xf32>
    %44 = vector.broadcast %42 : f32 to vector<1x256xf32>
    %45 = arith.addf %44, %43 : vector<1x256xf32>
    %c3_17 = arith.constant 3 : index
    %46 = memref.load %arg2[%c3_17] : memref<4xf32, #tpu.memory_space<smem>>
    %cst_18 = arith.constant 0.000000e+00 : f32
    %47 = vector.broadcast %cst_18 : f32 to vector<1x256xf32>
    %48 = vector.broadcast %46 : f32 to vector<1x256xf32>
    %49 = arith.addf %48, %47 : vector<1x256xf32>
    %cst_19 = arith.constant 0.000000e+00 : f32
    %50 = vector.broadcast %cst_19 : f32 to vector<4x1x17xf32>
    %51 = vector.extract_strided_slice %33 {offsets = [0, 0, 0], sizes = [4, 1, 239], strides = [1, 1, 1]} : vector<4x1x256xf32> to vector<4x1x239xf32>
    %52 = tpu.concatenate %50, %51 in 2 : vector<4x1x17xf32>, vector<4x1x239xf32> -> vector<4x1x256xf32>
    %cst_20 = arith.constant 0.000000e+00 : f32
    %53 = vector.shape_cast %18 : vector<1x256xi1> to vector<1x1x256xi1>
    %54 = vector.broadcast %53 : vector<1x1x256xi1> to vector<4x1x256xi1>
    %55 = vector.broadcast %cst_20 : f32 to vector<4x1x256xf32>
    %56 = arith.select %54, %52, %55 : vector<4x1x256xi1>, vector<4x1x256xf32>
    %c0_21 = arith.constant 0 : index
    %57 = memref.load %arg1[%c0_21] : memref<144xf32, #tpu.memory_space<smem>>
    %58 = vector.extract_strided_slice %56 {offsets = [0, 0, 0], sizes = [1, 1, 256], strides = [1, 1, 1]} : vector<4x1x256xf32> to vector<1x1x256xf32>
    %59 = vector.shape_cast %58 : vector<1x1x256xf32> to vector<1x256xf32>
    %60 = vector.broadcast %57 : f32 to vector<1x256xf32>
    %61 = arith.mulf %60, %59 : vector<1x256xf32>
    %62 = arith.addf %37, %61 : vector<1x256xf32>
    %c9 = arith.constant 9 : index
    %63 = memref.load %arg1[%c9] : memref<144xf32, #tpu.memory_space<smem>>
    %64 = vector.extract_strided_slice %56 {offsets = [1, 0, 0], sizes = [1, 1, 256], strides = [1, 1, 1]} : vector<4x1x256xf32> to vector<1x1x256xf32>
    %65 = vector.shape_cast %64 : vector<1x1x256xf32> to vector<1x256xf32>
    %66 = vector.broadcast %63 : f32 to vector<1x256xf32>
    %67 = arith.mulf %66, %65 : vector<1x256xf32>
    %68 = arith.addf %62, %67 : vector<1x256xf32>
    %c18 = arith.constant 18 : index
    %69 = memref.load %arg1[%c18] : memref<144xf32, #tpu.memory_space<smem>>
    %70 = vector.extract_strided_slice %56 {offsets = [2, 0, 0], sizes = [1, 1, 256], strides = [1, 1, 1]} : vector<4x1x256xf32> to vector<1x1x256xf32>
    %71 = vector.shape_cast %70 : vector<1x1x256xf32> to vector<1x256xf32>
    %72 = vector.broadcast %69 : f32 to vector<1x256xf32>
    %73 = arith.mulf %72, %71 : vector<1x256xf32>
    %74 = arith.addf %68, %73 : vector<1x256xf32>
    %c27 = arith.constant 27 : index
    %75 = memref.load %arg1[%c27] : memref<144xf32, #tpu.memory_space<smem>>
    %76 = vector.extract_strided_slice %56 {offsets = [3, 0, 0], sizes = [1, 1, 256], strides = [1, 1, 1]} : vector<4x1x256xf32> to vector<1x1x256xf32>
    %77 = vector.shape_cast %76 : vector<1x1x256xf32> to vector<1x256xf32>
    %78 = vector.broadcast %75 : f32 to vector<1x256xf32>
    %79 = arith.mulf %78, %77 : vector<1x256xf32>
    %80 = arith.addf %74, %79 : vector<1x256xf32>
    %c36 = arith.constant 36 : index
    %81 = memref.load %arg1[%c36] : memref<144xf32, #tpu.memory_space<smem>>
    %82 = vector.extract_strided_slice %56 {offsets = [0, 0, 0], sizes = [1, 1, 256], strides = [1, 1, 1]} : vector<4x1x256xf32> to vector<1x1x256xf32>
    %83 = vector.shape_cast %82 : vector<1x1x256xf32> to vector<1x256xf32>
    %84 = vector.broadcast %81 : f32 to vector<1x256xf32>
    %85 = arith.mulf %84, %83 : vector<1x256xf32>
    %86 = arith.addf %41, %85 : vector<1x256xf32>
    %c45 = arith.constant 45 : index
    %87 = memref.load %arg1[%c45] : memref<144xf32, #tpu.memory_space<smem>>
    %88 = vector.extract_strided_slice %56 {offsets = [1, 0, 0], sizes = [1, 1, 256], strides = [1, 1, 1]} : vector<4x1x256xf32> to vector<1x1x256xf32>
    %89 = vector.shape_cast %88 : vector<1x1x256xf32> to vector<1x256xf32>
    %90 = vector.broadcast %87 : f32 to vector<1x256xf32>
    %91 = arith.mulf %90, %89 : vector<1x256xf32>
    %92 = arith.addf %86, %91 : vector<1x256xf32>
    %c54 = arith.constant 54 : index
    %93 = memref.load %arg1[%c54] : memref<144xf32, #tpu.memory_space<smem>>
    %94 = vector.extract_strided_slice %56 {offsets = [2, 0, 0], sizes = [1, 1, 256], strides = [1, 1, 1]} : vector<4x1x256xf32> to vector<1x1x256xf32>
    %95 = vector.shape_cast %94 : vector<1x1x256xf32> to vector<1x256xf32>
    %96 = vector.broadcast %93 : f32 to vector<1x256xf32>
    %97 = arith.mulf %96, %95 : vector<1x256xf32>
    %98 = arith.addf %92, %97 : vector<1x256xf32>
    %c63 = arith.constant 63 : index
    %99 = memref.load %arg1[%c63] : memref<144xf32, #tpu.memory_space<smem>>
    %100 = vector.extract_strided_slice %56 {offsets = [3, 0, 0], sizes = [1, 1, 256], strides = [1, 1, 1]} : vector<4x1x256xf32> to vector<1x1x256xf32>
    %101 = vector.shape_cast %100 : vector<1x1x256xf32> to vector<1x256xf32>
    %102 = vector.broadcast %99 : f32 to vector<1x256xf32>
    %103 = arith.mulf %102, %101 : vector<1x256xf32>
    %104 = arith.addf %98, %103 : vector<1x256xf32>
    %c72 = arith.constant 72 : index
    %105 = memref.load %arg1[%c72] : memref<144xf32, #tpu.memory_space<smem>>
    %106 = vector.extract_strided_slice %56 {offsets = [0, 0, 0], sizes = [1, 1, 256], strides = [1, 1, 1]} : vector<4x1x256xf32> to vector<1x1x256xf32>
    %107 = vector.shape_cast %106 : vector<1x1x256xf32> to vector<1x256xf32>
    %108 = vector.broadcast %105 : f32 to vector<1x256xf32>
    %109 = arith.mulf %108, %107 : vector<1x256xf32>
    %110 = arith.addf %45, %109 : vector<1x256xf32>
    %c81 = arith.constant 81 : index
    %111 = memref.load %arg1[%c81] : memref<144xf32, #tpu.memory_space<smem>>
    %112 = vector.extract_strided_slice %56 {offsets = [1, 0, 0], sizes = [1, 1, 256], strides = [1, 1, 1]} : vector<4x1x256xf32> to vector<1x1x256xf32>
    %113 = vector.shape_cast %112 : vector<1x1x256xf32> to vector<1x256xf32>
    %114 = vector.broadcast %111 : f32 to vector<1x256xf32>
    %115 = arith.mulf %114, %113 : vector<1x256xf32>
    %116 = arith.addf %110, %115 : vector<1x256xf32>
    %c90 = arith.constant 90 : index
    %117 = memref.load %arg1[%c90] : memref<144xf32, #tpu.memory_space<smem>>
    %118 = vector.extract_strided_slice %56 {offsets = [2, 0, 0], sizes = [1, 1, 256], strides = [1, 1, 1]} : vector<4x1x256xf32> to vector<1x1x256xf32>
    %119 = vector.shape_cast %118 : vector<1x1x256xf32> to vector<1x256xf32>
    %120 = vector.broadcast %117 : f32 to vector<1x256xf32>
    %121 = arith.mulf %120, %119 : vector<1x256xf32>
    %122 = arith.addf %116, %121 : vector<1x256xf32>
    %c99 = arith.constant 99 : index
    %123 = memref.load %arg1[%c99] : memref<144xf32, #tpu.memory_space<smem>>
    %124 = vector.extract_strided_slice %56 {offsets = [3, 0, 0], sizes = [1, 1, 256], strides = [1, 1, 1]} : vector<4x1x256xf32> to vector<1x1x256xf32>
    %125 = vector.shape_cast %124 : vector<1x1x256xf32> to vector<1x256xf32>
    %126 = vector.broadcast %123 : f32 to vector<1x256xf32>
    %127 = arith.mulf %126, %125 : vector<1x256xf32>
    %128 = arith.addf %122, %127 : vector<1x256xf32>
    %c108 = arith.constant 108 : index
    %129 = memref.load %arg1[%c108] : memref<144xf32, #tpu.memory_space<smem>>
    %130 = vector.extract_strided_slice %56 {offsets = [0, 0, 0], sizes = [1, 1, 256], strides = [1, 1, 1]} : vector<4x1x256xf32> to vector<1x1x256xf32>
    %131 = vector.shape_cast %130 : vector<1x1x256xf32> to vector<1x256xf32>
    %132 = vector.broadcast %129 : f32 to vector<1x256xf32>
    %133 = arith.mulf %132, %131 : vector<1x256xf32>
    %134 = arith.addf %49, %133 : vector<1x256xf32>
    %c117 = arith.constant 117 : index
    %135 = memref.load %arg1[%c117] : memref<144xf32, #tpu.memory_space<smem>>
    %136 = vector.extract_strided_slice %56 {offsets = [1, 0, 0], sizes = [1, 1, 256], strides = [1, 1, 1]} : vector<4x1x256xf32> to vector<1x1x256xf32>
    %137 = vector.shape_cast %136 : vector<1x1x256xf32> to vector<1x256xf32>
    %138 = vector.broadcast %135 : f32 to vector<1x256xf32>
    %139 = arith.mulf %138, %137 : vector<1x256xf32>
    %140 = arith.addf %134, %139 : vector<1x256xf32>
    %c126 = arith.constant 126 : index
    %141 = memref.load %arg1[%c126] : memref<144xf32, #tpu.memory_space<smem>>
    %142 = vector.extract_strided_slice %56 {offsets = [2, 0, 0], sizes = [1, 1, 256], strides = [1, 1, 1]} : vector<4x1x256xf32> to vector<1x1x256xf32>
    %143 = vector.shape_cast %142 : vector<1x1x256xf32> to vector<1x256xf32>
    %144 = vector.broadcast %141 : f32 to vector<1x256xf32>
    %145 = arith.mulf %144, %143 : vector<1x256xf32>
    %146 = arith.addf %140, %145 : vector<1x256xf32>
    %c135 = arith.constant 135 : index
    %147 = memref.load %arg1[%c135] : memref<144xf32, #tpu.memory_space<smem>>
    %148 = vector.extract_strided_slice %56 {offsets = [3, 0, 0], sizes = [1, 1, 256], strides = [1, 1, 1]} : vector<4x1x256xf32> to vector<1x1x256xf32>
    %149 = vector.shape_cast %148 : vector<1x1x256xf32> to vector<1x256xf32>
    %150 = vector.broadcast %147 : f32 to vector<1x256xf32>
    %151 = arith.mulf %150, %149 : vector<1x256xf32>
    %152 = arith.addf %146, %151 : vector<1x256xf32>
    %cst_22 = arith.constant 0.000000e+00 : f32
    %153 = vector.broadcast %cst_22 : f32 to vector<4x1x16xf32>
    %154 = vector.extract_strided_slice %33 {offsets = [0, 0, 0], sizes = [4, 1, 240], strides = [1, 1, 1]} : vector<4x1x256xf32> to vector<4x1x240xf32>
    %155 = tpu.concatenate %153, %154 in 2 : vector<4x1x16xf32>, vector<4x1x240xf32> -> vector<4x1x256xf32>
    %c1_23 = arith.constant 1 : index
    %156 = memref.load %arg1[%c1_23] : memref<144xf32, #tpu.memory_space<smem>>
    %157 = vector.extract_strided_slice %155 {offsets = [0, 0, 0], sizes = [1, 1, 256], strides = [1, 1, 1]} : vector<4x1x256xf32> to vector<1x1x256xf32>
    %158 = vector.shape_cast %157 : vector<1x1x256xf32> to vector<1x256xf32>
    %159 = vector.broadcast %156 : f32 to vector<1x256xf32>
    %160 = arith.mulf %159, %158 : vector<1x256xf32>
    %161 = arith.addf %80, %160 : vector<1x256xf32>
    %c10 = arith.constant 10 : index
    %162 = memref.load %arg1[%c10] : memref<144xf32, #tpu.memory_space<smem>>
    %163 = vector.extract_strided_slice %155 {offsets = [1, 0, 0], sizes = [1, 1, 256], strides = [1, 1, 1]} : vector<4x1x256xf32> to vector<1x1x256xf32>
    %164 = vector.shape_cast %163 : vector<1x1x256xf32> to vector<1x256xf32>
    %165 = vector.broadcast %162 : f32 to vector<1x256xf32>
    %166 = arith.mulf %165, %164 : vector<1x256xf32>
    %167 = arith.addf %161, %166 : vector<1x256xf32>
    %c19 = arith.constant 19 : index
    %168 = memref.load %arg1[%c19] : memref<144xf32, #tpu.memory_space<smem>>
    %169 = vector.extract_strided_slice %155 {offsets = [2, 0, 0], sizes = [1, 1, 256], strides = [1, 1, 1]} : vector<4x1x256xf32> to vector<1x1x256xf32>
    %170 = vector.shape_cast %169 : vector<1x1x256xf32> to vector<1x256xf32>
    %171 = vector.broadcast %168 : f32 to vector<1x256xf32>
    %172 = arith.mulf %171, %170 : vector<1x256xf32>
    %173 = arith.addf %167, %172 : vector<1x256xf32>
    %c28 = arith.constant 28 : index
    %174 = memref.load %arg1[%c28] : memref<144xf32, #tpu.memory_space<smem>>
    %175 = vector.extract_strided_slice %155 {offsets = [3, 0, 0], sizes = [1, 1, 256], strides = [1, 1, 1]} : vector<4x1x256xf32> to vector<1x1x256xf32>
    %176 = vector.shape_cast %175 : vector<1x1x256xf32> to vector<1x256xf32>
    %177 = vector.broadcast %174 : f32 to vector<1x256xf32>
    %178 = arith.mulf %177, %176 : vector<1x256xf32>
    %179 = arith.addf %173, %178 : vector<1x256xf32>
    %c37 = arith.constant 37 : index
    %180 = memref.load %arg1[%c37] : memref<144xf32, #tpu.memory_space<smem>>
    %181 = vector.extract_strided_slice %155 {offsets = [0, 0, 0], sizes = [1, 1, 256], strides = [1, 1, 1]} : vector<4x1x256xf32> to vector<1x1x256xf32>
    %182 = vector.shape_cast %181 : vector<1x1x256xf32> to vector<1x256xf32>
    %183 = vector.broadcast %180 : f32 to vector<1x256xf32>
    %184 = arith.mulf %183, %182 : vector<1x256xf32>
    %185 = arith.addf %104, %184 : vector<1x256xf32>
    %c46 = arith.constant 46 : index
    %186 = memref.load %arg1[%c46] : memref<144xf32, #tpu.memory_space<smem>>
    %187 = vector.extract_strided_slice %155 {offsets = [1, 0, 0], sizes = [1, 1, 256], strides = [1, 1, 1]} : vector<4x1x256xf32> to vector<1x1x256xf32>
    %188 = vector.shape_cast %187 : vector<1x1x256xf32> to vector<1x256xf32>
    %189 = vector.broadcast %186 : f32 to vector<1x256xf32>
    %190 = arith.mulf %189, %188 : vector<1x256xf32>
    %191 = arith.addf %185, %190 : vector<1x256xf32>
    %c55 = arith.constant 55 : index
    %192 = memref.load %arg1[%c55] : memref<144xf32, #tpu.memory_space<smem>>
    %193 = vector.extract_strided_slice %155 {offsets = [2, 0, 0], sizes = [1, 1, 256], strides = [1, 1, 1]} : vector<4x1x256xf32> to vector<1x1x256xf32>
    %194 = vector.shape_cast %193 : vector<1x1x256xf32> to vector<1x256xf32>
    %195 = vector.broadcast %192 : f32 to vector<1x256xf32>
    %196 = arith.mulf %195, %194 : vector<1x256xf32>
    %197 = arith.addf %191, %196 : vector<1x256xf32>
    %c64 = arith.constant 64 : index
    %198 = memref.load %arg1[%c64] : memref<144xf32, #tpu.memory_space<smem>>
    %199 = vector.extract_strided_slice %155 {offsets = [3, 0, 0], sizes = [1, 1, 256], strides = [1, 1, 1]} : vector<4x1x256xf32> to vector<1x1x256xf32>
    %200 = vector.shape_cast %199 : vector<1x1x256xf32> to vector<1x256xf32>
    %201 = vector.broadcast %198 : f32 to vector<1x256xf32>
    %202 = arith.mulf %201, %200 : vector<1x256xf32>
    %203 = arith.addf %197, %202 : vector<1x256xf32>
    %c73 = arith.constant 73 : index
    %204 = memref.load %arg1[%c73] : memref<144xf32, #tpu.memory_space<smem>>
    %205 = vector.extract_strided_slice %155 {offsets = [0, 0, 0], sizes = [1, 1, 256], strides = [1, 1, 1]} : vector<4x1x256xf32> to vector<1x1x256xf32>
    %206 = vector.shape_cast %205 : vector<1x1x256xf32> to vector<1x256xf32>
    %207 = vector.broadcast %204 : f32 to vector<1x256xf32>
    %208 = arith.mulf %207, %206 : vector<1x256xf32>
    %209 = arith.addf %128, %208 : vector<1x256xf32>
    %c82 = arith.constant 82 : index
    %210 = memref.load %arg1[%c82] : memref<144xf32, #tpu.memory_space<smem>>
    %211 = vector.extract_strided_slice %155 {offsets = [1, 0, 0], sizes = [1, 1, 256], strides = [1, 1, 1]} : vector<4x1x256xf32> to vector<1x1x256xf32>
    %212 = vector.shape_cast %211 : vector<1x1x256xf32> to vector<1x256xf32>
    %213 = vector.broadcast %210 : f32 to vector<1x256xf32>
    %214 = arith.mulf %213, %212 : vector<1x256xf32>
    %215 = arith.addf %209, %214 : vector<1x256xf32>
    %c91 = arith.constant 91 : index
    %216 = memref.load %arg1[%c91] : memref<144xf32, #tpu.memory_space<smem>>
    %217 = vector.extract_strided_slice %155 {offsets = [2, 0, 0], sizes = [1, 1, 256], strides = [1, 1, 1]} : vector<4x1x256xf32> to vector<1x1x256xf32>
    %218 = vector.shape_cast %217 : vector<1x1x256xf32> to vector<1x256xf32>
    %219 = vector.broadcast %216 : f32 to vector<1x256xf32>
    %220 = arith.mulf %219, %218 : vector<1x256xf32>
    %221 = arith.addf %215, %220 : vector<1x256xf32>
    %c100 = arith.constant 100 : index
    %222 = memref.load %arg1[%c100] : memref<144xf32, #tpu.memory_space<smem>>
    %223 = vector.extract_strided_slice %155 {offsets = [3, 0, 0], sizes = [1, 1, 256], strides = [1, 1, 1]} : vector<4x1x256xf32> to vector<1x1x256xf32>
    %224 = vector.shape_cast %223 : vector<1x1x256xf32> to vector<1x256xf32>
    %225 = vector.broadcast %222 : f32 to vector<1x256xf32>
    %226 = arith.mulf %225, %224 : vector<1x256xf32>
    %227 = arith.addf %221, %226 : vector<1x256xf32>
    %c109 = arith.constant 109 : index
    %228 = memref.load %arg1[%c109] : memref<144xf32, #tpu.memory_space<smem>>
    %229 = vector.extract_strided_slice %155 {offsets = [0, 0, 0], sizes = [1, 1, 256], strides = [1, 1, 1]} : vector<4x1x256xf32> to vector<1x1x256xf32>
    %230 = vector.shape_cast %229 : vector<1x1x256xf32> to vector<1x256xf32>
    %231 = vector.broadcast %228 : f32 to vector<1x256xf32>
    %232 = arith.mulf %231, %230 : vector<1x256xf32>
    %233 = arith.addf %152, %232 : vector<1x256xf32>
    %c118 = arith.constant 118 : index
    %234 = memref.load %arg1[%c118] : memref<144xf32, #tpu.memory_space<smem>>
    %235 = vector.extract_strided_slice %155 {offsets = [1, 0, 0], sizes = [1, 1, 256], strides = [1, 1, 1]} : vector<4x1x256xf32> to vector<1x1x256xf32>
    %236 = vector.shape_cast %235 : vector<1x1x256xf32> to vector<1x256xf32>
    %237 = vector.broadcast %234 : f32 to vector<1x256xf32>
    %238 = arith.mulf %237, %236 : vector<1x256xf32>
    %239 = arith.addf %233, %238 : vector<1x256xf32>
    %c127 = arith.constant 127 : index
    %240 = memref.load %arg1[%c127] : memref<144xf32, #tpu.memory_space<smem>>
    %241 = vector.extract_strided_slice %155 {offsets = [2, 0, 0], sizes = [1, 1, 256], strides = [1, 1, 1]} : vector<4x1x256xf32> to vector<1x1x256xf32>
    %242 = vector.shape_cast %241 : vector<1x1x256xf32> to vector<1x256xf32>
    %243 = vector.broadcast %240 : f32 to vector<1x256xf32>
    %244 = arith.mulf %243, %242 : vector<1x256xf32>
    %245 = arith.addf %239, %244 : vector<1x256xf32>
    %c136 = arith.constant 136 : index
    %246 = memref.load %arg1[%c136] : memref<144xf32, #tpu.memory_space<smem>>
    %247 = vector.extract_strided_slice %155 {offsets = [3, 0, 0], sizes = [1, 1, 256], strides = [1, 1, 1]} : vector<4x1x256xf32> to vector<1x1x256xf32>
    %248 = vector.shape_cast %247 : vector<1x1x256xf32> to vector<1x256xf32>
    %249 = vector.broadcast %246 : f32 to vector<1x256xf32>
    %250 = arith.mulf %249, %248 : vector<1x256xf32>
    %251 = arith.addf %245, %250 : vector<1x256xf32>
    %cst_24 = arith.constant 0.000000e+00 : f32
    %252 = vector.broadcast %cst_24 : f32 to vector<4x1x15xf32>
    %253 = vector.extract_strided_slice %33 {offsets = [0, 0, 0], sizes = [4, 1, 241], strides = [1, 1, 1]} : vector<4x1x256xf32> to vector<4x1x241xf32>
    %254 = tpu.concatenate %252, %253 in 2 : vector<4x1x15xf32>, vector<4x1x241xf32> -> vector<4x1x256xf32>
    %cst_25 = arith.constant 0.000000e+00 : f32
    %255 = vector.shape_cast %20 : vector<1x256xi1> to vector<1x1x256xi1>
    %256 = vector.broadcast %255 : vector<1x1x256xi1> to vector<4x1x256xi1>
    %257 = vector.broadcast %cst_25 : f32 to vector<4x1x256xf32>
    %258 = arith.select %256, %254, %257 : vector<4x1x256xi1>, vector<4x1x256xf32>
    %c2_26 = arith.constant 2 : index
    %259 = memref.load %arg1[%c2_26] : memref<144xf32, #tpu.memory_space<smem>>
    %260 = vector.extract_strided_slice %258 {offsets = [0, 0, 0], sizes = [1, 1, 256], strides = [1, 1, 1]} : vector<4x1x256xf32> to vector<1x1x256xf32>
    %261 = vector.shape_cast %260 : vector<1x1x256xf32> to vector<1x256xf32>
    %262 = vector.broadcast %259 : f32 to vector<1x256xf32>
    %263 = arith.mulf %262, %261 : vector<1x256xf32>
    %264 = arith.addf %179, %263 : vector<1x256xf32>
    %c11 = arith.constant 11 : index
    %265 = memref.load %arg1[%c11] : memref<144xf32, #tpu.memory_space<smem>>
    %266 = vector.extract_strided_slice %258 {offsets = [1, 0, 0], sizes = [1, 1, 256], strides = [1, 1, 1]} : vector<4x1x256xf32> to vector<1x1x256xf32>
    %267 = vector.shape_cast %266 : vector<1x1x256xf32> to vector<1x256xf32>
    %268 = vector.broadcast %265 : f32 to vector<1x256xf32>
    %269 = arith.mulf %268, %267 : vector<1x256xf32>
    %270 = arith.addf %264, %269 : vector<1x256xf32>
    %c20 = arith.constant 20 : index
    %271 = memref.load %arg1[%c20] : memref<144xf32, #tpu.memory_space<smem>>
    %272 = vector.extract_strided_slice %258 {offsets = [2, 0, 0], sizes = [1, 1, 256], strides = [1, 1, 1]} : vector<4x1x256xf32> to vector<1x1x256xf32>
    %273 = vector.shape_cast %272 : vector<1x1x256xf32> to vector<1x256xf32>
    %274 = vector.broadcast %271 : f32 to vector<1x256xf32>
    %275 = arith.mulf %274, %273 : vector<1x256xf32>
    %276 = arith.addf %270, %275 : vector<1x256xf32>
    %c29 = arith.constant 29 : index
    %277 = memref.load %arg1[%c29] : memref<144xf32, #tpu.memory_space<smem>>
    %278 = vector.extract_strided_slice %258 {offsets = [3, 0, 0], sizes = [1, 1, 256], strides = [1, 1, 1]} : vector<4x1x256xf32> to vector<1x1x256xf32>
    %279 = vector.shape_cast %278 : vector<1x1x256xf32> to vector<1x256xf32>
    %280 = vector.broadcast %277 : f32 to vector<1x256xf32>
    %281 = arith.mulf %280, %279 : vector<1x256xf32>
    %282 = arith.addf %276, %281 : vector<1x256xf32>
    %c38 = arith.constant 38 : index
    %283 = memref.load %arg1[%c38] : memref<144xf32, #tpu.memory_space<smem>>
    %284 = vector.extract_strided_slice %258 {offsets = [0, 0, 0], sizes = [1, 1, 256], strides = [1, 1, 1]} : vector<4x1x256xf32> to vector<1x1x256xf32>
    %285 = vector.shape_cast %284 : vector<1x1x256xf32> to vector<1x256xf32>
    %286 = vector.broadcast %283 : f32 to vector<1x256xf32>
    %287 = arith.mulf %286, %285 : vector<1x256xf32>
    %288 = arith.addf %203, %287 : vector<1x256xf32>
    %c47 = arith.constant 47 : index
    %289 = memref.load %arg1[%c47] : memref<144xf32, #tpu.memory_space<smem>>
    %290 = vector.extract_strided_slice %258 {offsets = [1, 0, 0], sizes = [1, 1, 256], strides = [1, 1, 1]} : vector<4x1x256xf32> to vector<1x1x256xf32>
    %291 = vector.shape_cast %290 : vector<1x1x256xf32> to vector<1x256xf32>
    %292 = vector.broadcast %289 : f32 to vector<1x256xf32>
    %293 = arith.mulf %292, %291 : vector<1x256xf32>
    %294 = arith.addf %288, %293 : vector<1x256xf32>
    %c56 = arith.constant 56 : index
    %295 = memref.load %arg1[%c56] : memref<144xf32, #tpu.memory_space<smem>>
    %296 = vector.extract_strided_slice %258 {offsets = [2, 0, 0], sizes = [1, 1, 256], strides = [1, 1, 1]} : vector<4x1x256xf32> to vector<1x1x256xf32>
    %297 = vector.shape_cast %296 : vector<1x1x256xf32> to vector<1x256xf32>
    %298 = vector.broadcast %295 : f32 to vector<1x256xf32>
    %299 = arith.mulf %298, %297 : vector<1x256xf32>
    %300 = arith.addf %294, %299 : vector<1x256xf32>
    %c65 = arith.constant 65 : index
    %301 = memref.load %arg1[%c65] : memref<144xf32, #tpu.memory_space<smem>>
    %302 = vector.extract_strided_slice %258 {offsets = [3, 0, 0], sizes = [1, 1, 256], strides = [1, 1, 1]} : vector<4x1x256xf32> to vector<1x1x256xf32>
    %303 = vector.shape_cast %302 : vector<1x1x256xf32> to vector<1x256xf32>
    %304 = vector.broadcast %301 : f32 to vector<1x256xf32>
    %305 = arith.mulf %304, %303 : vector<1x256xf32>
    %306 = arith.addf %300, %305 : vector<1x256xf32>
    %c74 = arith.constant 74 : index
    %307 = memref.load %arg1[%c74] : memref<144xf32, #tpu.memory_space<smem>>
    %308 = vector.extract_strided_slice %258 {offsets = [0, 0, 0], sizes = [1, 1, 256], strides = [1, 1, 1]} : vector<4x1x256xf32> to vector<1x1x256xf32>
    %309 = vector.shape_cast %308 : vector<1x1x256xf32> to vector<1x256xf32>
    %310 = vector.broadcast %307 : f32 to vector<1x256xf32>
    %311 = arith.mulf %310, %309 : vector<1x256xf32>
    %312 = arith.addf %227, %311 : vector<1x256xf32>
    %c83 = arith.constant 83 : index
    %313 = memref.load %arg1[%c83] : memref<144xf32, #tpu.memory_space<smem>>
    %314 = vector.extract_strided_slice %258 {offsets = [1, 0, 0], sizes = [1, 1, 256], strides = [1, 1, 1]} : vector<4x1x256xf32> to vector<1x1x256xf32>
    %315 = vector.shape_cast %314 : vector<1x1x256xf32> to vector<1x256xf32>
    %316 = vector.broadcast %313 : f32 to vector<1x256xf32>
    %317 = arith.mulf %316, %315 : vector<1x256xf32>
    %318 = arith.addf %312, %317 : vector<1x256xf32>
    %c92 = arith.constant 92 : index
    %319 = memref.load %arg1[%c92] : memref<144xf32, #tpu.memory_space<smem>>
    %320 = vector.extract_strided_slice %258 {offsets = [2, 0, 0], sizes = [1, 1, 256], strides = [1, 1, 1]} : vector<4x1x256xf32> to vector<1x1x256xf32>
    %321 = vector.shape_cast %320 : vector<1x1x256xf32> to vector<1x256xf32>
    %322 = vector.broadcast %319 : f32 to vector<1x256xf32>
    %323 = arith.mulf %322, %321 : vector<1x256xf32>
    %324 = arith.addf %318, %323 : vector<1x256xf32>
    %c101 = arith.constant 101 : index
    %325 = memref.load %arg1[%c101] : memref<144xf32, #tpu.memory_space<smem>>
    %326 = vector.extract_strided_slice %258 {offsets = [3, 0, 0], sizes = [1, 1, 256], strides = [1, 1, 1]} : vector<4x1x256xf32> to vector<1x1x256xf32>
    %327 = vector.shape_cast %326 : vector<1x1x256xf32> to vector<1x256xf32>
    %328 = vector.broadcast %325 : f32 to vector<1x256xf32>
    %329 = arith.mulf %328, %327 : vector<1x256xf32>
    %330 = arith.addf %324, %329 : vector<1x256xf32>
    %c110 = arith.constant 110 : index
    %331 = memref.load %arg1[%c110] : memref<144xf32, #tpu.memory_space<smem>>
    %332 = vector.extract_strided_slice %258 {offsets = [0, 0, 0], sizes = [1, 1, 256], strides = [1, 1, 1]} : vector<4x1x256xf32> to vector<1x1x256xf32>
    %333 = vector.shape_cast %332 : vector<1x1x256xf32> to vector<1x256xf32>
    %334 = vector.broadcast %331 : f32 to vector<1x256xf32>
    %335 = arith.mulf %334, %333 : vector<1x256xf32>
    %336 = arith.addf %251, %335 : vector<1x256xf32>
    %c119 = arith.constant 119 : index
    %337 = memref.load %arg1[%c119] : memref<144xf32, #tpu.memory_space<smem>>
    %338 = vector.extract_strided_slice %258 {offsets = [1, 0, 0], sizes = [1, 1, 256], strides = [1, 1, 1]} : vector<4x1x256xf32> to vector<1x1x256xf32>
    %339 = vector.shape_cast %338 : vector<1x1x256xf32> to vector<1x256xf32>
    %340 = vector.broadcast %337 : f32 to vector<1x256xf32>
    %341 = arith.mulf %340, %339 : vector<1x256xf32>
    %342 = arith.addf %336, %341 : vector<1x256xf32>
    %c128 = arith.constant 128 : index
    %343 = memref.load %arg1[%c128] : memref<144xf32, #tpu.memory_space<smem>>
    %344 = vector.extract_strided_slice %258 {offsets = [2, 0, 0], sizes = [1, 1, 256], strides = [1, 1, 1]} : vector<4x1x256xf32> to vector<1x1x256xf32>
    %345 = vector.shape_cast %344 : vector<1x1x256xf32> to vector<1x256xf32>
    %346 = vector.broadcast %343 : f32 to vector<1x256xf32>
    %347 = arith.mulf %346, %345 : vector<1x256xf32>
    %348 = arith.addf %342, %347 : vector<1x256xf32>
    %c137 = arith.constant 137 : index
    %349 = memref.load %arg1[%c137] : memref<144xf32, #tpu.memory_space<smem>>
    %350 = vector.extract_strided_slice %258 {offsets = [3, 0, 0], sizes = [1, 1, 256], strides = [1, 1, 1]} : vector<4x1x256xf32> to vector<1x1x256xf32>
    %351 = vector.shape_cast %350 : vector<1x1x256xf32> to vector<1x256xf32>
    %352 = vector.broadcast %349 : f32 to vector<1x256xf32>
    %353 = arith.mulf %352, %351 : vector<1x256xf32>
    %354 = arith.addf %348, %353 : vector<1x256xf32>
    %cst_27 = arith.constant 0.000000e+00 : f32
    %355 = vector.broadcast %cst_27 : f32 to vector<4x1x1xf32>
    %356 = vector.extract_strided_slice %33 {offsets = [0, 0, 0], sizes = [4, 1, 255], strides = [1, 1, 1]} : vector<4x1x256xf32> to vector<4x1x255xf32>
    %357 = tpu.concatenate %355, %356 in 2 : vector<4x1x1xf32>, vector<4x1x255xf32> -> vector<4x1x256xf32>
    %cst_28 = arith.constant 0.000000e+00 : f32
    %358 = vector.shape_cast %18 : vector<1x256xi1> to vector<1x1x256xi1>
    %359 = vector.broadcast %358 : vector<1x1x256xi1> to vector<4x1x256xi1>
    %360 = vector.broadcast %cst_28 : f32 to vector<4x1x256xf32>
    %361 = arith.select %359, %357, %360 : vector<4x1x256xi1>, vector<4x1x256xf32>
    %c3_29 = arith.constant 3 : index
    %362 = memref.load %arg1[%c3_29] : memref<144xf32, #tpu.memory_space<smem>>
    %363 = vector.extract_strided_slice %361 {offsets = [0, 0, 0], sizes = [1, 1, 256], strides = [1, 1, 1]} : vector<4x1x256xf32> to vector<1x1x256xf32>
    %364 = vector.shape_cast %363 : vector<1x1x256xf32> to vector<1x256xf32>
    %365 = vector.broadcast %362 : f32 to vector<1x256xf32>
    %366 = arith.mulf %365, %364 : vector<1x256xf32>
    %367 = arith.addf %282, %366 : vector<1x256xf32>
    %c12 = arith.constant 12 : index
    %368 = memref.load %arg1[%c12] : memref<144xf32, #tpu.memory_space<smem>>
    %369 = vector.extract_strided_slice %361 {offsets = [1, 0, 0], sizes = [1, 1, 256], strides = [1, 1, 1]} : vector<4x1x256xf32> to vector<1x1x256xf32>
    %370 = vector.shape_cast %369 : vector<1x1x256xf32> to vector<1x256xf32>
    %371 = vector.broadcast %368 : f32 to vector<1x256xf32>
    %372 = arith.mulf %371, %370 : vector<1x256xf32>
    %373 = arith.addf %367, %372 : vector<1x256xf32>
    %c21 = arith.constant 21 : index
    %374 = memref.load %arg1[%c21] : memref<144xf32, #tpu.memory_space<smem>>
    %375 = vector.extract_strided_slice %361 {offsets = [2, 0, 0], sizes = [1, 1, 256], strides = [1, 1, 1]} : vector<4x1x256xf32> to vector<1x1x256xf32>
    %376 = vector.shape_cast %375 : vector<1x1x256xf32> to vector<1x256xf32>
    %377 = vector.broadcast %374 : f32 to vector<1x256xf32>
    %378 = arith.mulf %377, %376 : vector<1x256xf32>
    %379 = arith.addf %373, %378 : vector<1x256xf32>
    %c30 = arith.constant 30 : index
    %380 = memref.load %arg1[%c30] : memref<144xf32, #tpu.memory_space<smem>>
    %381 = vector.extract_strided_slice %361 {offsets = [3, 0, 0], sizes = [1, 1, 256], strides = [1, 1, 1]} : vector<4x1x256xf32> to vector<1x1x256xf32>
    %382 = vector.shape_cast %381 : vector<1x1x256xf32> to vector<1x256xf32>
    %383 = vector.broadcast %380 : f32 to vector<1x256xf32>
    %384 = arith.mulf %383, %382 : vector<1x256xf32>
    %385 = arith.addf %379, %384 : vector<1x256xf32>
    %c39 = arith.constant 39 : index
    %386 = memref.load %arg1[%c39] : memref<144xf32, #tpu.memory_space<smem>>
    %387 = vector.extract_strided_slice %361 {offsets = [0, 0, 0], sizes = [1, 1, 256], strides = [1, 1, 1]} : vector<4x1x256xf32> to vector<1x1x256xf32>
    %388 = vector.shape_cast %387 : vector<1x1x256xf32> to vector<1x256xf32>
    %389 = vector.broadcast %386 : f32 to vector<1x256xf32>
    %390 = arith.mulf %389, %388 : vector<1x256xf32>
    %391 = arith.addf %306, %390 : vector<1x256xf32>
    %c48 = arith.constant 48 : index
    %392 = memref.load %arg1[%c48] : memref<144xf32, #tpu.memory_space<smem>>
    %393 = vector.extract_strided_slice %361 {offsets = [1, 0, 0], sizes = [1, 1, 256], strides = [1, 1, 1]} : vector<4x1x256xf32> to vector<1x1x256xf32>
    %394 = vector.shape_cast %393 : vector<1x1x256xf32> to vector<1x256xf32>
    %395 = vector.broadcast %392 : f32 to vector<1x256xf32>
    %396 = arith.mulf %395, %394 : vector<1x256xf32>
    %397 = arith.addf %391, %396 : vector<1x256xf32>
    %c57 = arith.constant 57 : index
    %398 = memref.load %arg1[%c57] : memref<144xf32, #tpu.memory_space<smem>>
    %399 = vector.extract_strided_slice %361 {offsets = [2, 0, 0], sizes = [1, 1, 256], strides = [1, 1, 1]} : vector<4x1x256xf32> to vector<1x1x256xf32>
    %400 = vector.shape_cast %399 : vector<1x1x256xf32> to vector<1x256xf32>
    %401 = vector.broadcast %398 : f32 to vector<1x256xf32>
    %402 = arith.mulf %401, %400 : vector<1x256xf32>
    %403 = arith.addf %397, %402 : vector<1x256xf32>
    %c66 = arith.constant 66 : index
    %404 = memref.load %arg1[%c66] : memref<144xf32, #tpu.memory_space<smem>>
    %405 = vector.extract_strided_slice %361 {offsets = [3, 0, 0], sizes = [1, 1, 256], strides = [1, 1, 1]} : vector<4x1x256xf32> to vector<1x1x256xf32>
    %406 = vector.shape_cast %405 : vector<1x1x256xf32> to vector<1x256xf32>
    %407 = vector.broadcast %404 : f32 to vector<1x256xf32>
    %408 = arith.mulf %407, %406 : vector<1x256xf32>
    %409 = arith.addf %403, %408 : vector<1x256xf32>
    %c75 = arith.constant 75 : index
    %410 = memref.load %arg1[%c75] : memref<144xf32, #tpu.memory_space<smem>>
    %411 = vector.extract_strided_slice %361 {offsets = [0, 0, 0], sizes = [1, 1, 256], strides = [1, 1, 1]} : vector<4x1x256xf32> to vector<1x1x256xf32>
    %412 = vector.shape_cast %411 : vector<1x1x256xf32> to vector<1x256xf32>
    %413 = vector.broadcast %410 : f32 to vector<1x256xf32>
    %414 = arith.mulf %413, %412 : vector<1x256xf32>
    %415 = arith.addf %330, %414 : vector<1x256xf32>
    %c84 = arith.constant 84 : index
    %416 = memref.load %arg1[%c84] : memref<144xf32, #tpu.memory_space<smem>>
    %417 = vector.extract_strided_slice %361 {offsets = [1, 0, 0], sizes = [1, 1, 256], strides = [1, 1, 1]} : vector<4x1x256xf32> to vector<1x1x256xf32>
    %418 = vector.shape_cast %417 : vector<1x1x256xf32> to vector<1x256xf32>
    %419 = vector.broadcast %416 : f32 to vector<1x256xf32>
    %420 = arith.mulf %419, %418 : vector<1x256xf32>
    %421 = arith.addf %415, %420 : vector<1x256xf32>
    %c93 = arith.constant 93 : index
    %422 = memref.load %arg1[%c93] : memref<144xf32, #tpu.memory_space<smem>>
    %423 = vector.extract_strided_slice %361 {offsets = [2, 0, 0], sizes = [1, 1, 256], strides = [1, 1, 1]} : vector<4x1x256xf32> to vector<1x1x256xf32>
    %424 = vector.shape_cast %423 : vector<1x1x256xf32> to vector<1x256xf32>
    %425 = vector.broadcast %422 : f32 to vector<1x256xf32>
    %426 = arith.mulf %425, %424 : vector<1x256xf32>
    %427 = arith.addf %421, %426 : vector<1x256xf32>
    %c102 = arith.constant 102 : index
    %428 = memref.load %arg1[%c102] : memref<144xf32, #tpu.memory_space<smem>>
    %429 = vector.extract_strided_slice %361 {offsets = [3, 0, 0], sizes = [1, 1, 256], strides = [1, 1, 1]} : vector<4x1x256xf32> to vector<1x1x256xf32>
    %430 = vector.shape_cast %429 : vector<1x1x256xf32> to vector<1x256xf32>
    %431 = vector.broadcast %428 : f32 to vector<1x256xf32>
    %432 = arith.mulf %431, %430 : vector<1x256xf32>
    %433 = arith.addf %427, %432 : vector<1x256xf32>
    %c111 = arith.constant 111 : index
    %434 = memref.load %arg1[%c111] : memref<144xf32, #tpu.memory_space<smem>>
    %435 = vector.extract_strided_slice %361 {offsets = [0, 0, 0], sizes = [1, 1, 256], strides = [1, 1, 1]} : vector<4x1x256xf32> to vector<1x1x256xf32>
    %436 = vector.shape_cast %435 : vector<1x1x256xf32> to vector<1x256xf32>
    %437 = vector.broadcast %434 : f32 to vector<1x256xf32>
    %438 = arith.mulf %437, %436 : vector<1x256xf32>
    %439 = arith.addf %354, %438 : vector<1x256xf32>
    %c120 = arith.constant 120 : index
    %440 = memref.load %arg1[%c120] : memref<144xf32, #tpu.memory_space<smem>>
    %441 = vector.extract_strided_slice %361 {offsets = [1, 0, 0], sizes = [1, 1, 256], strides = [1, 1, 1]} : vector<4x1x256xf32> to vector<1x1x256xf32>
    %442 = vector.shape_cast %441 : vector<1x1x256xf32> to vector<1x256xf32>
    %443 = vector.broadcast %440 : f32 to vector<1x256xf32>
    %444 = arith.mulf %443, %442 : vector<1x256xf32>
    %445 = arith.addf %439, %444 : vector<1x256xf32>
    %c129 = arith.constant 129 : index
    %446 = memref.load %arg1[%c129] : memref<144xf32, #tpu.memory_space<smem>>
    %447 = vector.extract_strided_slice %361 {offsets = [2, 0, 0], sizes = [1, 1, 256], strides = [1, 1, 1]} : vector<4x1x256xf32> to vector<1x1x256xf32>
    %448 = vector.shape_cast %447 : vector<1x1x256xf32> to vector<1x256xf32>
    %449 = vector.broadcast %446 : f32 to vector<1x256xf32>
    %450 = arith.mulf %449, %448 : vector<1x256xf32>
    %451 = arith.addf %445, %450 : vector<1x256xf32>
    %c138 = arith.constant 138 : index
    %452 = memref.load %arg1[%c138] : memref<144xf32, #tpu.memory_space<smem>>
    %453 = vector.extract_strided_slice %361 {offsets = [3, 0, 0], sizes = [1, 1, 256], strides = [1, 1, 1]} : vector<4x1x256xf32> to vector<1x1x256xf32>
    %454 = vector.shape_cast %453 : vector<1x1x256xf32> to vector<1x256xf32>
    %455 = vector.broadcast %452 : f32 to vector<1x256xf32>
    %456 = arith.mulf %455, %454 : vector<1x256xf32>
    %457 = arith.addf %451, %456 : vector<1x256xf32>
    %c4 = arith.constant 4 : index
    %458 = memref.load %arg1[%c4] : memref<144xf32, #tpu.memory_space<smem>>
    %459 = vector.extract_strided_slice %33 {offsets = [0, 0, 0], sizes = [1, 1, 256], strides = [1, 1, 1]} : vector<4x1x256xf32> to vector<1x1x256xf32>
    %460 = vector.shape_cast %459 : vector<1x1x256xf32> to vector<1x256xf32>
    %461 = vector.broadcast %458 : f32 to vector<1x256xf32>
    %462 = arith.mulf %461, %460 : vector<1x256xf32>
    %463 = arith.addf %385, %462 : vector<1x256xf32>
    %c13 = arith.constant 13 : index
    %464 = memref.load %arg1[%c13] : memref<144xf32, #tpu.memory_space<smem>>
    %465 = vector.extract_strided_slice %33 {offsets = [1, 0, 0], sizes = [1, 1, 256], strides = [1, 1, 1]} : vector<4x1x256xf32> to vector<1x1x256xf32>
    %466 = vector.shape_cast %465 : vector<1x1x256xf32> to vector<1x256xf32>
    %467 = vector.broadcast %464 : f32 to vector<1x256xf32>
    %468 = arith.mulf %467, %466 : vector<1x256xf32>
    %469 = arith.addf %463, %468 : vector<1x256xf32>
    %c22 = arith.constant 22 : index
    %470 = memref.load %arg1[%c22] : memref<144xf32, #tpu.memory_space<smem>>
    %471 = vector.extract_strided_slice %33 {offsets = [2, 0, 0], sizes = [1, 1, 256], strides = [1, 1, 1]} : vector<4x1x256xf32> to vector<1x1x256xf32>
    %472 = vector.shape_cast %471 : vector<1x1x256xf32> to vector<1x256xf32>
    %473 = vector.broadcast %470 : f32 to vector<1x256xf32>
    %474 = arith.mulf %473, %472 : vector<1x256xf32>
    %475 = arith.addf %469, %474 : vector<1x256xf32>
    %c31 = arith.constant 31 : index
    %476 = memref.load %arg1[%c31] : memref<144xf32, #tpu.memory_space<smem>>
    %477 = vector.extract_strided_slice %33 {offsets = [3, 0, 0], sizes = [1, 1, 256], strides = [1, 1, 1]} : vector<4x1x256xf32> to vector<1x1x256xf32>
    %478 = vector.shape_cast %477 : vector<1x1x256xf32> to vector<1x256xf32>
    %479 = vector.broadcast %476 : f32 to vector<1x256xf32>
    %480 = arith.mulf %479, %478 : vector<1x256xf32>
    %481 = arith.addf %475, %480 : vector<1x256xf32>
    %c40 = arith.constant 40 : index
    %482 = memref.load %arg1[%c40] : memref<144xf32, #tpu.memory_space<smem>>
    %483 = vector.extract_strided_slice %33 {offsets = [0, 0, 0], sizes = [1, 1, 256], strides = [1, 1, 1]} : vector<4x1x256xf32> to vector<1x1x256xf32>
    %484 = vector.shape_cast %483 : vector<1x1x256xf32> to vector<1x256xf32>
    %485 = vector.broadcast %482 : f32 to vector<1x256xf32>
    %486 = arith.mulf %485, %484 : vector<1x256xf32>
    %487 = arith.addf %409, %486 : vector<1x256xf32>
    %c49 = arith.constant 49 : index
    %488 = memref.load %arg1[%c49] : memref<144xf32, #tpu.memory_space<smem>>
    %489 = vector.extract_strided_slice %33 {offsets = [1, 0, 0], sizes = [1, 1, 256], strides = [1, 1, 1]} : vector<4x1x256xf32> to vector<1x1x256xf32>
    %490 = vector.shape_cast %489 : vector<1x1x256xf32> to vector<1x256xf32>
    %491 = vector.broadcast %488 : f32 to vector<1x256xf32>
    %492 = arith.mulf %491, %490 : vector<1x256xf32>
    %493 = arith.addf %487, %492 : vector<1x256xf32>
    %c58 = arith.constant 58 : index
    %494 = memref.load %arg1[%c58] : memref<144xf32, #tpu.memory_space<smem>>
    %495 = vector.extract_strided_slice %33 {offsets = [2, 0, 0], sizes = [1, 1, 256], strides = [1, 1, 1]} : vector<4x1x256xf32> to vector<1x1x256xf32>
    %496 = vector.shape_cast %495 : vector<1x1x256xf32> to vector<1x256xf32>
    %497 = vector.broadcast %494 : f32 to vector<1x256xf32>
    %498 = arith.mulf %497, %496 : vector<1x256xf32>
    %499 = arith.addf %493, %498 : vector<1x256xf32>
    %c67 = arith.constant 67 : index
    %500 = memref.load %arg1[%c67] : memref<144xf32, #tpu.memory_space<smem>>
    %501 = vector.extract_strided_slice %33 {offsets = [3, 0, 0], sizes = [1, 1, 256], strides = [1, 1, 1]} : vector<4x1x256xf32> to vector<1x1x256xf32>
    %502 = vector.shape_cast %501 : vector<1x1x256xf32> to vector<1x256xf32>
    %503 = vector.broadcast %500 : f32 to vector<1x256xf32>
    %504 = arith.mulf %503, %502 : vector<1x256xf32>
    %505 = arith.addf %499, %504 : vector<1x256xf32>
    %c76 = arith.constant 76 : index
    %506 = memref.load %arg1[%c76] : memref<144xf32, #tpu.memory_space<smem>>
    %507 = vector.extract_strided_slice %33 {offsets = [0, 0, 0], sizes = [1, 1, 256], strides = [1, 1, 1]} : vector<4x1x256xf32> to vector<1x1x256xf32>
    %508 = vector.shape_cast %507 : vector<1x1x256xf32> to vector<1x256xf32>
    %509 = vector.broadcast %506 : f32 to vector<1x256xf32>
    %510 = arith.mulf %509, %508 : vector<1x256xf32>
    %511 = arith.addf %433, %510 : vector<1x256xf32>
    %c85 = arith.constant 85 : index
    %512 = memref.load %arg1[%c85] : memref<144xf32, #tpu.memory_space<smem>>
    %513 = vector.extract_strided_slice %33 {offsets = [1, 0, 0], sizes = [1, 1, 256], strides = [1, 1, 1]} : vector<4x1x256xf32> to vector<1x1x256xf32>
    %514 = vector.shape_cast %513 : vector<1x1x256xf32> to vector<1x256xf32>
    %515 = vector.broadcast %512 : f32 to vector<1x256xf32>
    %516 = arith.mulf %515, %514 : vector<1x256xf32>
    %517 = arith.addf %511, %516 : vector<1x256xf32>
    %c94 = arith.constant 94 : index
    %518 = memref.load %arg1[%c94] : memref<144xf32, #tpu.memory_space<smem>>
    %519 = vector.extract_strided_slice %33 {offsets = [2, 0, 0], sizes = [1, 1, 256], strides = [1, 1, 1]} : vector<4x1x256xf32> to vector<1x1x256xf32>
    %520 = vector.shape_cast %519 : vector<1x1x256xf32> to vector<1x256xf32>
    %521 = vector.broadcast %518 : f32 to vector<1x256xf32>
    %522 = arith.mulf %521, %520 : vector<1x256xf32>
    %523 = arith.addf %517, %522 : vector<1x256xf32>
    %c103 = arith.constant 103 : index
    %524 = memref.load %arg1[%c103] : memref<144xf32, #tpu.memory_space<smem>>
    %525 = vector.extract_strided_slice %33 {offsets = [3, 0, 0], sizes = [1, 1, 256], strides = [1, 1, 1]} : vector<4x1x256xf32> to vector<1x1x256xf32>
    %526 = vector.shape_cast %525 : vector<1x1x256xf32> to vector<1x256xf32>
    %527 = vector.broadcast %524 : f32 to vector<1x256xf32>
    %528 = arith.mulf %527, %526 : vector<1x256xf32>
    %529 = arith.addf %523, %528 : vector<1x256xf32>
    %c112 = arith.constant 112 : index
    %530 = memref.load %arg1[%c112] : memref<144xf32, #tpu.memory_space<smem>>
    %531 = vector.extract_strided_slice %33 {offsets = [0, 0, 0], sizes = [1, 1, 256], strides = [1, 1, 1]} : vector<4x1x256xf32> to vector<1x1x256xf32>
    %532 = vector.shape_cast %531 : vector<1x1x256xf32> to vector<1x256xf32>
    %533 = vector.broadcast %530 : f32 to vector<1x256xf32>
    %534 = arith.mulf %533, %532 : vector<1x256xf32>
    %535 = arith.addf %457, %534 : vector<1x256xf32>
    %c121 = arith.constant 121 : index
    %536 = memref.load %arg1[%c121] : memref<144xf32, #tpu.memory_space<smem>>
    %537 = vector.extract_strided_slice %33 {offsets = [1, 0, 0], sizes = [1, 1, 256], strides = [1, 1, 1]} : vector<4x1x256xf32> to vector<1x1x256xf32>
    %538 = vector.shape_cast %537 : vector<1x1x256xf32> to vector<1x256xf32>
    %539 = vector.broadcast %536 : f32 to vector<1x256xf32>
    %540 = arith.mulf %539, %538 : vector<1x256xf32>
    %541 = arith.addf %535, %540 : vector<1x256xf32>
    %c130 = arith.constant 130 : index
    %542 = memref.load %arg1[%c130] : memref<144xf32, #tpu.memory_space<smem>>
    %543 = vector.extract_strided_slice %33 {offsets = [2, 0, 0], sizes = [1, 1, 256], strides = [1, 1, 1]} : vector<4x1x256xf32> to vector<1x1x256xf32>
    %544 = vector.shape_cast %543 : vector<1x1x256xf32> to vector<1x256xf32>
    %545 = vector.broadcast %542 : f32 to vector<1x256xf32>
    %546 = arith.mulf %545, %544 : vector<1x256xf32>
    %547 = arith.addf %541, %546 : vector<1x256xf32>
    %c139 = arith.constant 139 : index
    %548 = memref.load %arg1[%c139] : memref<144xf32, #tpu.memory_space<smem>>
    %549 = vector.extract_strided_slice %33 {offsets = [3, 0, 0], sizes = [1, 1, 256], strides = [1, 1, 1]} : vector<4x1x256xf32> to vector<1x1x256xf32>
    %550 = vector.shape_cast %549 : vector<1x1x256xf32> to vector<1x256xf32>
    %551 = vector.broadcast %548 : f32 to vector<1x256xf32>
    %552 = arith.mulf %551, %550 : vector<1x256xf32>
    %553 = arith.addf %547, %552 : vector<1x256xf32>
    %cst_30 = arith.constant 0.000000e+00 : f32
    %554 = vector.broadcast %cst_30 : f32 to vector<4x1x1xf32>
    %555 = vector.extract_strided_slice %33 {offsets = [0, 0, 1], sizes = [4, 1, 255], strides = [1, 1, 1]} : vector<4x1x256xf32> to vector<4x1x255xf32>
    %556 = tpu.concatenate %555, %554 in 2 : vector<4x1x255xf32>, vector<4x1x1xf32> -> vector<4x1x256xf32>
    %cst_31 = arith.constant 0.000000e+00 : f32
    %557 = vector.shape_cast %20 : vector<1x256xi1> to vector<1x1x256xi1>
    %558 = vector.broadcast %557 : vector<1x1x256xi1> to vector<4x1x256xi1>
    %559 = vector.broadcast %cst_31 : f32 to vector<4x1x256xf32>
    %560 = arith.select %558, %556, %559 : vector<4x1x256xi1>, vector<4x1x256xf32>
    %c5 = arith.constant 5 : index
    %561 = memref.load %arg1[%c5] : memref<144xf32, #tpu.memory_space<smem>>
    %562 = vector.extract_strided_slice %560 {offsets = [0, 0, 0], sizes = [1, 1, 256], strides = [1, 1, 1]} : vector<4x1x256xf32> to vector<1x1x256xf32>
    %563 = vector.shape_cast %562 : vector<1x1x256xf32> to vector<1x256xf32>
    %564 = vector.broadcast %561 : f32 to vector<1x256xf32>
    %565 = arith.mulf %564, %563 : vector<1x256xf32>
    %566 = arith.addf %481, %565 : vector<1x256xf32>
    %c14 = arith.constant 14 : index
    %567 = memref.load %arg1[%c14] : memref<144xf32, #tpu.memory_space<smem>>
    %568 = vector.extract_strided_slice %560 {offsets = [1, 0, 0], sizes = [1, 1, 256], strides = [1, 1, 1]} : vector<4x1x256xf32> to vector<1x1x256xf32>
    %569 = vector.shape_cast %568 : vector<1x1x256xf32> to vector<1x256xf32>
    %570 = vector.broadcast %567 : f32 to vector<1x256xf32>
    %571 = arith.mulf %570, %569 : vector<1x256xf32>
    %572 = arith.addf %566, %571 : vector<1x256xf32>
    %c23 = arith.constant 23 : index
    %573 = memref.load %arg1[%c23] : memref<144xf32, #tpu.memory_space<smem>>
    %574 = vector.extract_strided_slice %560 {offsets = [2, 0, 0], sizes = [1, 1, 256], strides = [1, 1, 1]} : vector<4x1x256xf32> to vector<1x1x256xf32>
    %575 = vector.shape_cast %574 : vector<1x1x256xf32> to vector<1x256xf32>
    %576 = vector.broadcast %573 : f32 to vector<1x256xf32>
    %577 = arith.mulf %576, %575 : vector<1x256xf32>
    %578 = arith.addf %572, %577 : vector<1x256xf32>
    %c32 = arith.constant 32 : index
    %579 = memref.load %arg1[%c32] : memref<144xf32, #tpu.memory_space<smem>>
    %580 = vector.extract_strided_slice %560 {offsets = [3, 0, 0], sizes = [1, 1, 256], strides = [1, 1, 1]} : vector<4x1x256xf32> to vector<1x1x256xf32>
    %581 = vector.shape_cast %580 : vector<1x1x256xf32> to vector<1x256xf32>
    %582 = vector.broadcast %579 : f32 to vector<1x256xf32>
    %583 = arith.mulf %582, %581 : vector<1x256xf32>
    %584 = arith.addf %578, %583 : vector<1x256xf32>
    %c41 = arith.constant 41 : index
    %585 = memref.load %arg1[%c41] : memref<144xf32, #tpu.memory_space<smem>>
    %586 = vector.extract_strided_slice %560 {offsets = [0, 0, 0], sizes = [1, 1, 256], strides = [1, 1, 1]} : vector<4x1x256xf32> to vector<1x1x256xf32>
    %587 = vector.shape_cast %586 : vector<1x1x256xf32> to vector<1x256xf32>
    %588 = vector.broadcast %585 : f32 to vector<1x256xf32>
    %589 = arith.mulf %588, %587 : vector<1x256xf32>
    %590 = arith.addf %505, %589 : vector<1x256xf32>
    %c50 = arith.constant 50 : index
    %591 = memref.load %arg1[%c50] : memref<144xf32, #tpu.memory_space<smem>>
    %592 = vector.extract_strided_slice %560 {offsets = [1, 0, 0], sizes = [1, 1, 256], strides = [1, 1, 1]} : vector<4x1x256xf32> to vector<1x1x256xf32>
    %593 = vector.shape_cast %592 : vector<1x1x256xf32> to vector<1x256xf32>
    %594 = vector.broadcast %591 : f32 to vector<1x256xf32>
    %595 = arith.mulf %594, %593 : vector<1x256xf32>
    %596 = arith.addf %590, %595 : vector<1x256xf32>
    %c59 = arith.constant 59 : index
    %597 = memref.load %arg1[%c59] : memref<144xf32, #tpu.memory_space<smem>>
    %598 = vector.extract_strided_slice %560 {offsets = [2, 0, 0], sizes = [1, 1, 256], strides = [1, 1, 1]} : vector<4x1x256xf32> to vector<1x1x256xf32>
    %599 = vector.shape_cast %598 : vector<1x1x256xf32> to vector<1x256xf32>
    %600 = vector.broadcast %597 : f32 to vector<1x256xf32>
    %601 = arith.mulf %600, %599 : vector<1x256xf32>
    %602 = arith.addf %596, %601 : vector<1x256xf32>
    %c68 = arith.constant 68 : index
    %603 = memref.load %arg1[%c68] : memref<144xf32, #tpu.memory_space<smem>>
    %604 = vector.extract_strided_slice %560 {offsets = [3, 0, 0], sizes = [1, 1, 256], strides = [1, 1, 1]} : vector<4x1x256xf32> to vector<1x1x256xf32>
    %605 = vector.shape_cast %604 : vector<1x1x256xf32> to vector<1x256xf32>
    %606 = vector.broadcast %603 : f32 to vector<1x256xf32>
    %607 = arith.mulf %606, %605 : vector<1x256xf32>
    %608 = arith.addf %602, %607 : vector<1x256xf32>
    %c77 = arith.constant 77 : index
    %609 = memref.load %arg1[%c77] : memref<144xf32, #tpu.memory_space<smem>>
    %610 = vector.extract_strided_slice %560 {offsets = [0, 0, 0], sizes = [1, 1, 256], strides = [1, 1, 1]} : vector<4x1x256xf32> to vector<1x1x256xf32>
    %611 = vector.shape_cast %610 : vector<1x1x256xf32> to vector<1x256xf32>
    %612 = vector.broadcast %609 : f32 to vector<1x256xf32>
    %613 = arith.mulf %612, %611 : vector<1x256xf32>
    %614 = arith.addf %529, %613 : vector<1x256xf32>
    %c86 = arith.constant 86 : index
    %615 = memref.load %arg1[%c86] : memref<144xf32, #tpu.memory_space<smem>>
    %616 = vector.extract_strided_slice %560 {offsets = [1, 0, 0], sizes = [1, 1, 256], strides = [1, 1, 1]} : vector<4x1x256xf32> to vector<1x1x256xf32>
    %617 = vector.shape_cast %616 : vector<1x1x256xf32> to vector<1x256xf32>
    %618 = vector.broadcast %615 : f32 to vector<1x256xf32>
    %619 = arith.mulf %618, %617 : vector<1x256xf32>
    %620 = arith.addf %614, %619 : vector<1x256xf32>
    %c95 = arith.constant 95 : index
    %621 = memref.load %arg1[%c95] : memref<144xf32, #tpu.memory_space<smem>>
    %622 = vector.extract_strided_slice %560 {offsets = [2, 0, 0], sizes = [1, 1, 256], strides = [1, 1, 1]} : vector<4x1x256xf32> to vector<1x1x256xf32>
    %623 = vector.shape_cast %622 : vector<1x1x256xf32> to vector<1x256xf32>
    %624 = vector.broadcast %621 : f32 to vector<1x256xf32>
    %625 = arith.mulf %624, %623 : vector<1x256xf32>
    %626 = arith.addf %620, %625 : vector<1x256xf32>
    %c104 = arith.constant 104 : index
    %627 = memref.load %arg1[%c104] : memref<144xf32, #tpu.memory_space<smem>>
    %628 = vector.extract_strided_slice %560 {offsets = [3, 0, 0], sizes = [1, 1, 256], strides = [1, 1, 1]} : vector<4x1x256xf32> to vector<1x1x256xf32>
    %629 = vector.shape_cast %628 : vector<1x1x256xf32> to vector<1x256xf32>
    %630 = vector.broadcast %627 : f32 to vector<1x256xf32>
    %631 = arith.mulf %630, %629 : vector<1x256xf32>
    %632 = arith.addf %626, %631 : vector<1x256xf32>
    %c113 = arith.constant 113 : index
    %633 = memref.load %arg1[%c113] : memref<144xf32, #tpu.memory_space<smem>>
    %634 = vector.extract_strided_slice %560 {offsets = [0, 0, 0], sizes = [1, 1, 256], strides = [1, 1, 1]} : vector<4x1x256xf32> to vector<1x1x256xf32>
    %635 = vector.shape_cast %634 : vector<1x1x256xf32> to vector<1x256xf32>
    %636 = vector.broadcast %633 : f32 to vector<1x256xf32>
    %637 = arith.mulf %636, %635 : vector<1x256xf32>
    %638 = arith.addf %553, %637 : vector<1x256xf32>
    %c122 = arith.constant 122 : index
    %639 = memref.load %arg1[%c122] : memref<144xf32, #tpu.memory_space<smem>>
    %640 = vector.extract_strided_slice %560 {offsets = [1, 0, 0], sizes = [1, 1, 256], strides = [1, 1, 1]} : vector<4x1x256xf32> to vector<1x1x256xf32>
    %641 = vector.shape_cast %640 : vector<1x1x256xf32> to vector<1x256xf32>
    %642 = vector.broadcast %639 : f32 to vector<1x256xf32>
    %643 = arith.mulf %642, %641 : vector<1x256xf32>
    %644 = arith.addf %638, %643 : vector<1x256xf32>
    %c131 = arith.constant 131 : index
    %645 = memref.load %arg1[%c131] : memref<144xf32, #tpu.memory_space<smem>>
    %646 = vector.extract_strided_slice %560 {offsets = [2, 0, 0], sizes = [1, 1, 256], strides = [1, 1, 1]} : vector<4x1x256xf32> to vector<1x1x256xf32>
    %647 = vector.shape_cast %646 : vector<1x1x256xf32> to vector<1x256xf32>
    %648 = vector.broadcast %645 : f32 to vector<1x256xf32>
    %649 = arith.mulf %648, %647 : vector<1x256xf32>
    %650 = arith.addf %644, %649 : vector<1x256xf32>
    %c140 = arith.constant 140 : index
    %651 = memref.load %arg1[%c140] : memref<144xf32, #tpu.memory_space<smem>>
    %652 = vector.extract_strided_slice %560 {offsets = [3, 0, 0], sizes = [1, 1, 256], strides = [1, 1, 1]} : vector<4x1x256xf32> to vector<1x1x256xf32>
    %653 = vector.shape_cast %652 : vector<1x1x256xf32> to vector<1x256xf32>
    %654 = vector.broadcast %651 : f32 to vector<1x256xf32>
    %655 = arith.mulf %654, %653 : vector<1x256xf32>
    %656 = arith.addf %650, %655 : vector<1x256xf32>
    %cst_32 = arith.constant 0.000000e+00 : f32
    %657 = vector.broadcast %cst_32 : f32 to vector<4x1x15xf32>
    %658 = vector.extract_strided_slice %33 {offsets = [0, 0, 15], sizes = [4, 1, 241], strides = [1, 1, 1]} : vector<4x1x256xf32> to vector<4x1x241xf32>
    %659 = tpu.concatenate %658, %657 in 2 : vector<4x1x241xf32>, vector<4x1x15xf32> -> vector<4x1x256xf32>
    %cst_33 = arith.constant 0.000000e+00 : f32
    %660 = vector.shape_cast %18 : vector<1x256xi1> to vector<1x1x256xi1>
    %661 = vector.broadcast %660 : vector<1x1x256xi1> to vector<4x1x256xi1>
    %662 = vector.broadcast %cst_33 : f32 to vector<4x1x256xf32>
    %663 = arith.select %661, %659, %662 : vector<4x1x256xi1>, vector<4x1x256xf32>
    %c6 = arith.constant 6 : index
    %664 = memref.load %arg1[%c6] : memref<144xf32, #tpu.memory_space<smem>>
    %665 = vector.extract_strided_slice %663 {offsets = [0, 0, 0], sizes = [1, 1, 256], strides = [1, 1, 1]} : vector<4x1x256xf32> to vector<1x1x256xf32>
    %666 = vector.shape_cast %665 : vector<1x1x256xf32> to vector<1x256xf32>
    %667 = vector.broadcast %664 : f32 to vector<1x256xf32>
    %668 = arith.mulf %667, %666 : vector<1x256xf32>
    %669 = arith.addf %584, %668 : vector<1x256xf32>
    %c15 = arith.constant 15 : index
    %670 = memref.load %arg1[%c15] : memref<144xf32, #tpu.memory_space<smem>>
    %671 = vector.extract_strided_slice %663 {offsets = [1, 0, 0], sizes = [1, 1, 256], strides = [1, 1, 1]} : vector<4x1x256xf32> to vector<1x1x256xf32>
    %672 = vector.shape_cast %671 : vector<1x1x256xf32> to vector<1x256xf32>
    %673 = vector.broadcast %670 : f32 to vector<1x256xf32>
    %674 = arith.mulf %673, %672 : vector<1x256xf32>
    %675 = arith.addf %669, %674 : vector<1x256xf32>
    %c24 = arith.constant 24 : index
    %676 = memref.load %arg1[%c24] : memref<144xf32, #tpu.memory_space<smem>>
    %677 = vector.extract_strided_slice %663 {offsets = [2, 0, 0], sizes = [1, 1, 256], strides = [1, 1, 1]} : vector<4x1x256xf32> to vector<1x1x256xf32>
    %678 = vector.shape_cast %677 : vector<1x1x256xf32> to vector<1x256xf32>
    %679 = vector.broadcast %676 : f32 to vector<1x256xf32>
    %680 = arith.mulf %679, %678 : vector<1x256xf32>
    %681 = arith.addf %675, %680 : vector<1x256xf32>
    %c33 = arith.constant 33 : index
    %682 = memref.load %arg1[%c33] : memref<144xf32, #tpu.memory_space<smem>>
    %683 = vector.extract_strided_slice %663 {offsets = [3, 0, 0], sizes = [1, 1, 256], strides = [1, 1, 1]} : vector<4x1x256xf32> to vector<1x1x256xf32>
    %684 = vector.shape_cast %683 : vector<1x1x256xf32> to vector<1x256xf32>
    %685 = vector.broadcast %682 : f32 to vector<1x256xf32>
    %686 = arith.mulf %685, %684 : vector<1x256xf32>
    %687 = arith.addf %681, %686 : vector<1x256xf32>
    %c42 = arith.constant 42 : index
    %688 = memref.load %arg1[%c42] : memref<144xf32, #tpu.memory_space<smem>>
    %689 = vector.extract_strided_slice %663 {offsets = [0, 0, 0], sizes = [1, 1, 256], strides = [1, 1, 1]} : vector<4x1x256xf32> to vector<1x1x256xf32>
    %690 = vector.shape_cast %689 : vector<1x1x256xf32> to vector<1x256xf32>
    %691 = vector.broadcast %688 : f32 to vector<1x256xf32>
    %692 = arith.mulf %691, %690 : vector<1x256xf32>
    %693 = arith.addf %608, %692 : vector<1x256xf32>
    %c51 = arith.constant 51 : index
    %694 = memref.load %arg1[%c51] : memref<144xf32, #tpu.memory_space<smem>>
    %695 = vector.extract_strided_slice %663 {offsets = [1, 0, 0], sizes = [1, 1, 256], strides = [1, 1, 1]} : vector<4x1x256xf32> to vector<1x1x256xf32>
    %696 = vector.shape_cast %695 : vector<1x1x256xf32> to vector<1x256xf32>
    %697 = vector.broadcast %694 : f32 to vector<1x256xf32>
    %698 = arith.mulf %697, %696 : vector<1x256xf32>
    %699 = arith.addf %693, %698 : vector<1x256xf32>
    %c60 = arith.constant 60 : index
    %700 = memref.load %arg1[%c60] : memref<144xf32, #tpu.memory_space<smem>>
    %701 = vector.extract_strided_slice %663 {offsets = [2, 0, 0], sizes = [1, 1, 256], strides = [1, 1, 1]} : vector<4x1x256xf32> to vector<1x1x256xf32>
    %702 = vector.shape_cast %701 : vector<1x1x256xf32> to vector<1x256xf32>
    %703 = vector.broadcast %700 : f32 to vector<1x256xf32>
    %704 = arith.mulf %703, %702 : vector<1x256xf32>
    %705 = arith.addf %699, %704 : vector<1x256xf32>
    %c69 = arith.constant 69 : index
    %706 = memref.load %arg1[%c69] : memref<144xf32, #tpu.memory_space<smem>>
    %707 = vector.extract_strided_slice %663 {offsets = [3, 0, 0], sizes = [1, 1, 256], strides = [1, 1, 1]} : vector<4x1x256xf32> to vector<1x1x256xf32>
    %708 = vector.shape_cast %707 : vector<1x1x256xf32> to vector<1x256xf32>
    %709 = vector.broadcast %706 : f32 to vector<1x256xf32>
    %710 = arith.mulf %709, %708 : vector<1x256xf32>
    %711 = arith.addf %705, %710 : vector<1x256xf32>
    %c78 = arith.constant 78 : index
    %712 = memref.load %arg1[%c78] : memref<144xf32, #tpu.memory_space<smem>>
    %713 = vector.extract_strided_slice %663 {offsets = [0, 0, 0], sizes = [1, 1, 256], strides = [1, 1, 1]} : vector<4x1x256xf32> to vector<1x1x256xf32>
    %714 = vector.shape_cast %713 : vector<1x1x256xf32> to vector<1x256xf32>
    %715 = vector.broadcast %712 : f32 to vector<1x256xf32>
    %716 = arith.mulf %715, %714 : vector<1x256xf32>
    %717 = arith.addf %632, %716 : vector<1x256xf32>
    %c87 = arith.constant 87 : index
    %718 = memref.load %arg1[%c87] : memref<144xf32, #tpu.memory_space<smem>>
    %719 = vector.extract_strided_slice %663 {offsets = [1, 0, 0], sizes = [1, 1, 256], strides = [1, 1, 1]} : vector<4x1x256xf32> to vector<1x1x256xf32>
    %720 = vector.shape_cast %719 : vector<1x1x256xf32> to vector<1x256xf32>
    %721 = vector.broadcast %718 : f32 to vector<1x256xf32>
    %722 = arith.mulf %721, %720 : vector<1x256xf32>
    %723 = arith.addf %717, %722 : vector<1x256xf32>
    %c96 = arith.constant 96 : index
    %724 = memref.load %arg1[%c96] : memref<144xf32, #tpu.memory_space<smem>>
    %725 = vector.extract_strided_slice %663 {offsets = [2, 0, 0], sizes = [1, 1, 256], strides = [1, 1, 1]} : vector<4x1x256xf32> to vector<1x1x256xf32>
    %726 = vector.shape_cast %725 : vector<1x1x256xf32> to vector<1x256xf32>
    %727 = vector.broadcast %724 : f32 to vector<1x256xf32>
    %728 = arith.mulf %727, %726 : vector<1x256xf32>
    %729 = arith.addf %723, %728 : vector<1x256xf32>
    %c105 = arith.constant 105 : index
    %730 = memref.load %arg1[%c105] : memref<144xf32, #tpu.memory_space<smem>>
    %731 = vector.extract_strided_slice %663 {offsets = [3, 0, 0], sizes = [1, 1, 256], strides = [1, 1, 1]} : vector<4x1x256xf32> to vector<1x1x256xf32>
    %732 = vector.shape_cast %731 : vector<1x1x256xf32> to vector<1x256xf32>
    %733 = vector.broadcast %730 : f32 to vector<1x256xf32>
    %734 = arith.mulf %733, %732 : vector<1x256xf32>
    %735 = arith.addf %729, %734 : vector<1x256xf32>
    %c114 = arith.constant 114 : index
    %736 = memref.load %arg1[%c114] : memref<144xf32, #tpu.memory_space<smem>>
    %737 = vector.extract_strided_slice %663 {offsets = [0, 0, 0], sizes = [1, 1, 256], strides = [1, 1, 1]} : vector<4x1x256xf32> to vector<1x1x256xf32>
    %738 = vector.shape_cast %737 : vector<1x1x256xf32> to vector<1x256xf32>
    %739 = vector.broadcast %736 : f32 to vector<1x256xf32>
    %740 = arith.mulf %739, %738 : vector<1x256xf32>
    %741 = arith.addf %656, %740 : vector<1x256xf32>
    %c123 = arith.constant 123 : index
    %742 = memref.load %arg1[%c123] : memref<144xf32, #tpu.memory_space<smem>>
    %743 = vector.extract_strided_slice %663 {offsets = [1, 0, 0], sizes = [1, 1, 256], strides = [1, 1, 1]} : vector<4x1x256xf32> to vector<1x1x256xf32>
    %744 = vector.shape_cast %743 : vector<1x1x256xf32> to vector<1x256xf32>
    %745 = vector.broadcast %742 : f32 to vector<1x256xf32>
    %746 = arith.mulf %745, %744 : vector<1x256xf32>
    %747 = arith.addf %741, %746 : vector<1x256xf32>
    %c132 = arith.constant 132 : index
    %748 = memref.load %arg1[%c132] : memref<144xf32, #tpu.memory_space<smem>>
    %749 = vector.extract_strided_slice %663 {offsets = [2, 0, 0], sizes = [1, 1, 256], strides = [1, 1, 1]} : vector<4x1x256xf32> to vector<1x1x256xf32>
    %750 = vector.shape_cast %749 : vector<1x1x256xf32> to vector<1x256xf32>
    %751 = vector.broadcast %748 : f32 to vector<1x256xf32>
    %752 = arith.mulf %751, %750 : vector<1x256xf32>
    %753 = arith.addf %747, %752 : vector<1x256xf32>
    %c141 = arith.constant 141 : index
    %754 = memref.load %arg1[%c141] : memref<144xf32, #tpu.memory_space<smem>>
    %755 = vector.extract_strided_slice %663 {offsets = [3, 0, 0], sizes = [1, 1, 256], strides = [1, 1, 1]} : vector<4x1x256xf32> to vector<1x1x256xf32>
    %756 = vector.shape_cast %755 : vector<1x1x256xf32> to vector<1x256xf32>
    %757 = vector.broadcast %754 : f32 to vector<1x256xf32>
    %758 = arith.mulf %757, %756 : vector<1x256xf32>
    %759 = arith.addf %753, %758 : vector<1x256xf32>
    %cst_34 = arith.constant 0.000000e+00 : f32
    %760 = vector.broadcast %cst_34 : f32 to vector<4x1x16xf32>
    %761 = vector.extract_strided_slice %33 {offsets = [0, 0, 16], sizes = [4, 1, 240], strides = [1, 1, 1]} : vector<4x1x256xf32> to vector<4x1x240xf32>
    %762 = tpu.concatenate %761, %760 in 2 : vector<4x1x240xf32>, vector<4x1x16xf32> -> vector<4x1x256xf32>
    %c7 = arith.constant 7 : index
    %763 = memref.load %arg1[%c7] : memref<144xf32, #tpu.memory_space<smem>>
    %764 = vector.extract_strided_slice %762 {offsets = [0, 0, 0], sizes = [1, 1, 256], strides = [1, 1, 1]} : vector<4x1x256xf32> to vector<1x1x256xf32>
    %765 = vector.shape_cast %764 : vector<1x1x256xf32> to vector<1x256xf32>
    %766 = vector.broadcast %763 : f32 to vector<1x256xf32>
    %767 = arith.mulf %766, %765 : vector<1x256xf32>
    %768 = arith.addf %687, %767 : vector<1x256xf32>
    %c16 = arith.constant 16 : index
    %769 = memref.load %arg1[%c16] : memref<144xf32, #tpu.memory_space<smem>>
    %770 = vector.extract_strided_slice %762 {offsets = [1, 0, 0], sizes = [1, 1, 256], strides = [1, 1, 1]} : vector<4x1x256xf32> to vector<1x1x256xf32>
    %771 = vector.shape_cast %770 : vector<1x1x256xf32> to vector<1x256xf32>
    %772 = vector.broadcast %769 : f32 to vector<1x256xf32>
    %773 = arith.mulf %772, %771 : vector<1x256xf32>
    %774 = arith.addf %768, %773 : vector<1x256xf32>
    %c25 = arith.constant 25 : index
    %775 = memref.load %arg1[%c25] : memref<144xf32, #tpu.memory_space<smem>>
    %776 = vector.extract_strided_slice %762 {offsets = [2, 0, 0], sizes = [1, 1, 256], strides = [1, 1, 1]} : vector<4x1x256xf32> to vector<1x1x256xf32>
    %777 = vector.shape_cast %776 : vector<1x1x256xf32> to vector<1x256xf32>
    %778 = vector.broadcast %775 : f32 to vector<1x256xf32>
    %779 = arith.mulf %778, %777 : vector<1x256xf32>
    %780 = arith.addf %774, %779 : vector<1x256xf32>
    %c34 = arith.constant 34 : index
    %781 = memref.load %arg1[%c34] : memref<144xf32, #tpu.memory_space<smem>>
    %782 = vector.extract_strided_slice %762 {offsets = [3, 0, 0], sizes = [1, 1, 256], strides = [1, 1, 1]} : vector<4x1x256xf32> to vector<1x1x256xf32>
    %783 = vector.shape_cast %782 : vector<1x1x256xf32> to vector<1x256xf32>
    %784 = vector.broadcast %781 : f32 to vector<1x256xf32>
    %785 = arith.mulf %784, %783 : vector<1x256xf32>
    %786 = arith.addf %780, %785 : vector<1x256xf32>
    %c43 = arith.constant 43 : index
    %787 = memref.load %arg1[%c43] : memref<144xf32, #tpu.memory_space<smem>>
    %788 = vector.extract_strided_slice %762 {offsets = [0, 0, 0], sizes = [1, 1, 256], strides = [1, 1, 1]} : vector<4x1x256xf32> to vector<1x1x256xf32>
    %789 = vector.shape_cast %788 : vector<1x1x256xf32> to vector<1x256xf32>
    %790 = vector.broadcast %787 : f32 to vector<1x256xf32>
    %791 = arith.mulf %790, %789 : vector<1x256xf32>
    %792 = arith.addf %711, %791 : vector<1x256xf32>
    %c52 = arith.constant 52 : index
    %793 = memref.load %arg1[%c52] : memref<144xf32, #tpu.memory_space<smem>>
    %794 = vector.extract_strided_slice %762 {offsets = [1, 0, 0], sizes = [1, 1, 256], strides = [1, 1, 1]} : vector<4x1x256xf32> to vector<1x1x256xf32>
    %795 = vector.shape_cast %794 : vector<1x1x256xf32> to vector<1x256xf32>
    %796 = vector.broadcast %793 : f32 to vector<1x256xf32>
    %797 = arith.mulf %796, %795 : vector<1x256xf32>
    %798 = arith.addf %792, %797 : vector<1x256xf32>
    %c61 = arith.constant 61 : index
    %799 = memref.load %arg1[%c61] : memref<144xf32, #tpu.memory_space<smem>>
    %800 = vector.extract_strided_slice %762 {offsets = [2, 0, 0], sizes = [1, 1, 256], strides = [1, 1, 1]} : vector<4x1x256xf32> to vector<1x1x256xf32>
    %801 = vector.shape_cast %800 : vector<1x1x256xf32> to vector<1x256xf32>
    %802 = vector.broadcast %799 : f32 to vector<1x256xf32>
    %803 = arith.mulf %802, %801 : vector<1x256xf32>
    %804 = arith.addf %798, %803 : vector<1x256xf32>
    %c70 = arith.constant 70 : index
    %805 = memref.load %arg1[%c70] : memref<144xf32, #tpu.memory_space<smem>>
    %806 = vector.extract_strided_slice %762 {offsets = [3, 0, 0], sizes = [1, 1, 256], strides = [1, 1, 1]} : vector<4x1x256xf32> to vector<1x1x256xf32>
    %807 = vector.shape_cast %806 : vector<1x1x256xf32> to vector<1x256xf32>
    %808 = vector.broadcast %805 : f32 to vector<1x256xf32>
    %809 = arith.mulf %808, %807 : vector<1x256xf32>
    %810 = arith.addf %804, %809 : vector<1x256xf32>
    %c79 = arith.constant 79 : index
    %811 = memref.load %arg1[%c79] : memref<144xf32, #tpu.memory_space<smem>>
    %812 = vector.extract_strided_slice %762 {offsets = [0, 0, 0], sizes = [1, 1, 256], strides = [1, 1, 1]} : vector<4x1x256xf32> to vector<1x1x256xf32>
    %813 = vector.shape_cast %812 : vector<1x1x256xf32> to vector<1x256xf32>
    %814 = vector.broadcast %811 : f32 to vector<1x256xf32>
    %815 = arith.mulf %814, %813 : vector<1x256xf32>
    %816 = arith.addf %735, %815 : vector<1x256xf32>
    %c88 = arith.constant 88 : index
    %817 = memref.load %arg1[%c88] : memref<144xf32, #tpu.memory_space<smem>>
    %818 = vector.extract_strided_slice %762 {offsets = [1, 0, 0], sizes = [1, 1, 256], strides = [1, 1, 1]} : vector<4x1x256xf32> to vector<1x1x256xf32>
    %819 = vector.shape_cast %818 : vector<1x1x256xf32> to vector<1x256xf32>
    %820 = vector.broadcast %817 : f32 to vector<1x256xf32>
    %821 = arith.mulf %820, %819 : vector<1x256xf32>
    %822 = arith.addf %816, %821 : vector<1x256xf32>
    %c97 = arith.constant 97 : index
    %823 = memref.load %arg1[%c97] : memref<144xf32, #tpu.memory_space<smem>>
    %824 = vector.extract_strided_slice %762 {offsets = [2, 0, 0], sizes = [1, 1, 256], strides = [1, 1, 1]} : vector<4x1x256xf32> to vector<1x1x256xf32>
    %825 = vector.shape_cast %824 : vector<1x1x256xf32> to vector<1x256xf32>
    %826 = vector.broadcast %823 : f32 to vector<1x256xf32>
    %827 = arith.mulf %826, %825 : vector<1x256xf32>
    %828 = arith.addf %822, %827 : vector<1x256xf32>
    %c106 = arith.constant 106 : index
    %829 = memref.load %arg1[%c106] : memref<144xf32, #tpu.memory_space<smem>>
    %830 = vector.extract_strided_slice %762 {offsets = [3, 0, 0], sizes = [1, 1, 256], strides = [1, 1, 1]} : vector<4x1x256xf32> to vector<1x1x256xf32>
    %831 = vector.shape_cast %830 : vector<1x1x256xf32> to vector<1x256xf32>
    %832 = vector.broadcast %829 : f32 to vector<1x256xf32>
    %833 = arith.mulf %832, %831 : vector<1x256xf32>
    %834 = arith.addf %828, %833 : vector<1x256xf32>
    %c115 = arith.constant 115 : index
    %835 = memref.load %arg1[%c115] : memref<144xf32, #tpu.memory_space<smem>>
    %836 = vector.extract_strided_slice %762 {offsets = [0, 0, 0], sizes = [1, 1, 256], strides = [1, 1, 1]} : vector<4x1x256xf32> to vector<1x1x256xf32>
    %837 = vector.shape_cast %836 : vector<1x1x256xf32> to vector<1x256xf32>
    %838 = vector.broadcast %835 : f32 to vector<1x256xf32>
    %839 = arith.mulf %838, %837 : vector<1x256xf32>
    %840 = arith.addf %759, %839 : vector<1x256xf32>
    %c124 = arith.constant 124 : index
    %841 = memref.load %arg1[%c124] : memref<144xf32, #tpu.memory_space<smem>>
    %842 = vector.extract_strided_slice %762 {offsets = [1, 0, 0], sizes = [1, 1, 256], strides = [1, 1, 1]} : vector<4x1x256xf32> to vector<1x1x256xf32>
    %843 = vector.shape_cast %842 : vector<1x1x256xf32> to vector<1x256xf32>
    %844 = vector.broadcast %841 : f32 to vector<1x256xf32>
    %845 = arith.mulf %844, %843 : vector<1x256xf32>
    %846 = arith.addf %840, %845 : vector<1x256xf32>
    %c133 = arith.constant 133 : index
    %847 = memref.load %arg1[%c133] : memref<144xf32, #tpu.memory_space<smem>>
    %848 = vector.extract_strided_slice %762 {offsets = [2, 0, 0], sizes = [1, 1, 256], strides = [1, 1, 1]} : vector<4x1x256xf32> to vector<1x1x256xf32>
    %849 = vector.shape_cast %848 : vector<1x1x256xf32> to vector<1x256xf32>
    %850 = vector.broadcast %847 : f32 to vector<1x256xf32>
    %851 = arith.mulf %850, %849 : vector<1x256xf32>
    %852 = arith.addf %846, %851 : vector<1x256xf32>
    %c142 = arith.constant 142 : index
    %853 = memref.load %arg1[%c142] : memref<144xf32, #tpu.memory_space<smem>>
    %854 = vector.extract_strided_slice %762 {offsets = [3, 0, 0], sizes = [1, 1, 256], strides = [1, 1, 1]} : vector<4x1x256xf32> to vector<1x1x256xf32>
    %855 = vector.shape_cast %854 : vector<1x1x256xf32> to vector<1x256xf32>
    %856 = vector.broadcast %853 : f32 to vector<1x256xf32>
    %857 = arith.mulf %856, %855 : vector<1x256xf32>
    %858 = arith.addf %852, %857 : vector<1x256xf32>
    %cst_35 = arith.constant 0.000000e+00 : f32
    %859 = vector.broadcast %cst_35 : f32 to vector<4x1x17xf32>
    %860 = vector.extract_strided_slice %33 {offsets = [0, 0, 17], sizes = [4, 1, 239], strides = [1, 1, 1]} : vector<4x1x256xf32> to vector<4x1x239xf32>
    %861 = tpu.concatenate %860, %859 in 2 : vector<4x1x239xf32>, vector<4x1x17xf32> -> vector<4x1x256xf32>
    %cst_36 = arith.constant 0.000000e+00 : f32
    %862 = vector.shape_cast %20 : vector<1x256xi1> to vector<1x1x256xi1>
    %863 = vector.broadcast %862 : vector<1x1x256xi1> to vector<4x1x256xi1>
    %864 = vector.broadcast %cst_36 : f32 to vector<4x1x256xf32>
    %865 = arith.select %863, %861, %864 : vector<4x1x256xi1>, vector<4x1x256xf32>
    %c8 = arith.constant 8 : index
    %866 = memref.load %arg1[%c8] : memref<144xf32, #tpu.memory_space<smem>>
    %867 = vector.extract_strided_slice %865 {offsets = [0, 0, 0], sizes = [1, 1, 256], strides = [1, 1, 1]} : vector<4x1x256xf32> to vector<1x1x256xf32>
    %868 = vector.shape_cast %867 : vector<1x1x256xf32> to vector<1x256xf32>
    %869 = vector.broadcast %866 : f32 to vector<1x256xf32>
    %870 = arith.mulf %869, %868 : vector<1x256xf32>
    %871 = arith.addf %786, %870 : vector<1x256xf32>
    %c17 = arith.constant 17 : index
    %872 = memref.load %arg1[%c17] : memref<144xf32, #tpu.memory_space<smem>>
    %873 = vector.extract_strided_slice %865 {offsets = [1, 0, 0], sizes = [1, 1, 256], strides = [1, 1, 1]} : vector<4x1x256xf32> to vector<1x1x256xf32>
    %874 = vector.shape_cast %873 : vector<1x1x256xf32> to vector<1x256xf32>
    %875 = vector.broadcast %872 : f32 to vector<1x256xf32>
    %876 = arith.mulf %875, %874 : vector<1x256xf32>
    %877 = arith.addf %871, %876 : vector<1x256xf32>
    %c26 = arith.constant 26 : index
    %878 = memref.load %arg1[%c26] : memref<144xf32, #tpu.memory_space<smem>>
    %879 = vector.extract_strided_slice %865 {offsets = [2, 0, 0], sizes = [1, 1, 256], strides = [1, 1, 1]} : vector<4x1x256xf32> to vector<1x1x256xf32>
    %880 = vector.shape_cast %879 : vector<1x1x256xf32> to vector<1x256xf32>
    %881 = vector.broadcast %878 : f32 to vector<1x256xf32>
    %882 = arith.mulf %881, %880 : vector<1x256xf32>
    %883 = arith.addf %877, %882 : vector<1x256xf32>
    %c35 = arith.constant 35 : index
    %884 = memref.load %arg1[%c35] : memref<144xf32, #tpu.memory_space<smem>>
    %885 = vector.extract_strided_slice %865 {offsets = [3, 0, 0], sizes = [1, 1, 256], strides = [1, 1, 1]} : vector<4x1x256xf32> to vector<1x1x256xf32>
    %886 = vector.shape_cast %885 : vector<1x1x256xf32> to vector<1x256xf32>
    %887 = vector.broadcast %884 : f32 to vector<1x256xf32>
    %888 = arith.mulf %887, %886 : vector<1x256xf32>
    %889 = arith.addf %883, %888 : vector<1x256xf32>
    %c44 = arith.constant 44 : index
    %890 = memref.load %arg1[%c44] : memref<144xf32, #tpu.memory_space<smem>>
    %891 = vector.extract_strided_slice %865 {offsets = [0, 0, 0], sizes = [1, 1, 256], strides = [1, 1, 1]} : vector<4x1x256xf32> to vector<1x1x256xf32>
    %892 = vector.shape_cast %891 : vector<1x1x256xf32> to vector<1x256xf32>
    %893 = vector.broadcast %890 : f32 to vector<1x256xf32>
    %894 = arith.mulf %893, %892 : vector<1x256xf32>
    %895 = arith.addf %810, %894 : vector<1x256xf32>
    %c53 = arith.constant 53 : index
    %896 = memref.load %arg1[%c53] : memref<144xf32, #tpu.memory_space<smem>>
    %897 = vector.extract_strided_slice %865 {offsets = [1, 0, 0], sizes = [1, 1, 256], strides = [1, 1, 1]} : vector<4x1x256xf32> to vector<1x1x256xf32>
    %898 = vector.shape_cast %897 : vector<1x1x256xf32> to vector<1x256xf32>
    %899 = vector.broadcast %896 : f32 to vector<1x256xf32>
    %900 = arith.mulf %899, %898 : vector<1x256xf32>
    %901 = arith.addf %895, %900 : vector<1x256xf32>
    %c62 = arith.constant 62 : index
    %902 = memref.load %arg1[%c62] : memref<144xf32, #tpu.memory_space<smem>>
    %903 = vector.extract_strided_slice %865 {offsets = [2, 0, 0], sizes = [1, 1, 256], strides = [1, 1, 1]} : vector<4x1x256xf32> to vector<1x1x256xf32>
    %904 = vector.shape_cast %903 : vector<1x1x256xf32> to vector<1x256xf32>
    %905 = vector.broadcast %902 : f32 to vector<1x256xf32>
    %906 = arith.mulf %905, %904 : vector<1x256xf32>
    %907 = arith.addf %901, %906 : vector<1x256xf32>
    %c71 = arith.constant 71 : index
    %908 = memref.load %arg1[%c71] : memref<144xf32, #tpu.memory_space<smem>>
    %909 = vector.extract_strided_slice %865 {offsets = [3, 0, 0], sizes = [1, 1, 256], strides = [1, 1, 1]} : vector<4x1x256xf32> to vector<1x1x256xf32>
    %910 = vector.shape_cast %909 : vector<1x1x256xf32> to vector<1x256xf32>
    %911 = vector.broadcast %908 : f32 to vector<1x256xf32>
    %912 = arith.mulf %911, %910 : vector<1x256xf32>
    %913 = arith.addf %907, %912 : vector<1x256xf32>
    %c80 = arith.constant 80 : index
    %914 = memref.load %arg1[%c80] : memref<144xf32, #tpu.memory_space<smem>>
    %915 = vector.extract_strided_slice %865 {offsets = [0, 0, 0], sizes = [1, 1, 256], strides = [1, 1, 1]} : vector<4x1x256xf32> to vector<1x1x256xf32>
    %916 = vector.shape_cast %915 : vector<1x1x256xf32> to vector<1x256xf32>
    %917 = vector.broadcast %914 : f32 to vector<1x256xf32>
    %918 = arith.mulf %917, %916 : vector<1x256xf32>
    %919 = arith.addf %834, %918 : vector<1x256xf32>
    %c89 = arith.constant 89 : index
    %920 = memref.load %arg1[%c89] : memref<144xf32, #tpu.memory_space<smem>>
    %921 = vector.extract_strided_slice %865 {offsets = [1, 0, 0], sizes = [1, 1, 256], strides = [1, 1, 1]} : vector<4x1x256xf32> to vector<1x1x256xf32>
    %922 = vector.shape_cast %921 : vector<1x1x256xf32> to vector<1x256xf32>
    %923 = vector.broadcast %920 : f32 to vector<1x256xf32>
    %924 = arith.mulf %923, %922 : vector<1x256xf32>
    %925 = arith.addf %919, %924 : vector<1x256xf32>
    %c98 = arith.constant 98 : index
    %926 = memref.load %arg1[%c98] : memref<144xf32, #tpu.memory_space<smem>>
    %927 = vector.extract_strided_slice %865 {offsets = [2, 0, 0], sizes = [1, 1, 256], strides = [1, 1, 1]} : vector<4x1x256xf32> to vector<1x1x256xf32>
    %928 = vector.shape_cast %927 : vector<1x1x256xf32> to vector<1x256xf32>
    %929 = vector.broadcast %926 : f32 to vector<1x256xf32>
    %930 = arith.mulf %929, %928 : vector<1x256xf32>
    %931 = arith.addf %925, %930 : vector<1x256xf32>
    %c107 = arith.constant 107 : index
    %932 = memref.load %arg1[%c107] : memref<144xf32, #tpu.memory_space<smem>>
    %933 = vector.extract_strided_slice %865 {offsets = [3, 0, 0], sizes = [1, 1, 256], strides = [1, 1, 1]} : vector<4x1x256xf32> to vector<1x1x256xf32>
    %934 = vector.shape_cast %933 : vector<1x1x256xf32> to vector<1x256xf32>
    %935 = vector.broadcast %932 : f32 to vector<1x256xf32>
    %936 = arith.mulf %935, %934 : vector<1x256xf32>
    %937 = arith.addf %931, %936 : vector<1x256xf32>
    %c116 = arith.constant 116 : index
    %938 = memref.load %arg1[%c116] : memref<144xf32, #tpu.memory_space<smem>>
    %939 = vector.extract_strided_slice %865 {offsets = [0, 0, 0], sizes = [1, 1, 256], strides = [1, 1, 1]} : vector<4x1x256xf32> to vector<1x1x256xf32>
    %940 = vector.shape_cast %939 : vector<1x1x256xf32> to vector<1x256xf32>
    %941 = vector.broadcast %938 : f32 to vector<1x256xf32>
    %942 = arith.mulf %941, %940 : vector<1x256xf32>
    %943 = arith.addf %858, %942 : vector<1x256xf32>
    %c125 = arith.constant 125 : index
    %944 = memref.load %arg1[%c125] : memref<144xf32, #tpu.memory_space<smem>>
    %945 = vector.extract_strided_slice %865 {offsets = [1, 0, 0], sizes = [1, 1, 256], strides = [1, 1, 1]} : vector<4x1x256xf32> to vector<1x1x256xf32>
    %946 = vector.shape_cast %945 : vector<1x1x256xf32> to vector<1x256xf32>
    %947 = vector.broadcast %944 : f32 to vector<1x256xf32>
    %948 = arith.mulf %947, %946 : vector<1x256xf32>
    %949 = arith.addf %943, %948 : vector<1x256xf32>
    %c134 = arith.constant 134 : index
    %950 = memref.load %arg1[%c134] : memref<144xf32, #tpu.memory_space<smem>>
    %951 = vector.extract_strided_slice %865 {offsets = [2, 0, 0], sizes = [1, 1, 256], strides = [1, 1, 1]} : vector<4x1x256xf32> to vector<1x1x256xf32>
    %952 = vector.shape_cast %951 : vector<1x1x256xf32> to vector<1x256xf32>
    %953 = vector.broadcast %950 : f32 to vector<1x256xf32>
    %954 = arith.mulf %953, %952 : vector<1x256xf32>
    %955 = arith.addf %949, %954 : vector<1x256xf32>
    %c143 = arith.constant 143 : index
    %956 = memref.load %arg1[%c143] : memref<144xf32, #tpu.memory_space<smem>>
    %957 = vector.extract_strided_slice %865 {offsets = [3, 0, 0], sizes = [1, 1, 256], strides = [1, 1, 1]} : vector<4x1x256xf32> to vector<1x1x256xf32>
    %958 = vector.shape_cast %957 : vector<1x1x256xf32> to vector<1x256xf32>
    %959 = vector.broadcast %956 : f32 to vector<1x256xf32>
    %960 = arith.mulf %959, %958 : vector<1x256xf32>
    %961 = arith.addf %955, %960 : vector<1x256xf32>
    %962 = vector.shape_cast %889 : vector<1x256xf32> to vector<1x1x256xf32>
    %963 = vector.shape_cast %913 : vector<1x256xf32> to vector<1x1x256xf32>
    %964 = vector.shape_cast %937 : vector<1x256xf32> to vector<1x1x256xf32>
    %965 = vector.shape_cast %961 : vector<1x256xf32> to vector<1x1x256xf32>
    %966 = tpu.concatenate %962, %963, %964, %965 in 0 : vector<1x1x256xf32>, vector<1x1x256xf32>, vector<1x1x256xf32>, vector<1x1x256xf32> -> vector<4x1x256xf32>
    %cst_37 = arith.constant 0.000000e+00 : f32
    %967 = vector.broadcast %cst_37 : f32 to vector<4x1x256xf32>
    %cst_38 = arith.constant 0.000000e+00 : f32
    %968 = vector.broadcast %cst_38 : f32 to vector<4x1x256xf32>
    %cst_39 = arith.constant 0.000000e+00 : f32
    %969 = vector.broadcast %cst_39 : f32 to vector<4x1x256xf32>
    %cst_40 = arith.constant 0.000000e+00 : f32
    %970 = vector.broadcast %cst_40 : f32 to vector<4x1x256xf32>
    %cst_41 = arith.constant 0.000000e+00 : f32
    %971 = vector.broadcast %cst_41 : f32 to vector<4x1x17xf32>
    %972 = vector.extract_strided_slice %966 {offsets = [0, 0, 0], sizes = [4, 1, 239], strides = [1, 1, 1]} : vector<4x1x256xf32> to vector<4x1x239xf32>
    %973 = tpu.concatenate %971, %972 in 2 : vector<4x1x17xf32>, vector<4x1x239xf32> -> vector<4x1x256xf32>
    %cst_42 = arith.constant 0.000000e+00 : f32
    %974 = vector.shape_cast %18 : vector<1x256xi1> to vector<1x1x256xi1>
    %975 = vector.broadcast %974 : vector<1x1x256xi1> to vector<4x1x256xi1>
    %976 = vector.broadcast %cst_42 : f32 to vector<4x1x256xf32>
    %977 = arith.select %975, %973, %976 : vector<4x1x256xi1>, vector<4x1x256xf32>
    %cst_43 = arith.constant -1.000000e+00 : f32
    %978 = vector.broadcast %cst_43 : f32 to vector<4x1x256xf32>
    %979 = arith.mulf %978, %977 : vector<4x1x256xf32>
    %980 = arith.addf %967, %979 : vector<4x1x256xf32>
    %cst_44 = arith.constant -1.000000e+00 : f32
    %981 = vector.broadcast %cst_44 : f32 to vector<4x1x256xf32>
    %982 = arith.mulf %981, %977 : vector<4x1x256xf32>
    %983 = arith.addf %968, %982 : vector<4x1x256xf32>
    %cst_45 = arith.constant -2.000000e+00 : f32
    %984 = vector.broadcast %cst_45 : f32 to vector<4x1x256xf32>
    %985 = arith.mulf %984, %977 : vector<4x1x256xf32>
    %986 = arith.addf %969, %985 : vector<4x1x256xf32>
    %cst_46 = arith.constant 0.000000e+00 : f32
    %987 = vector.broadcast %cst_46 : f32 to vector<4x1x16xf32>
    %988 = vector.extract_strided_slice %966 {offsets = [0, 0, 0], sizes = [4, 1, 240], strides = [1, 1, 1]} : vector<4x1x256xf32> to vector<4x1x240xf32>
    %989 = tpu.concatenate %987, %988 in 2 : vector<4x1x16xf32>, vector<4x1x240xf32> -> vector<4x1x256xf32>
    %cst_47 = arith.constant -2.000000e+00 : f32
    %990 = vector.broadcast %cst_47 : f32 to vector<4x1x256xf32>
    %991 = arith.mulf %990, %989 : vector<4x1x256xf32>
    %992 = arith.addf %983, %991 : vector<4x1x256xf32>
    %cst_48 = arith.constant -1.000000e+00 : f32
    %993 = vector.broadcast %cst_48 : f32 to vector<4x1x256xf32>
    %994 = arith.mulf %993, %989 : vector<4x1x256xf32>
    %995 = arith.addf %986, %994 : vector<4x1x256xf32>
    %cst_49 = arith.constant 1.000000e+00 : f32
    %996 = vector.broadcast %cst_49 : f32 to vector<4x1x256xf32>
    %997 = arith.mulf %996, %989 : vector<4x1x256xf32>
    %998 = arith.addf %970, %997 : vector<4x1x256xf32>
    %cst_50 = arith.constant 0.000000e+00 : f32
    %999 = vector.broadcast %cst_50 : f32 to vector<4x1x15xf32>
    %1000 = vector.extract_strided_slice %966 {offsets = [0, 0, 0], sizes = [4, 1, 241], strides = [1, 1, 1]} : vector<4x1x256xf32> to vector<4x1x241xf32>
    %1001 = tpu.concatenate %999, %1000 in 2 : vector<4x1x15xf32>, vector<4x1x241xf32> -> vector<4x1x256xf32>
    %cst_51 = arith.constant 0.000000e+00 : f32
    %1002 = vector.shape_cast %20 : vector<1x256xi1> to vector<1x1x256xi1>
    %1003 = vector.broadcast %1002 : vector<1x1x256xi1> to vector<4x1x256xi1>
    %1004 = vector.broadcast %cst_51 : f32 to vector<4x1x256xf32>
    %1005 = arith.select %1003, %1001, %1004 : vector<4x1x256xi1>, vector<4x1x256xf32>
    %cst_52 = arith.constant 1.000000e+00 : f32
    %1006 = vector.broadcast %cst_52 : f32 to vector<4x1x256xf32>
    %1007 = arith.mulf %1006, %1005 : vector<4x1x256xf32>
    %1008 = arith.addf %980, %1007 : vector<4x1x256xf32>
    %cst_53 = arith.constant -1.000000e+00 : f32
    %1009 = vector.broadcast %cst_53 : f32 to vector<4x1x256xf32>
    %1010 = arith.mulf %1009, %1005 : vector<4x1x256xf32>
    %1011 = arith.addf %992, %1010 : vector<4x1x256xf32>
    %cst_54 = arith.constant 2.000000e+00 : f32
    %1012 = vector.broadcast %cst_54 : f32 to vector<4x1x256xf32>
    %1013 = arith.mulf %1012, %1005 : vector<4x1x256xf32>
    %1014 = arith.addf %998, %1013 : vector<4x1x256xf32>
    %cst_55 = arith.constant 0.000000e+00 : f32
    %1015 = vector.broadcast %cst_55 : f32 to vector<4x1x1xf32>
    %1016 = vector.extract_strided_slice %966 {offsets = [0, 0, 0], sizes = [4, 1, 255], strides = [1, 1, 1]} : vector<4x1x256xf32> to vector<4x1x255xf32>
    %1017 = tpu.concatenate %1015, %1016 in 2 : vector<4x1x1xf32>, vector<4x1x255xf32> -> vector<4x1x256xf32>
    %cst_56 = arith.constant 0.000000e+00 : f32
    %1018 = vector.shape_cast %18 : vector<1x256xi1> to vector<1x1x256xi1>
    %1019 = vector.broadcast %1018 : vector<1x1x256xi1> to vector<4x1x256xi1>
    %1020 = vector.broadcast %cst_56 : f32 to vector<4x1x256xf32>
    %1021 = arith.select %1019, %1017, %1020 : vector<4x1x256xi1>, vector<4x1x256xf32>
    %cst_57 = arith.constant -2.000000e+00 : f32
    %1022 = vector.broadcast %cst_57 : f32 to vector<4x1x256xf32>
    %1023 = arith.mulf %1022, %1021 : vector<4x1x256xf32>
    %1024 = arith.addf %1008, %1023 : vector<4x1x256xf32>
    %cst_58 = arith.constant -1.000000e+00 : f32
    %1025 = vector.broadcast %cst_58 : f32 to vector<4x1x256xf32>
    %1026 = arith.mulf %1025, %1021 : vector<4x1x256xf32>
    %1027 = arith.addf %995, %1026 : vector<4x1x256xf32>
    %cst_59 = arith.constant -1.000000e+00 : f32
    %1028 = vector.broadcast %cst_59 : f32 to vector<4x1x256xf32>
    %1029 = arith.mulf %1028, %1021 : vector<4x1x256xf32>
    %1030 = arith.addf %1014, %1029 : vector<4x1x256xf32>
    %cst_60 = arith.constant 0.000000e+00 : f32
    %1031 = vector.broadcast %cst_60 : f32 to vector<4x1x1xf32>
    %1032 = vector.extract_strided_slice %966 {offsets = [0, 0, 1], sizes = [4, 1, 255], strides = [1, 1, 1]} : vector<4x1x256xf32> to vector<4x1x255xf32>
    %1033 = tpu.concatenate %1032, %1031 in 2 : vector<4x1x255xf32>, vector<4x1x1xf32> -> vector<4x1x256xf32>
    %cst_61 = arith.constant 0.000000e+00 : f32
    %1034 = vector.shape_cast %20 : vector<1x256xi1> to vector<1x1x256xi1>
    %1035 = vector.broadcast %1034 : vector<1x1x256xi1> to vector<4x1x256xi1>
    %1036 = vector.broadcast %cst_61 : f32 to vector<4x1x256xf32>
    %1037 = arith.select %1035, %1033, %1036 : vector<4x1x256xi1>, vector<4x1x256xf32>
    %cst_62 = arith.constant 2.000000e+00 : f32
    %1038 = vector.broadcast %cst_62 : f32 to vector<4x1x256xf32>
    %1039 = arith.mulf %1038, %1037 : vector<4x1x256xf32>
    %1040 = arith.addf %1024, %1039 : vector<4x1x256xf32>
    %cst_63 = arith.constant 1.000000e+00 : f32
    %1041 = vector.broadcast %cst_63 : f32 to vector<4x1x256xf32>
    %1042 = arith.mulf %1041, %1037 : vector<4x1x256xf32>
    %1043 = arith.addf %1027, %1042 : vector<4x1x256xf32>
    %cst_64 = arith.constant 1.000000e+00 : f32
    %1044 = vector.broadcast %cst_64 : f32 to vector<4x1x256xf32>
    %1045 = arith.mulf %1044, %1037 : vector<4x1x256xf32>
    %1046 = arith.addf %1030, %1045 : vector<4x1x256xf32>
    %cst_65 = arith.constant 0.000000e+00 : f32
    %1047 = vector.broadcast %cst_65 : f32 to vector<4x1x15xf32>
    %1048 = vector.extract_strided_slice %966 {offsets = [0, 0, 15], sizes = [4, 1, 241], strides = [1, 1, 1]} : vector<4x1x256xf32> to vector<4x1x241xf32>
    %1049 = tpu.concatenate %1048, %1047 in 2 : vector<4x1x241xf32>, vector<4x1x15xf32> -> vector<4x1x256xf32>
    %cst_66 = arith.constant 0.000000e+00 : f32
    %1050 = vector.shape_cast %18 : vector<1x256xi1> to vector<1x1x256xi1>
    %1051 = vector.broadcast %1050 : vector<1x1x256xi1> to vector<4x1x256xi1>
    %1052 = vector.broadcast %cst_66 : f32 to vector<4x1x256xf32>
    %1053 = arith.select %1051, %1049, %1052 : vector<4x1x256xi1>, vector<4x1x256xf32>
    %cst_67 = arith.constant -1.000000e+00 : f32
    %1054 = vector.broadcast %cst_67 : f32 to vector<4x1x256xf32>
    %1055 = arith.mulf %1054, %1053 : vector<4x1x256xf32>
    %1056 = arith.addf %1040, %1055 : vector<4x1x256xf32>
    %cst_68 = arith.constant 1.000000e+00 : f32
    %1057 = vector.broadcast %cst_68 : f32 to vector<4x1x256xf32>
    %1058 = arith.mulf %1057, %1053 : vector<4x1x256xf32>
    %1059 = arith.addf %1011, %1058 : vector<4x1x256xf32>
    %cst_69 = arith.constant -2.000000e+00 : f32
    %1060 = vector.broadcast %cst_69 : f32 to vector<4x1x256xf32>
    %1061 = arith.mulf %1060, %1053 : vector<4x1x256xf32>
    %1062 = arith.addf %1046, %1061 : vector<4x1x256xf32>
    %cst_70 = arith.constant 0.000000e+00 : f32
    %1063 = vector.broadcast %cst_70 : f32 to vector<4x1x16xf32>
    %1064 = vector.extract_strided_slice %966 {offsets = [0, 0, 16], sizes = [4, 1, 240], strides = [1, 1, 1]} : vector<4x1x256xf32> to vector<4x1x240xf32>
    %1065 = tpu.concatenate %1064, %1063 in 2 : vector<4x1x240xf32>, vector<4x1x16xf32> -> vector<4x1x256xf32>
    %cst_71 = arith.constant 2.000000e+00 : f32
    %1066 = vector.broadcast %cst_71 : f32 to vector<4x1x256xf32>
    %1067 = arith.mulf %1066, %1065 : vector<4x1x256xf32>
    %1068 = arith.addf %1059, %1067 : vector<4x1x256xf32>
    %cst_72 = arith.constant 1.000000e+00 : f32
    %1069 = vector.broadcast %cst_72 : f32 to vector<4x1x256xf32>
    %1070 = arith.mulf %1069, %1065 : vector<4x1x256xf32>
    %1071 = arith.addf %1043, %1070 : vector<4x1x256xf32>
    %cst_73 = arith.constant -1.000000e+00 : f32
    %1072 = vector.broadcast %cst_73 : f32 to vector<4x1x256xf32>
    %1073 = arith.mulf %1072, %1065 : vector<4x1x256xf32>
    %1074 = arith.addf %1062, %1073 : vector<4x1x256xf32>
    %cst_74 = arith.constant 0.000000e+00 : f32
    %1075 = vector.broadcast %cst_74 : f32 to vector<4x1x17xf32>
    %1076 = vector.extract_strided_slice %966 {offsets = [0, 0, 17], sizes = [4, 1, 239], strides = [1, 1, 1]} : vector<4x1x256xf32> to vector<4x1x239xf32>
    %1077 = tpu.concatenate %1076, %1075 in 2 : vector<4x1x239xf32>, vector<4x1x17xf32> -> vector<4x1x256xf32>
    %cst_75 = arith.constant 0.000000e+00 : f32
    %1078 = vector.shape_cast %20 : vector<1x256xi1> to vector<1x1x256xi1>
    %1079 = vector.broadcast %1078 : vector<1x1x256xi1> to vector<4x1x256xi1>
    %1080 = vector.broadcast %cst_75 : f32 to vector<4x1x256xf32>
    %1081 = arith.select %1079, %1077, %1080 : vector<4x1x256xi1>, vector<4x1x256xf32>
    %cst_76 = arith.constant 1.000000e+00 : f32
    %1082 = vector.broadcast %cst_76 : f32 to vector<4x1x256xf32>
    %1083 = arith.mulf %1082, %1081 : vector<4x1x256xf32>
    %1084 = arith.addf %1056, %1083 : vector<4x1x256xf32>
    %cst_77 = arith.constant 1.000000e+00 : f32
    %1085 = vector.broadcast %cst_77 : f32 to vector<4x1x256xf32>
    %1086 = arith.mulf %1085, %1081 : vector<4x1x256xf32>
    %1087 = arith.addf %1068, %1086 : vector<4x1x256xf32>
    %cst_78 = arith.constant 2.000000e+00 : f32
    %1088 = vector.broadcast %cst_78 : f32 to vector<4x1x256xf32>
    %1089 = arith.mulf %1088, %1081 : vector<4x1x256xf32>
    %1090 = arith.addf %1071, %1089 : vector<4x1x256xf32>
    %1091 = math.absf %1084 : vector<4x1x256xf32>
    %1092 = math.absf %1087 : vector<4x1x256xf32>
    %1093 = arith.maximumf %1091, %1092 : vector<4x1x256xf32>
    %1094 = math.absf %1090 : vector<4x1x256xf32>
    %1095 = arith.maximumf %1093, %1094 : vector<4x1x256xf32>
    %1096 = math.absf %1074 : vector<4x1x256xf32>
    %1097 = arith.maximumf %1095, %1096 : vector<4x1x256xf32>
    %cst_79 = arith.constant dense<0.000000e+00> : vector<1x256xf32>
    %1098 = vector.multi_reduction <add>, %1097, %cst_79 [0] : vector<4x1x256xf32> to vector<1x256xf32>
    %cst_80 = arith.constant 2.500000e-01 : f32
    %1099 = vector.broadcast %cst_80 : f32 to vector<1x256xf32>
    %1100 = arith.mulf %1098, %1099 : vector<1x256xf32>
    %cst_81 = arith.constant dense<0xFF800000> : vector<1x256xf32>
    %1101 = vector.multi_reduction <maximumf>, %1097, %cst_81 [0] : vector<4x1x256xf32> to vector<1x256xf32>
    %1102 = arith.addf %1100, %1101 : vector<1x256xf32>
    %c0_82 = arith.constant 0 : index
    %1103 = memref.load %arg3[%c0_82] : memref<2xf32, #tpu.memory_space<smem>>
    %1104 = vector.broadcast %1103 : f32 to vector<1x256xf32>
    %1105 = arith.mulf %1102, %1104 : vector<1x256xf32>
    %c1_83 = arith.constant 1 : index
    %1106 = memref.load %arg3[%c1_83] : memref<2xf32, #tpu.memory_space<smem>>
    %1107 = vector.broadcast %1106 : f32 to vector<1x256xf32>
    %1108 = arith.addf %1105, %1107 : vector<1x256xf32>
    %1109 = arith.negf %1108 : vector<1x256xf32>
    %1110 = math.exp %1109 : vector<1x256xf32>
    %cst_84 = arith.constant 1.000000e+00 : f32
    %1111 = vector.broadcast %cst_84 : f32 to vector<1x256xf32>
    %1112 = arith.addf %1111, %1110 : vector<1x256xf32>
    %1113 = arith.divf %1111, %1112 : vector<1x256xf32>
    %c0_85 = arith.constant 0 : index
    %c0_86 = arith.constant 0 : index
    %c0_87 = arith.constant 0 : index
    %1114 = vector.load %arg4[%c0_85, %c0_86, %c0_87] : memref<1x4x256xf32, #tpu.memory_space<vmem>>, vector<1x4x256xf32>
    %1115 = vector.shape_cast %1113 : vector<1x256xf32> to vector<1x1x256xf32>
    %1116 = vector.broadcast %1115 : vector<1x1x256xf32> to vector<1x4x256xf32>
    %1117 = arith.mulf %1114, %1116 : vector<1x4x256xf32>
    %c0_88 = arith.constant 0 : index
    %c0_89 = arith.constant 0 : index
    %c0_90 = arith.constant 0 : index
    %1118 = vector.load %arg5[%c0_88, %c0_89, %c0_90] : memref<1x4x256xf32, #tpu.memory_space<vmem>>, vector<1x4x256xf32>
    tpu.vector_store %arg5[%c0_88, %c0_89, %c0_90], %1117 {strides = array<i32>} : memref<1x4x256xf32, #tpu.memory_space<vmem>>, vector<1x4x256xf32>,
    return
  }
  func.func @transform_0(%arg0: i32) -> i32 {
    %c0_i32 = arith.constant 0 : i32
    %c0_i32_0 = arith.constant 0 : i32
    return %c0_i32 : i32
  }
  func.func @transform_1(%arg0: i32) -> i32 {
    %c0_i32 = arith.constant 0 : i32
    %c0_i32_0 = arith.constant 0 : i32
    return %c0_i32 : i32
  }
  func.func @transform_2(%arg0: i32) -> i32 {
    %c0_i32 = arith.constant 0 : i32
    %c0_i32_0 = arith.constant 0 : i32
    return %c0_i32 : i32
  }
  func.func @transform_3(%arg0: i32) -> (i32, i32, i32) {
    %c0_i32 = arith.constant 0 : i32
    %c0_i32_0 = arith.constant 0 : i32
    %c0_i32_1 = arith.constant 0 : i32
    return %arg0, %c0_i32, %c0_i32_0 : i32, i32, i32
  }
  func.func @transform_4(%arg0: i32) -> (i32, i32, i32) {
    %c0_i32 = arith.constant 0 : i32
    %c0_i32_0 = arith.constant 0 : i32
    %c0_i32_1 = arith.constant 0 : i32
    return %arg0, %c0_i32, %c0_i32_0 : i32, i32, i32
  }
}

</mosaic_0001>

<llo_original>
// kernel: tpu_custom_call.1
$region0: #{tpu_custom_call.1}
  #allocation0 [shape = 'u32[]', space=smem, size = 0x4, offset = 0x4, fixed_abs, tag = 'smem constant byte address 0x4 - core index']
  #allocation1 [shape = 'u32[144,128]{1,0:T(1,128)}', space=vmem, size = 0x12000, scoped, tag = 'internal scratch']
  %s0 = inlined_call_operand.hbm [shape: f32[144], index: 0, kind: input, shape index: {}]
  %s1 = inlined_call_operand.vmem [shape: f32[4], index: 1, kind: input, shape index: {}]
  %s2 = inlined_call_operand.vmem [shape: f32[2], index: 2, kind: input, shape index: {}]
  %s3 = inlined_call_operand.hbm [shape: f32[2,4,256], index: 3, kind: input, shape index: {}]
  %s4 = inlined_call_operand.hbm [shape: f32[2,4,256], index: 4, kind: output, shape index: {}]
  %s5 = sld [smem:[#allocation0]]
  $region65: #{tpu_custom_call.1} parent=0
    _
  %s7 = ssub.s32 1, %s5
  %s8 = scalar_select 0, %s7, %s5
  $region1: #{tpu_custom_call.1} parent=0
    #allocation2 [shape = 'u8[1024]{0}', space=smem, size = 0x400, scoped, tag = 'input window, operand 0, single buffered']
    #allocation3 [shape = 's32[2]{0}', space=sflag, size = 0x8, scoped, tag = 'scoped memory for tpu_custom_call.1']
    #allocation4 [shape = 's32[2]{0}', space=sflag, size = 0x8, scoped, tag = 'scoped memory for tpu_custom_call.1']
    #allocation5 [shape = 's32[2]{0}', space=sflag, size = 0x8, scoped, tag = 'scoped memory for tpu_custom_call.1']
    #allocation6 [shape = 's32[2]{0}', space=sflag, size = 0x8, scoped, tag = 'scoped memory for tpu_custom_call.1']
    #allocation7 [shape = 'u8[512]{0}', space=smem, size = 0x200, scoped, tag = 'input window, operand 1, single buffered']
    #allocation8 [shape = 'u8[512]{0}', space=smem, size = 0x200, scoped, tag = 'input window, operand 2, single buffered']
    #allocation9 [shape = 's32[1]{0}', space=sflag, size = 0x4, scoped, tag = 'scoped memory for tpu_custom_call.1']
    #allocation10 [shape = 'u8[8192]{0}', space=vmem, size = 0x2000, scoped, tag = 'input window, operand 3']
    #allocation11 [shape = 'u8[8192]{0}', space=vmem, size = 0x2000, scoped, tag = 'output window, operand 0']
    %9 = vsyncpa [#allocation5], 0
    %10 = vsyncpa [#allocation6], 0
    %11 = vsyncpa [#allocation9], 0
    %12 = vsyncpa [#allocation3], 0
    %s13 = scalar_lea.sflag [#allocation3], 1
    %14 = vsyncpa %s13, 0
    %15 = vsyncpa [#allocation4], 0
    %s16 = scalar_lea.sflag [#allocation4], 1
    %17 = vsyncpa %s16, 0
    loop: start=0, step=1, limit=4
    $region2: #{tpu_custom_call.1} parent=1 // loop_pre_header
      _
    $region3: #{tpu_custom_call.1} parent=1 // loop_header
      %s19 = sphi 0, %s23
      %p20 = scmp.ge.s32.totalorder %s19, 4
      %s27 = sphi 0, %s27
      %s29 = sphi 0, %s27
      %s30 = sphi 0, %s29
      %s44 = sphi 0, %s30
      %s48 = sphi 0, %s48
      %s50 = sphi 0, %s48
      %s51 = sphi 0, %s50
      %s65 = sphi 0, %s51
      %s69 = sphi 0, %s69
      %s71 = sphi 0, %s69
      %s72 = sphi 0, %s71
      %s86 = sphi 0, %s72
      %s92 = sphi 0, %s94
      %s95 = sphi 0, %s92
      %s96 = sphi 0, %s95
      %s112 = sphi 0, %s96
      %s118 = sphi 0, %s120
      %s121 = sphi 0, %s118
      %s122 = sphi 0, %s121
      %s138 = sphi 0, %s122
    $region4: #{tpu_custom_call.1} parent=1 // loop_header_branch
      %22 = sbr.rel (%p20) target = $region8
    $region5: #{tpu_custom_call.1} parent=1 // loop_body
      %s24 = ssub.s32 %s19, 1
      %s25 = ssub.s32 %s19, 2
      %s26 = sadd.s32 %s19, 1
      %s28 = sadd.s32 %s27, 1
      %p31 = scmp.eq.s32.totalorder %s19, 1
      %p32 = scmp.ne.s32.totalorder %s27, %s29
      %p33 = scmp.eq.s32.totalorder %s19, 0
      %p34 = por %p32, %p33
      %p35 = scmp.ne.s32.totalorder %s27, %s29
      %p36 = scmp.eq.s32.totalorder %s24, 1
      %p37 = por %p35, %p36
      %p38 = scmp.ne.s32.totalorder %s29, %s30
      %p39 = scmp.eq.s32.totalorder %s24, 0
      %p40 = por %p38, %p39
      %p41 = scmp.ne.s32.totalorder %s29, %s30
      %p42 = scmp.eq.s32.totalorder %s25, 1
      %p43 = por %p41, %p42
      %p45 = scmp.ne.s32.totalorder %s30, %s44
      %p46 = scmp.eq.s32.totalorder %s25, 0
      %p47 = por %p45, %p46
      %s49 = sadd.s32 %s48, 1
      %p52 = scmp.eq.s32.totalorder %s19, 1
      %p53 = scmp.ne.s32.totalorder %s48, %s50
      %p54 = scmp.eq.s32.totalorder %s19, 0
      %p55 = por %p53, %p54
      %p56 = scmp.ne.s32.totalorder %s48, %s50
      %p57 = scmp.eq.s32.totalorder %s24, 1
      %p58 = por %p56, %p57
      %p59 = scmp.ne.s32.totalorder %s50, %s51
      %p60 = scmp.eq.s32.totalorder %s24, 0
      %p61 = por %p59, %p60
      %p62 = scmp.ne.s32.totalorder %s50, %s51
      %p63 = scmp.eq.s32.totalorder %s25, 1
      %p64 = por %p62, %p63
      %p66 = scmp.ne.s32.totalorder %s51, %s65
      %p67 = scmp.eq.s32.totalorder %s25, 0
      %p68 = por %p66, %p67
      %s70 = sadd.s32 %s69, 1
      %p73 = scmp.eq.s32.totalorder %s19, 1
      %p74 = scmp.ne.s32.totalorder %s69, %s71
      %p75 = scmp.eq.s32.totalorder %s19, 0
      %p76 = por %p74, %p75
      %p77 = scmp.ne.s32.totalorder %s69, %s71
      %p78 = scmp.eq.s32.totalorder %s24, 1
      %p79 = por %p77, %p78
      %p80 = scmp.ne.s32.totalorder %s71, %s72
      %p81 = scmp.eq.s32.totalorder %s24, 0
      %p82 = por %p80, %p81
      %p83 = scmp.ne.s32.totalorder %s71, %s72
      %p84 = scmp.eq.s32.totalorder %s25, 1
      %p85 = por %p83, %p84
      %p87 = scmp.ne.s32.totalorder %s72, %s86
      %p88 = scmp.eq.s32.totalorder %s25, 0
      %p89 = por %p87, %p88
      %s90 = ssub.s32 %s19, %s26
      %p91 = scmp.eq.s32.totalorder %s90, 0
      %s93 = sadd.s32 %s92, 1
      %s94 = scalar_select %p91, %s92, %s93
      %p97 = pneg %p91
      %p98 = scmp.eq.s32.totalorder %s19, 1
      %p99 = por %p97, %p98
      %p100 = scmp.ne.s32.totalorder %s92, %s95
      %p101 = scmp.eq.s32.totalorder %s19, 0
      %p102 = por %p100, %p101
      %p103 = scmp.ne.s32.totalorder %s92, %s95
      %p104 = scmp.eq.s32.totalorder %s24, 1
      %p105 = por %p103, %p104
      %p106 = scmp.ne.s32.totalorder %s95, %s96
      %p107 = scmp.eq.s32.totalorder %s24, 0
      %p108 = por %p106, %p107
      %p109 = scmp.ne.s32.totalorder %s95, %s96
      %p110 = scmp.eq.s32.totalorder %s25, 1
      %p111 = por %p109, %p110
      %p113 = scmp.ne.s32.totalorder %s96, %s112
      %p114 = scmp.eq.s32.totalorder %s25, 0
      %p115 = por %p113, %p114
      %s116 = ssub.s32 %s19, %s26
      %p117 = scmp.eq.s32.totalorder %s116, 0
      %s119 = sadd.s32 %s118, 1
      %s120 = scalar_select %p117, %s118, %s119
      %p123 = pneg %p117
      %p124 = scmp.eq.s32.totalorder %s19, 1
      %p125 = por %p123, %p124
      %p126 = scmp.ne.s32.totalorder %s118, %s121
      %p127 = scmp.eq.s32.totalorder %s19, 0
      %p128 = por %p126, %p127
      %p129 = scmp.ne.s32.totalorder %s118, %s121
      %p130 = scmp.eq.s32.totalorder %s24, 1
      %p131 = por %p129, %p130
      %p132 = scmp.ne.s32.totalorder %s121, %s122
      %p133 = scmp.eq.s32.totalorder %s24, 0
      %p134 = por %p132, %p133
      %p135 = scmp.ne.s32.totalorder %s121, %s122
      %p136 = scmp.eq.s32.totalorder %s25, 1
      %p137 = por %p135, %p136
      %p139 = scmp.ne.s32.totalorder %s122, %s138
      %p140 = scmp.eq.s32.totalorder %s25, 0
      %p141 = por %p139, %p140
      %p142 = scmp.le.s32.totalorder 1, %s19
      %p143 = scmp.lt.s32.totalorder %s19, 3
      %p144 = pnand %p142, %p143
      %p145 = pneg %p144
      // Predicated region
      $region9: #{tpu_custom_call.1} parent=5 // pred_check
        _
      $region10: #{tpu_custom_call.1} parent=5 // pred_check_branch
        %147 = sbr.rel (%p144) target = $region12
      $region11: #{tpu_custom_call.1} parent=5 // pred_region
        %s148 = ssub.s32 %s19, 1
        // Predicated region
        $region13: #{tpu_custom_call.1} parent=11 // pred_check
          %p149 = pneg %p40
        $region14: #{tpu_custom_call.1} parent=11 // pred_check_branch
          %151 = sbr.rel (%p149) target = $region16
        $region15: #{tpu_custom_call.1} parent=11 // pred_region
          %s153 = ssub.s32 32, 32
          %154 = vsyncadd [#allocation5], %s153
          %157 = dma.hbm_to_smem %s0, 32, [#allocation2], [#allocation5]
        $region16: #{tpu_custom_call.1} parent=11 // pred_fallthru
          _
        // Predicated region
        $region17: #{tpu_custom_call.1} parent=11 // pred_check
          %p158 = pneg %p61
        $region18: #{tpu_custom_call.1} parent=11 // pred_check_branch
          %160 = sbr.rel (%p158) target = $region20
        $region19: #{tpu_custom_call.1} parent=11 // pred_region
          %s162 = ssub.s32 16, 16
          %163 = vsyncadd [#allocation6], %s162
          %s165 = sshll.u32 %s1, 4
          %s166 = int_to_ptr.vmem [resolvable:$true] %s165
          %168 = dma.vmem_to_smem %s166, 16, [#allocation7], [#allocation6]
        $region20: #{tpu_custom_call.1} parent=11 // pred_fallthru
          _
        // Predicated region
        $region21: #{tpu_custom_call.1} parent=11 // pred_check
          %p169 = pneg %p82
        $region22: #{tpu_custom_call.1} parent=11 // pred_check_branch
          %171 = sbr.rel (%p169) target = $region24
        $region23: #{tpu_custom_call.1} parent=11 // pred_region
          %s173 = ssub.s32 16, 16
          %174 = vsyncadd [#allocation9], %s173
          %s176 = sshll.u32 %s2, 4
          %s177 = int_to_ptr.vmem [resolvable:$true] %s176
          %179 = dma.vmem_to_smem %s177, 16, [#allocation8], [#allocation9]
        $region24: #{tpu_custom_call.1} parent=11 // pred_fallthru
          _
      $region12: #{tpu_custom_call.1} parent=5 // pred_fallthru
        _
      %p180 = scmp.lt.s32.totalorder %s19, 2
      // Predicated region
      $region25: #{tpu_custom_call.1} parent=5 // pred_check
        %p181 = pneg %p180
      $region26: #{tpu_custom_call.1} parent=5 // pred_check_branch
        %183 = sbr.rel (%p181) target = $region28
      $region27: #{tpu_custom_call.1} parent=5 // pred_region
        // Predicated region
        $region29: #{tpu_custom_call.1} parent=27 // pred_check
          %p184 = pneg %p102
        $region30: #{tpu_custom_call.1} parent=27 // pred_check_branch
          %186 = sbr.rel (%p184) target = $region32
        $region31: #{tpu_custom_call.1} parent=27 // pred_region
          %s187 = sand.u32 %s92, 1
          %s188 = scalar_lea.sflag [#allocation3], %s187
          %s189 = sand.u32 %s92, 1
          %s190 = smul.addr %s189, 8
          %s191 = scalar_lea.vmem [#allocation10], %s190
          %s193 = ssub.s32 128, 128
          %194 = vsyncadd %s188, %s193
          %s195 = smul.addr %s19, 2
          %s196 = smul.addr %s195, 64
          %s197 = scalar_lea.hbm %s3, %s196
          %s199 = sshll.u32 %s191, 4
          %s200 = int_to_ptr.vmem [resolvable:$true] %s199
          %202 = dma.hbm_to_vmem [thread:$0]  %s197, 128, %s200, %s188
        $region32: #{tpu_custom_call.1} parent=27 // pred_fallthru
          _
      $region28: #{tpu_custom_call.1} parent=5 // pred_fallthru
        _
      %p203 = scmp.le.s32.totalorder 1, %s19
      %p204 = scmp.lt.s32.totalorder %s19, 3
      %p205 = pnand %p203, %p204
      %p206 = pneg %p205
      // Predicated region
      $region33: #{tpu_custom_call.1} parent=5 // pred_check
        _
      $region34: #{tpu_custom_call.1} parent=5 // pred_check_branch
        %208 = sbr.rel (%p205) target = $region36
      $region35: #{tpu_custom_call.1} parent=5 // pred_region
        %s209 = ssub.s32 %s19, 1
        // Predicated region
        $region37: #{tpu_custom_call.1} parent=35 // pred_check
          %p210 = pneg %p40
        $region38: #{tpu_custom_call.1} parent=35 // pred_check_branch
          %212 = sbr.rel (%p210) target = $region40
        $region39: #{tpu_custom_call.1} parent=35 // pred_region
          %213 = dma.done [#allocation5], 32
        $region40: #{tpu_custom_call.1} parent=35 // pred_fallthru
          _
        // Predicated region
        $region41: #{tpu_custom_call.1} parent=35 // pred_check
          %p214 = pneg %p61
        $region42: #{tpu_custom_call.1} parent=35 // pred_check_branch
          %216 = sbr.rel (%p214) target = $region44
        $region43: #{tpu_custom_call.1} parent=35 // pred_region
          %217 = dma.done [#allocation6], 16
        $region44: #{tpu_custom_call.1} parent=35 // pred_fallthru
          _
        // Predicated region
        $region45: #{tpu_custom_call.1} parent=35 // pred_check
          %p218 = pneg %p82
        $region46: #{tpu_custom_call.1} parent=35 // pred_check_branch
          %220 = sbr.rel (%p218) target = $region48
        $region47: #{tpu_custom_call.1} parent=35 // pred_region
          %221 = dma.done [#allocation9], 16
        $region48: #{tpu_custom_call.1} parent=35 // pred_fallthru
          _
        %s222 = sand.u32 %s95, 1
        %s223 = scalar_lea.sflag [#allocation3], %s222
        %s224 = sand.u32 %s95, 1
        %s225 = smul.addr %s224, 8
        %s226 = scalar_lea.vmem [#allocation10], %s225
        // Predicated region
        $region49: #{tpu_custom_call.1} parent=35 // pred_check
          %p227 = pneg %p108
        $region50: #{tpu_custom_call.1} parent=35 // pred_check_branch
          %229 = sbr.rel (%p227) target = $region52
        $region51: #{tpu_custom_call.1} parent=35 // pred_region
          %230 = dma.done %s223, 128
        $region52: #{tpu_custom_call.1} parent=35 // pred_fallthru
          _
        %231 = sfence
        %p232 = pneg %p40
        %p233 = pneg %p37
        %p234 = pneg %p61
        %p235 = pneg %p58
        %p236 = pneg %p82
        %p237 = pneg %p79
        %s238 = sand.u32 %s95, 1
        %s239 = scalar_lea.sflag [#allocation3], %s238
        %s240 = sand.u32 %s95, 1
        %s241 = smul.addr %s240, 8
        %s242 = scalar_lea.vmem [#allocation10], %s241
        %p243 = pneg %p108
        %p244 = pneg %p105
        %p245 = pneg %p134
        %p246 = pneg %p131
        %s247 = sand.u32 %s121, 1
        %s248 = scalar_lea.sflag [#allocation4], %s247
        %s249 = sand.u32 %s121, 1
        %s250 = smul.addr %s249, 8
        %s251 = scalar_lea.vmem [#allocation11], %s250
        %v252 = vlaneseq
        %v253 = vand.u32 %v252, 127
        %v254 = vadd.s32 %v253, 128
        %vm255 = vcmp.lt.s32.totalorder %v253, 0
        %v256 = vsub.s32 0, %v253
        %v257 = vsel %vm255, %v256, %v253
        %v258 = vshrl.u32 %v257, 4
        %v259 = vand.u32 %v257, 15
        %v260 = vsub.s32 0, %v259
        %v261 = vsel %vm255, %v260, %v259
        %vm262 = vcmp.lt.s32.totalorder %v254, 0
        %v263 = vsub.s32 0, %v254
        %v264 = vsel %vm262, %v263, %v254
        %v265 = vshrl.u32 %v264, 4
        %v266 = vand.u32 %v264, 15
        %v267 = vsub.s32 0, %v266
        %v268 = vsel %vm262, %v267, %v266
        %vm269 = vcmp.ne.s32.totalorder %v261, 0
        %vm270 = vcmp.ne.s32.totalorder %v268, 0
        %vm271 = vcmp.lt.s32.totalorder %v261, 0
        %vm272 = vcmp.lt.s32.totalorder %v268, 0
        %vm273 = vmand %vm271, %vm269
        %vm274 = vmand %vm272, %vm270
        %v275 = vadd.s32 %v261, 16
        %v276 = vadd.s32 %v268, 16
        %v277 = vsel %vm273, %v275, %v261
        %v278 = vsel %vm274, %v276, %v268
        %vm279 = vcmp.ge.s32.totalorder %v277, 1
        %vm280 = vcmp.ge.s32.totalorder %v278, 1
        %vm281 = vcmp.le.s32.totalorder %v277, 14
        %vm282 = vcmp.le.s32.totalorder %v278, 14
        %v283 = vld [vmem:[%s226] ss:$4 sm:$0x3]
        %s284 = scalar_lea.vmem %s226, 1 [#allocation10]
        %v285 = vld [vmem:[%s284] ss:$4 sm:$0x3]
        %s286 = scalar_lea.vmem %s226, 2 [#allocation10]
        %v287 = vld [vmem:[%s286] ss:$4 sm:$0x3]
        %s288 = scalar_lea.vmem %s226, 3 [#allocation10]
        %v289 = vld [vmem:[%s288] ss:$4 sm:$0x3]
        %s290 = sld [smem:[#allocation7]]
        %v291 = vstv %s290
        %v292 = vadd.f32 %v291, 0.0
        %s293 = sld [smem:[#allocation7 + $0x1]]
        %v294 = vstv %s293
        %v295 = vadd.f32 %v294, 0.0
        %s296 = sld [smem:[#allocation7 + $0x2]]
        %v297 = vstv %s296
        %v298 = vadd.f32 %v297, 0.0
        %s299 = sld [smem:[#allocation7 + $0x3]]
        %v300 = vstv %s299
        %v301 = vadd.f32 %v300, 0.0
        %v306 = vlaneseq
        %v307 = vshrl.u32 %v306, 7
        %v308 = vsub.s32 0, %v307
        %v309 = vrot.slane %v283, %v308
        %v310 = vlaneseq
        %v311 = vshrl.u32 %v310, 7
        %v312 = vsub.s32 1, %v311
        %v313 = vrot.slane %v283, %v312
        %v314 = vlaneseq
        %v315 = vshrl.u32 %v314, 7
        %v316 = vsub.s32 0, %v315
        %v317 = vrot.slane %v285, %v316
        %v318 = vlaneseq
        %v319 = vshrl.u32 %v318, 7
        %v320 = vsub.s32 1, %v319
        %v321 = vrot.slane %v285, %v320
        %v322 = vlaneseq
        %v323 = vshrl.u32 %v322, 7
        %v324 = vsub.s32 0, %v323
        %v325 = vrot.slane %v287, %v324
        %v326 = vlaneseq
        %v327 = vshrl.u32 %v326, 7
        %v328 = vsub.s32 1, %v327
        %v329 = vrot.slane %v287, %v328
        %v330 = vlaneseq
        %v331 = vshrl.u32 %v330, 7
        %v332 = vsub.s32 0, %v331
        %v333 = vrot.slane %v289, %v332
        %v334 = vlaneseq
        %v335 = vshrl.u32 %v334, 7
        %v336 = vsub.s32 1, %v335
        %v337 = vrot.slane %v289, %v336
        %338 = vrot.lane.b32.xlu0 %v309, 17
        %v339 = vpop.permute.xlu0 %338
        %340 = vrot.lane.b32.xlu0 %v313, 17
        %v341 = vpop.permute.xlu0 %340
        %342 = vrot.lane.b32.xlu0 %v317, 17
        %v343 = vpop.permute.xlu0 %342
        %344 = vrot.lane.b32.xlu0 %v321, 17
        %v345 = vpop.permute.xlu0 %344
        %346 = vrot.lane.b32.xlu0 %v325, 17
        %v347 = vpop.permute.xlu0 %346
        %348 = vrot.lane.b32.xlu0 %v329, 17
        %v349 = vpop.permute.xlu0 %348
        %350 = vrot.lane.b32.xlu0 %v333, 17
        %v351 = vpop.permute.xlu0 %350
        %352 = vrot.lane.b32.xlu0 %v337, 17
        %v353 = vpop.permute.xlu0 %352
        %vm354 = vcmask 138240
        %v355 = vsel %vm354, %v339, %v341
        %v356 = vsel %vm354, %v343, %v345
        %v357 = vsel %vm354, %v347, %v349
        %v358 = vsel %vm354, %v351, %v353
        %v367 = vsel %vm354, 0.0, %v339
        %v368 = vsel %vm354, 0.0, %v343
        %v369 = vsel %vm354, 0.0, %v347
        %v370 = vsel %vm354, 0.0, %v351
        %v371 = vsel %vm279, 1, 0
        %v372 = vsel %vm280, 1, 0
        %vm373 = vcmp.eq.s32.totalorder %v371, 1
        %vm374 = vcmp.eq.s32.totalorder %v372, 1
        %v375 = vsel %vm373, %v367, 0.0
        %v376 = vsel %vm374, %v355, 0.0
        %v377 = vsel %vm373, %v368, 0.0
        %v378 = vsel %vm374, %v356, 0.0
        %v379 = vsel %vm373, %v369, 0.0
        %v380 = vsel %vm374, %v357, 0.0
        %v381 = vsel %vm373, %v370, 0.0
        %v382 = vsel %vm374, %v358, 0.0
        %s383 = sld [smem:[#allocation2]]
        %v384 = vstv %s383
        %v385 = vmul.f32 %v384, %v375
        %v386 = vmul.f32 %v384, %v376
        %v387 = vadd.f32 %v292, %v385
        %v388 = vadd.f32 %v292, %v386
        %s389 = sld [smem:[#allocation2 + $0x9]]
        %v390 = vstv %s389
        %v391 = vmul.f32 %v390, %v377
        %v392 = vmul.f32 %v390, %v378
        %v393 = vadd.f32 %v387, %v391
        %v394 = vadd.f32 %v388, %v392
        %s395 = sld [smem:[#allocation2 + $0x12]]
        %v396 = vstv %s395
        %v397 = vmul.f32 %v396, %v379
        %v398 = vmul.f32 %v396, %v380
        %v399 = vadd.f32 %v393, %v397
        %v400 = vadd.f32 %v394, %v398
        %s401 = sld [smem:[#allocation2 + $0x1b]]
        %v402 = vstv %s401
        %v403 = vmul.f32 %v402, %v381
        %v404 = vmul.f32 %v402, %v382
        %v405 = vadd.f32 %v399, %v403
        %v406 = vadd.f32 %v400, %v404
        %s407 = sld [smem:[#allocation2 + $0x24]]
        %v408 = vstv %s407
        %v409 = vmul.f32 %v408, %v375
        %v410 = vmul.f32 %v408, %v376
        %v411 = vadd.f32 %v295, %v409
        %v412 = vadd.f32 %v295, %v410
        %s413 = sld [smem:[#allocation2 + $0x2d]]
        %v414 = vstv %s413
        %v415 = vmul.f32 %v414, %v377
        %v416 = vmul.f32 %v414, %v378
        %v417 = vadd.f32 %v411, %v415
        %v418 = vadd.f32 %v412, %v416
        %s419 = sld [smem:[#allocation2 + $0x36]]
        %v420 = vstv %s419
        %v421 = vmul.f32 %v420, %v379
        %v422 = vmul.f32 %v420, %v380
        %v423 = vadd.f32 %v417, %v421
        %v424 = vadd.f32 %v418, %v422
        %s425 = sld [smem:[#allocation2 + $0x3f]]
        %v426 = vstv %s425
        %v427 = vmul.f32 %v426, %v381
        %v428 = vmul.f32 %v426, %v382
        %v429 = vadd.f32 %v423, %v427
        %v430 = vadd.f32 %v424, %v428
        %s431 = sld [smem:[#allocation2 + $0x48]]
        %v432 = vstv %s431
        %v433 = vmul.f32 %v432, %v375
        %v434 = vmul.f32 %v432, %v376
        %v435 = vadd.f32 %v298, %v433
        %v436 = vadd.f32 %v298, %v434
        %s437 = sld [smem:[#allocation2 + $0x51]]
        %v438 = vstv %s437
        %v439 = vmul.f32 %v438, %v377
        %v440 = vmul.f32 %v438, %v378
        %v441 = vadd.f32 %v435, %v439
        %v442 = vadd.f32 %v436, %v440
        %s443 = sld [smem:[#allocation2 + $0x5a]]
        %v444 = vstv %s443
        %v445 = vmul.f32 %v444, %v379
        %v446 = vmul.f32 %v444, %v380
        %v447 = vadd.f32 %v441, %v445
        %v448 = vadd.f32 %v442, %v446
        %s449 = sld [smem:[#allocation2 + $0x63]]
        %v450 = vstv %s449
        %v451 = vmul.f32 %v450, %v381
        %v452 = vmul.f32 %v450, %v382
        %v453 = vadd.f32 %v447, %v451
        %v454 = vadd.f32 %v448, %v452
        %s455 = sld [smem:[#allocation2 + $0x6c]]
        %v456 = vstv %s455
        %v457 = vmul.f32 %v456, %v375
        %v458 = vmul.f32 %v456, %v376
        %v459 = vadd.f32 %v301, %v457
        %v460 = vadd.f32 %v301, %v458
        %s461 = sld [smem:[#allocation2 + $0x75]]
        %v462 = vstv %s461
        %v463 = vmul.f32 %v462, %v377
        %v464 = vmul.f32 %v462, %v378
        %v465 = vadd.f32 %v459, %v463
        %v466 = vadd.f32 %v460, %v464
        %s467 = sld [smem:[#allocation2 + $0x7e]]
        %v468 = vstv %s467
        %v469 = vmul.f32 %v468, %v379
        %v470 = vmul.f32 %v468, %v380
        %v471 = vadd.f32 %v465, %v469
        %v472 = vadd.f32 %v466, %v470
        %s473 = sld [smem:[#allocation2 + $0x87]]
        %v474 = vstv %s473
        %v475 = vmul.f32 %v474, %v381
        %v476 = vmul.f32 %v474, %v382
        %v477 = vadd.f32 %v471, %v475
        %v478 = vadd.f32 %v472, %v476
        %479 = vrot.lane.b32.xlu0 %v309, 16
        %v480 = vpop.permute.xlu0 %479
        %481 = vrot.lane.b32.xlu0 %v313, 16
        %v482 = vpop.permute.xlu0 %481
        %483 = vrot.lane.b32.xlu0 %v317, 16
        %v484 = vpop.permute.xlu0 %483
        %485 = vrot.lane.b32.xlu0 %v321, 16
        %v486 = vpop.permute.xlu0 %485
        %487 = vrot.lane.b32.xlu0 %v325, 16
        %v488 = vpop.permute.xlu0 %487
        %489 = vrot.lane.b32.xlu0 %v329, 16
        %v490 = vpop.permute.xlu0 %489
        %491 = vrot.lane.b32.xlu0 %v333, 16
        %v492 = vpop.permute.xlu0 %491
        %493 = vrot.lane.b32.xlu0 %v337, 16
        %v494 = vpop.permute.xlu0 %493
        %vm495 = vcmask 130048
        %v496 = vsel %vm495, %v480, %v482
        %v497 = vsel %vm495, %v484, %v486
        %v498 = vsel %vm495, %v488, %v490
        %v499 = vsel %vm495, %v492, %v494
        %v508 = vsel %vm495, 0.0, %v480
        %v509 = vsel %vm495, 0.0, %v484
        %v510 = vsel %vm495, 0.0, %v488
        %v511 = vsel %vm495, 0.0, %v492
        %s512 = sld [smem:[#allocation2 + $0x1]]
        %v513 = vstv %s512
        %v514 = vmul.f32 %v513, %v508
        %v515 = vmul.f32 %v513, %v496
        %v516 = vadd.f32 %v405, %v514
        %v517 = vadd.f32 %v406, %v515
        %s518 = sld [smem:[#allocation2 + $0xa]]
        %v519 = vstv %s518
        %v520 = vmul.f32 %v519, %v509
        %v521 = vmul.f32 %v519, %v497
        %v522 = vadd.f32 %v516, %v520
        %v523 = vadd.f32 %v517, %v521
        %s524 = sld [smem:[#allocation2 + $0x13]]
        %v525 = vstv %s524
        %v526 = vmul.f32 %v525, %v510
        %v527 = vmul.f32 %v525, %v498
        %v528 = vadd.f32 %v522, %v526
        %v529 = vadd.f32 %v523, %v527
        %s530 = sld [smem:[#allocation2 + $0x1c]]
        %v531 = vstv %s530
        %v532 = vmul.f32 %v531, %v511
        %v533 = vmul.f32 %v531, %v499
        %v534 = vadd.f32 %v528, %v532
        %v535 = vadd.f32 %v529, %v533
        %s536 = sld [smem:[#allocation2 + $0x25]]
        %v537 = vstv %s536
        %v538 = vmul.f32 %v537, %v508
        %v539 = vmul.f32 %v537, %v496
        %v540 = vadd.f32 %v429, %v538
        %v541 = vadd.f32 %v430, %v539
        %s542 = sld [smem:[#allocation2 + $0x2e]]
        %v543 = vstv %s542
        %v544 = vmul.f32 %v543, %v509
        %v545 = vmul.f32 %v543, %v497
        %v546 = vadd.f32 %v540, %v544
        %v547 = vadd.f32 %v541, %v545
        %s548 = sld [smem:[#allocation2 + $0x37]]
        %v549 = vstv %s548
        %v550 = vmul.f32 %v549, %v510
        %v551 = vmul.f32 %v549, %v498
        %v552 = vadd.f32 %v546, %v550
        %v553 = vadd.f32 %v547, %v551
        %s554 = sld [smem:[#allocation2 + $0x40]]
        %v555 = vstv %s554
        %v556 = vmul.f32 %v555, %v511
        %v557 = vmul.f32 %v555, %v499
        %v558 = vadd.f32 %v552, %v556
        %v559 = vadd.f32 %v553, %v557
        %s560 = sld [smem:[#allocation2 + $0x49]]
        %v561 = vstv %s560
        %v562 = vmul.f32 %v561, %v508
        %v563 = vmul.f32 %v561, %v496
        %v564 = vadd.f32 %v453, %v562
        %v565 = vadd.f32 %v454, %v563
        %s566 = sld [smem:[#allocation2 + $0x52]]
        %v567 = vstv %s566
        %v568 = vmul.f32 %v567, %v509
        %v569 = vmul.f32 %v567, %v497
        %v570 = vadd.f32 %v564, %v568
        %v571 = vadd.f32 %v565, %v569
        %s572 = sld [smem:[#allocation2 + $0x5b]]
        %v573 = vstv %s572
        %v574 = vmul.f32 %v573, %v510
        %v575 = vmul.f32 %v573, %v498
        %v576 = vadd.f32 %v570, %v574
        %v577 = vadd.f32 %v571, %v575
        %s578 = sld [smem:[#allocation2 + $0x64]]
        %v579 = vstv %s578
        %v580 = vmul.f32 %v579, %v511
        %v581 = vmul.f32 %v579, %v499
        %v582 = vadd.f32 %v576, %v580
        %v583 = vadd.f32 %v577, %v581
        %s584 = sld [smem:[#allocation2 + $0x6d]]
        %v585 = vstv %s584
        %v586 = vmul.f32 %v585, %v508
        %v587 = vmul.f32 %v585, %v496
        %v588 = vadd.f32 %v477, %v586
        %v589 = vadd.f32 %v478, %v587
        %s590 = sld [smem:[#allocation2 + $0x76]]
        %v591 = vstv %s590
        %v592 = vmul.f32 %v591, %v509
        %v593 = vmul.f32 %v591, %v497
        %v594 = vadd.f32 %v588, %v592
        %v595 = vadd.f32 %v589, %v593
        %s596 = sld [smem:[#allocation2 + $0x7f]]
        %v597 = vstv %s596
        %v598 = vmul.f32 %v597, %v510
        %v599 = vmul.f32 %v597, %v498
        %v600 = vadd.f32 %v594, %v598
        %v601 = vadd.f32 %v595, %v599
        %s602 = sld [smem:[#allocation2 + $0x88]]
        %v603 = vstv %s602
        %v604 = vmul.f32 %v603, %v511
        %v605 = vmul.f32 %v603, %v499
        %v606 = vadd.f32 %v600, %v604
        %v607 = vadd.f32 %v601, %v605
        %608 = vrot.lane.b32.xlu0 %v309, 15
        %v609 = vpop.permute.xlu0 %608
        %610 = vrot.lane.b32.xlu0 %v313, 15
        %v611 = vpop.permute.xlu0 %610
        %612 = vrot.lane.b32.xlu0 %v317, 15
        %v613 = vpop.permute.xlu0 %612
        %614 = vrot.lane.b32.xlu0 %v321, 15
        %v615 = vpop.permute.xlu0 %614
        %616 = vrot.lane.b32.xlu0 %v325, 15
        %v617 = vpop.permute.xlu0 %616
        %618 = vrot.lane.b32.xlu0 %v329, 15
        %v619 = vpop.permute.xlu0 %618
        %620 = vrot.lane.b32.xlu0 %v333, 15
        %v621 = vpop.permute.xlu0 %620
        %622 = vrot.lane.b32.xlu0 %v337, 15
        %v623 = vpop.permute.xlu0 %622
        %vm624 = vcmask 121856
        %v625 = vsel %vm624, %v609, %v611
        %v626 = vsel %vm624, %v613, %v615
        %v627 = vsel %vm624, %v617, %v619
        %v628 = vsel %vm624, %v621, %v623
        %v637 = vsel %vm624, 0.0, %v609
        %v638 = vsel %vm624, 0.0, %v613
        %v639 = vsel %vm624, 0.0, %v617
        %v640 = vsel %vm624, 0.0, %v621
        %v641 = vsel %vm281, 1, 0
        %v642 = vsel %vm282, 1, 0
        %vm643 = vcmp.eq.s32.totalorder %v641, 1
        %vm644 = vcmp.eq.s32.totalorder %v642, 1
        %v645 = vsel %vm643, %v637, 0.0
        %v646 = vsel %vm644, %v625, 0.0
        %v647 = vsel %vm643, %v638, 0.0
        %v648 = vsel %vm644, %v626, 0.0
        %v649 = vsel %vm643, %v639, 0.0
        %v650 = vsel %vm644, %v627, 0.0
        %v651 = vsel %vm643, %v640, 0.0
        %v652 = vsel %vm644, %v628, 0.0
        %s653 = sld [smem:[#allocation2 + $0x2]]
        %v654 = vstv %s653
        %v655 = vmul.f32 %v654, %v645
        %v656 = vmul.f32 %v654, %v646
        %v657 = vadd.f32 %v534, %v655
        %v658 = vadd.f32 %v535, %v656
        %s659 = sld [smem:[#allocation2 + $0xb]]
        %v660 = vstv %s659
        %v661 = vmul.f32 %v660, %v647
        %v662 = vmul.f32 %v660, %v648
        %v663 = vadd.f32 %v657, %v661
        %v664 = vadd.f32 %v658, %v662
        %s665 = sld [smem:[#allocation2 + $0x14]]
        %v666 = vstv %s665
        %v667 = vmul.f32 %v666, %v649
        %v668 = vmul.f32 %v666, %v650
        %v669 = vadd.f32 %v663, %v667
        %v670 = vadd.f32 %v664, %v668
        %s671 = sld [smem:[#allocation2 + $0x1d]]
        %v672 = vstv %s671
        %v673 = vmul.f32 %v672, %v651
        %v674 = vmul.f32 %v672, %v652
        %v675 = vadd.f32 %v669, %v673
        %v676 = vadd.f32 %v670, %v674
        %s677 = sld [smem:[#allocation2 + $0x26]]
        %v678 = vstv %s677
        %v679 = vmul.f32 %v678, %v645
        %v680 = vmul.f32 %v678, %v646
        %v681 = vadd.f32 %v558, %v679
        %v682 = vadd.f32 %v559, %v680
        %s683 = sld [smem:[#allocation2 + $0x2f]]
        %v684 = vstv %s683
        %v685 = vmul.f32 %v684, %v647
        %v686 = vmul.f32 %v684, %v648
        %v687 = vadd.f32 %v681, %v685
        %v688 = vadd.f32 %v682, %v686
        %s689 = sld [smem:[#allocation2 + $0x38]]
        %v690 = vstv %s689
        %v691 = vmul.f32 %v690, %v649
        %v692 = vmul.f32 %v690, %v650
        %v693 = vadd.f32 %v687, %v691
        %v694 = vadd.f32 %v688, %v692
        %s695 = sld [smem:[#allocation2 + $0x41]]
        %v696 = vstv %s695
        %v697 = vmul.f32 %v696, %v651
        %v698 = vmul.f32 %v696, %v652
        %v699 = vadd.f32 %v693, %v697
        %v700 = vadd.f32 %v694, %v698
        %s701 = sld [smem:[#allocation2 + $0x4a]]
        %v702 = vstv %s701
        %v703 = vmul.f32 %v702, %v645
        %v704 = vmul.f32 %v702, %v646
        %v705 = vadd.f32 %v582, %v703
        %v706 = vadd.f32 %v583, %v704
        %s707 = sld [smem:[#allocation2 + $0x53]]
        %v708 = vstv %s707
        %v709 = vmul.f32 %v708, %v647
        %v710 = vmul.f32 %v708, %v648
        %v711 = vadd.f32 %v705, %v709
        %v712 = vadd.f32 %v706, %v710
        %s713 = sld [smem:[#allocation2 + $0x5c]]
        %v714 = vstv %s713
        %v715 = vmul.f32 %v714, %v649
        %v716 = vmul.f32 %v714, %v650
        %v717 = vadd.f32 %v711, %v715
        %v718 = vadd.f32 %v712, %v716
        %s719 = sld [smem:[#allocation2 + $0x65]]
        %v720 = vstv %s719
        %v721 = vmul.f32 %v720, %v651
        %v722 = vmul.f32 %v720, %v652
        %v723 = vadd.f32 %v717, %v721
        %v724 = vadd.f32 %v718, %v722
        %s725 = sld [smem:[#allocation2 + $0x6e]]
        %v726 = vstv %s725
        %v727 = vmul.f32 %v726, %v645
        %v728 = vmul.f32 %v726, %v646
        %v729 = vadd.f32 %v606, %v727
        %v730 = vadd.f32 %v607, %v728
        %s731 = sld [smem:[#allocation2 + $0x77]]
        %v732 = vstv %s731
        %v733 = vmul.f32 %v732, %v647
        %v734 = vmul.f32 %v732, %v648
        %v735 = vadd.f32 %v729, %v733
        %v736 = vadd.f32 %v730, %v734
        %s737 = sld [smem:[#allocation2 + $0x80]]
        %v738 = vstv %s737
        %v739 = vmul.f32 %v738, %v649
        %v740 = vmul.f32 %v738, %v650
        %v741 = vadd.f32 %v735, %v739
        %v742 = vadd.f32 %v736, %v740
        %s743 = sld [smem:[#allocation2 + $0x89]]
        %v744 = vstv %s743
        %v745 = vmul.f32 %v744, %v651
        %v746 = vmul.f32 %v744, %v652
        %v747 = vadd.f32 %v741, %v745
        %v748 = vadd.f32 %v742, %v746
        %749 = vrot.lane.b32.xlu0 %v309, 1
        %v750 = vpop.permute.xlu0 %749
        %751 = vrot.lane.b32.xlu0 %v313, 1
        %v752 = vpop.permute.xlu0 %751
        %753 = vrot.lane.b32.xlu0 %v317, 1
        %v754 = vpop.permute.xlu0 %753
        %755 = vrot.lane.b32.xlu0 %v321, 1
        %v756 = vpop.permute.xlu0 %755
        %757 = vrot.lane.b32.xlu0 %v325, 1
        %v758 = vpop.permute.xlu0 %757
        %759 = vrot.lane.b32.xlu0 %v329, 1
        %v760 = vpop.permute.xlu0 %759
        %761 = vrot.lane.b32.xlu0 %v333, 1
        %v762 = vpop.permute.xlu0 %761
        %763 = vrot.lane.b32.xlu0 %v337, 1
        %v764 = vpop.permute.xlu0 %763
        %vm765 = vcmask 7168
        %v766 = vsel %vm765, %v750, %v752
        %v767 = vsel %vm765, %v754, %v756
        %v768 = vsel %vm765, %v758, %v760
        %v769 = vsel %vm765, %v762, %v764
        %v778 = vsel %vm765, 0.0, %v750
        %v779 = vsel %vm765, 0.0, %v754
        %v780 = vsel %vm765, 0.0, %v758
        %v781 = vsel %vm765, 0.0, %v762
        %v782 = vsel %vm373, %v778, 0.0
        %v783 = vsel %vm374, %v766, 0.0
        %v784 = vsel %vm373, %v779, 0.0
        %v785 = vsel %vm374, %v767, 0.0
        %v786 = vsel %vm373, %v780, 0.0
        %v787 = vsel %vm374, %v768, 0.0
        %v788 = vsel %vm373, %v781, 0.0
        %v789 = vsel %vm374, %v769, 0.0
        %s790 = sld [smem:[#allocation2 + $0x3]]
        %v791 = vstv %s790
        %v792 = vmul.f32 %v791, %v782
        %v793 = vmul.f32 %v791, %v783
        %v794 = vadd.f32 %v675, %v792
        %v795 = vadd.f32 %v676, %v793
        %s796 = sld [smem:[#allocation2 + $0xc]]
        %v797 = vstv %s796
        %v798 = vmul.f32 %v797, %v784
        %v799 = vmul.f32 %v797, %v785
        %v800 = vadd.f32 %v794, %v798
        %v801 = vadd.f32 %v795, %v799
        %s802 = sld [smem:[#allocation2 + $0x15]]
        %v803 = vstv %s802
        %v804 = vmul.f32 %v803, %v786
        %v805 = vmul.f32 %v803, %v787
        %v806 = vadd.f32 %v800, %v804
        %v807 = vadd.f32 %v801, %v805
        %s808 = sld [smem:[#allocation2 + $0x1e]]
        %v809 = vstv %s808
        %v810 = vmul.f32 %v809, %v788
        %v811 = vmul.f32 %v809, %v789
        %v812 = vadd.f32 %v806, %v810
        %v813 = vadd.f32 %v807, %v811
        %s814 = sld [smem:[#allocation2 + $0x27]]
        %v815 = vstv %s814
        %v816 = vmul.f32 %v815, %v782
        %v817 = vmul.f32 %v815, %v783
        %v818 = vadd.f32 %v699, %v816
        %v819 = vadd.f32 %v700, %v817
        %s820 = sld [smem:[#allocation2 + $0x30]]
        %v821 = vstv %s820
        %v822 = vmul.f32 %v821, %v784
        %v823 = vmul.f32 %v821, %v785
        %v824 = vadd.f32 %v818, %v822
        %v825 = vadd.f32 %v819, %v823
        %s826 = sld [smem:[#allocation2 + $0x39]]
        %v827 = vstv %s826
        %v828 = vmul.f32 %v827, %v786
        %v829 = vmul.f32 %v827, %v787
        %v830 = vadd.f32 %v824, %v828
        %v831 = vadd.f32 %v825, %v829
        %s832 = sld [smem:[#allocation2 + $0x42]]
        %v833 = vstv %s832
        %v834 = vmul.f32 %v833, %v788
        %v835 = vmul.f32 %v833, %v789
        %v836 = vadd.f32 %v830, %v834
        %v837 = vadd.f32 %v831, %v835
        %s838 = sld [smem:[#allocation2 + $0x4b]]
        %v839 = vstv %s838
        %v840 = vmul.f32 %v839, %v782
        %v841 = vmul.f32 %v839, %v783
        %v842 = vadd.f32 %v723, %v840
        %v843 = vadd.f32 %v724, %v841
        %s844 = sld [smem:[#allocation2 + $0x54]]
        %v845 = vstv %s844
        %v846 = vmul.f32 %v845, %v784
        %v847 = vmul.f32 %v845, %v785
        %v848 = vadd.f32 %v842, %v846
        %v849 = vadd.f32 %v843, %v847
        %s850 = sld [smem:[#allocation2 + $0x5d]]
        %v851 = vstv %s850
        %v852 = vmul.f32 %v851, %v786
        %v853 = vmul.f32 %v851, %v787
        %v854 = vadd.f32 %v848, %v852
        %v855 = vadd.f32 %v849, %v853
        %s856 = sld [smem:[#allocation2 + $0x66]]
        %v857 = vstv %s856
        %v858 = vmul.f32 %v857, %v788
        %v859 = vmul.f32 %v857, %v789
        %v860 = vadd.f32 %v854, %v858
        %v861 = vadd.f32 %v855, %v859
        %s862 = sld [smem:[#allocation2 + $0x6f]]
        %v863 = vstv %s862
        %v864 = vmul.f32 %v863, %v782
        %v865 = vmul.f32 %v863, %v783
        %v866 = vadd.f32 %v747, %v864
        %v867 = vadd.f32 %v748, %v865
        %s868 = sld [smem:[#allocation2 + $0x78]]
        %v869 = vstv %s868
        %v870 = vmul.f32 %v869, %v784
        %v871 = vmul.f32 %v869, %v785
        %v872 = vadd.f32 %v866, %v870
        %v873 = vadd.f32 %v867, %v871
        %s874 = sld [smem:[#allocation2 + $0x81]]
        %v875 = vstv %s874
        %v876 = vmul.f32 %v875, %v786
        %v877 = vmul.f32 %v875, %v787
        %v878 = vadd.f32 %v872, %v876
        %v879 = vadd.f32 %v873, %v877
        %s880 = sld [smem:[#allocation2 + $0x8a]]
        %v881 = vstv %s880
        %v882 = vmul.f32 %v881, %v788
        %v883 = vmul.f32 %v881, %v789
        %v884 = vadd.f32 %v878, %v882
        %v885 = vadd.f32 %v879, %v883
        %s886 = sld [smem:[#allocation2 + $0x4]]
        %v887 = vstv %s886
        %v888 = vmul.f32 %v887, %v283
        %v890 = vlaneseq
        %v891 = vshrl.u32 %v890, 7
        %v892 = vsub.s32 0, %v891
        %v893 = vrot.slane %v888, %v892
        %v894 = vlaneseq
        %v895 = vshrl.u32 %v894, 7
        %v896 = vsub.s32 1, %v895
        %v897 = vrot.slane %v888, %v896
        %v900 = vadd.f32 %v812, %v893
        %v901 = vadd.f32 %v813, %v897
        %s902 = sld [smem:[#allocation2 + $0xd]]
        %v903 = vstv %s902
        %v904 = vmul.f32 %v903, %v285
        %v906 = vlaneseq
        %v907 = vshrl.u32 %v906, 7
        %v908 = vsub.s32 0, %v907
        %v909 = vrot.slane %v904, %v908
        %v910 = vlaneseq
        %v911 = vshrl.u32 %v910, 7
        %v912 = vsub.s32 1, %v911
        %v913 = vrot.slane %v904, %v912
        %v916 = vadd.f32 %v900, %v909
        %v917 = vadd.f32 %v901, %v913
        %s918 = sld [smem:[#allocation2 + $0x16]]
        %v919 = vstv %s918
        %v920 = vmul.f32 %v919, %v287
        %v922 = vlaneseq
        %v923 = vshrl.u32 %v922, 7
        %v924 = vsub.s32 0, %v923
        %v925 = vrot.slane %v920, %v924
        %v926 = vlaneseq
        %v927 = vshrl.u32 %v926, 7
        %v928 = vsub.s32 1, %v927
        %v929 = vrot.slane %v920, %v928
        %v932 = vadd.f32 %v916, %v925
        %v933 = vadd.f32 %v917, %v929
        %s934 = sld [smem:[#allocation2 + $0x1f]]
        %v935 = vstv %s934
        %v936 = vmul.f32 %v935, %v289
        %v938 = vlaneseq
        %v939 = vshrl.u32 %v938, 7
        %v940 = vsub.s32 0, %v939
        %v941 = vrot.slane %v936, %v940
        %v942 = vlaneseq
        %v943 = vshrl.u32 %v942, 7
        %v944 = vsub.s32 1, %v943
        %v945 = vrot.slane %v936, %v944
        %v948 = vadd.f32 %v932, %v941
        %v949 = vadd.f32 %v933, %v945
        %s950 = sld [smem:[#allocation2 + $0x28]]
        %v951 = vstv %s950
        %v952 = vmul.f32 %v951, %v283
        %v954 = vlaneseq
        %v955 = vshrl.u32 %v954, 7
        %v956 = vsub.s32 0, %v955
        %v957 = vrot.slane %v952, %v956
        %v958 = vlaneseq
        %v959 = vshrl.u32 %v958, 7
        %v960 = vsub.s32 1, %v959
        %v961 = vrot.slane %v952, %v960
        %v964 = vadd.f32 %v836, %v957
        %v965 = vadd.f32 %v837, %v961
        %s966 = sld [smem:[#allocation2 + $0x31]]
        %v967 = vstv %s966
        %v968 = vmul.f32 %v967, %v285
        %v970 = vlaneseq
        %v971 = vshrl.u32 %v970, 7
        %v972 = vsub.s32 0, %v971
        %v973 = vrot.slane %v968, %v972
        %v974 = vlaneseq
        %v975 = vshrl.u32 %v974, 7
        %v976 = vsub.s32 1, %v975
        %v977 = vrot.slane %v968, %v976
        %v980 = vadd.f32 %v964, %v973
        %v981 = vadd.f32 %v965, %v977
        %s982 = sld [smem:[#allocation2 + $0x3a]]
        %v983 = vstv %s982
        %v984 = vmul.f32 %v983, %v287
        %v986 = vlaneseq
        %v987 = vshrl.u32 %v986, 7
        %v988 = vsub.s32 0, %v987
        %v989 = vrot.slane %v984, %v988
        %v990 = vlaneseq
        %v991 = vshrl.u32 %v990, 7
        %v992 = vsub.s32 1, %v991
        %v993 = vrot.slane %v984, %v992
        %v996 = vadd.f32 %v980, %v989
        %v997 = vadd.f32 %v981, %v993
        %s998 = sld [smem:[#allocation2 + $0x43]]
        %v999 = vstv %s998
        %v1000 = vmul.f32 %v999, %v289
        %v1002 = vlaneseq
        %v1003 = vshrl.u32 %v1002, 7
        %v1004 = vsub.s32 0, %v1003
        %v1005 = vrot.slane %v1000, %v1004
        %v1006 = vlaneseq
        %v1007 = vshrl.u32 %v1006, 7
        %v1008 = vsub.s32 1, %v1007
        %v1009 = vrot.slane %v1000, %v1008
        %v1012 = vadd.f32 %v996, %v1005
        %v1013 = vadd.f32 %v997, %v1009
        %s1014 = sld [smem:[#allocation2 + $0x4c]]
        %v1015 = vstv %s1014
        %v1016 = vmul.f32 %v1015, %v283
        %v1018 = vlaneseq
        %v1019 = vshrl.u32 %v1018, 7
        %v1020 = vsub.s32 0, %v1019
        %v1021 = vrot.slane %v1016, %v1020
        %v1022 = vlaneseq
        %v1023 = vshrl.u32 %v1022, 7
        %v1024 = vsub.s32 1, %v1023
        %v1025 = vrot.slane %v1016, %v1024
        %v1028 = vadd.f32 %v860, %v1021
        %v1029 = vadd.f32 %v861, %v1025
        %s1030 = sld [smem:[#allocation2 + $0x55]]
        %v1031 = vstv %s1030
        %v1032 = vmul.f32 %v1031, %v285
        %v1034 = vlaneseq
        %v1035 = vshrl.u32 %v1034, 7
        %v1036 = vsub.s32 0, %v1035
        %v1037 = vrot.slane %v1032, %v1036
        %v1038 = vlaneseq
        %v1039 = vshrl.u32 %v1038, 7
        %v1040 = vsub.s32 1, %v1039
        %v1041 = vrot.slane %v1032, %v1040
        %v1044 = vadd.f32 %v1028, %v1037
        %v1045 = vadd.f32 %v1029, %v1041
        %s1046 = sld [smem:[#allocation2 + $0x5e]]
        %v1047 = vstv %s1046
        %v1048 = vmul.f32 %v1047, %v287
        %v1050 = vlaneseq
        %v1051 = vshrl.u32 %v1050, 7
        %v1052 = vsub.s32 0, %v1051
        %v1053 = vrot.slane %v1048, %v1052
        %v1054 = vlaneseq
        %v1055 = vshrl.u32 %v1054, 7
        %v1056 = vsub.s32 1, %v1055
        %v1057 = vrot.slane %v1048, %v1056
        %v1060 = vadd.f32 %v1044, %v1053
        %v1061 = vadd.f32 %v1045, %v1057
        %s1062 = sld [smem:[#allocation2 + $0x67]]
        %v1063 = vstv %s1062
        %v1064 = vmul.f32 %v1063, %v289
        %v1066 = vlaneseq
        %v1067 = vshrl.u32 %v1066, 7
        %v1068 = vsub.s32 0, %v1067
        %v1069 = vrot.slane %v1064, %v1068
        %v1070 = vlaneseq
        %v1071 = vshrl.u32 %v1070, 7
        %v1072 = vsub.s32 1, %v1071
        %v1073 = vrot.slane %v1064, %v1072
        %v1076 = vadd.f32 %v1060, %v1069
        %v1077 = vadd.f32 %v1061, %v1073
        %s1078 = sld [smem:[#allocation2 + $0x70]]
        %v1079 = vstv %s1078
        %v1080 = vmul.f32 %v1079, %v283
        %v1082 = vlaneseq
        %v1083 = vshrl.u32 %v1082, 7
        %v1084 = vsub.s32 0, %v1083
        %v1085 = vrot.slane %v1080, %v1084
        %v1086 = vlaneseq
        %v1087 = vshrl.u32 %v1086, 7
        %v1088 = vsub.s32 1, %v1087
        %v1089 = vrot.slane %v1080, %v1088
        %v1092 = vadd.f32 %v884, %v1085
        %v1093 = vadd.f32 %v885, %v1089
        %s1094 = sld [smem:[#allocation2 + $0x79]]
        %v1095 = vstv %s1094
        %v1096 = vmul.f32 %v1095, %v285
        %v1098 = vlaneseq
        %v1099 = vshrl.u32 %v1098, 7
        %v1100 = vsub.s32 0, %v1099
        %v1101 = vrot.slane %v1096, %v1100
        %v1102 = vlaneseq
        %v1103 = vshrl.u32 %v1102, 7
        %v1104 = vsub.s32 1, %v1103
        %v1105 = vrot.slane %v1096, %v1104
        %v1108 = vadd.f32 %v1092, %v1101
        %v1109 = vadd.f32 %v1093, %v1105
        %s1110 = sld [smem:[#allocation2 + $0x82]]
        %v1111 = vstv %s1110
        %v1112 = vmul.f32 %v1111, %v287
        %v1114 = vlaneseq
        %v1115 = vshrl.u32 %v1114, 7
        %v1116 = vsub.s32 0, %v1115
        %v1117 = vrot.slane %v1112, %v1116
        %v1118 = vlaneseq
        %v1119 = vshrl.u32 %v1118, 7
        %v1120 = vsub.s32 1, %v1119
        %v1121 = vrot.slane %v1112, %v1120
        %v1124 = vadd.f32 %v1108, %v1117
        %v1125 = vadd.f32 %v1109, %v1121
        %s1126 = sld [smem:[#allocation2 + $0x8b]]
        %v1127 = vstv %s1126
        %v1128 = vmul.f32 %v1127, %v289
        %v1130 = vlaneseq
        %v1131 = vshrl.u32 %v1130, 7
        %v1132 = vsub.s32 0, %v1131
        %v1133 = vrot.slane %v1128, %v1132
        %v1134 = vlaneseq
        %v1135 = vshrl.u32 %v1134, 7
        %v1136 = vsub.s32 1, %v1135
        %v1137 = vrot.slane %v1128, %v1136
        %v1140 = vadd.f32 %v1124, %v1133
        %v1141 = vadd.f32 %v1125, %v1137
        %1142 = vrot.lane.b32.xlu0 %v309, 127
        %v1143 = vpop.permute.xlu0 %1142
        %1144 = vrot.lane.b32.xlu0 %v313, 127
        %v1145 = vpop.permute.xlu0 %1144
        %1146 = vrot.lane.b32.xlu0 %v317, 127
        %v1147 = vpop.permute.xlu0 %1146
        %1148 = vrot.lane.b32.xlu0 %v321, 127
        %v1149 = vpop.permute.xlu0 %1148
        %1150 = vrot.lane.b32.xlu0 %v325, 127
        %v1151 = vpop.permute.xlu0 %1150
        %1152 = vrot.lane.b32.xlu0 %v329, 127
        %v1153 = vpop.permute.xlu0 %1152
        %1154 = vrot.lane.b32.xlu0 %v333, 127
        %v1155 = vpop.permute.xlu0 %1154
        %1156 = vrot.lane.b32.xlu0 %v337, 127
        %v1157 = vpop.permute.xlu0 %1156
        %vm1158 = vcmask 1039360
        %v1159 = vsel %vm1158, %v1143, %v1145
        %v1160 = vsel %vm1158, %v1147, %v1149
        %v1161 = vsel %vm1158, %v1151, %v1153
        %v1162 = vsel %vm1158, %v1155, %v1157
        %v1171 = vsel %vm1158, %v1145, 0.0
        %v1172 = vsel %vm1158, %v1149, 0.0
        %v1173 = vsel %vm1158, %v1153, 0.0
        %v1174 = vsel %vm1158, %v1157, 0.0
        %v1175 = vsel %vm643, %v1159, 0.0
        %v1176 = vsel %vm644, %v1171, 0.0
        %v1177 = vsel %vm643, %v1160, 0.0
        %v1178 = vsel %vm644, %v1172, 0.0
        %v1179 = vsel %vm643, %v1161, 0.0
        %v1180 = vsel %vm644, %v1173, 0.0
        %v1181 = vsel %vm643, %v1162, 0.0
        %v1182 = vsel %vm644, %v1174, 0.0
        %s1183 = sld [smem:[#allocation2 + $0x5]]
        %v1184 = vstv %s1183
        %v1185 = vmul.f32 %v1184, %v1175
        %v1186 = vmul.f32 %v1184, %v1176
        %v1187 = vadd.f32 %v948, %v1185
        %v1188 = vadd.f32 %v949, %v1186
        %s1189 = sld [smem:[#allocation2 + $0xe]]
        %v1190 = vstv %s1189
        %v1191 = vmul.f32 %v1190, %v1177
        %v1192 = vmul.f32 %v1190, %v1178
        %v1193 = vadd.f32 %v1187, %v1191
        %v1194 = vadd.f32 %v1188, %v1192
        %s1195 = sld [smem:[#allocation2 + $0x17]]
        %v1196 = vstv %s1195
        %v1197 = vmul.f32 %v1196, %v1179
        %v1198 = vmul.f32 %v1196, %v1180
        %v1199 = vadd.f32 %v1193, %v1197
        %v1200 = vadd.f32 %v1194, %v1198
        %s1201 = sld [smem:[#allocation2 + $0x20]]
        %v1202 = vstv %s1201
        %v1203 = vmul.f32 %v1202, %v1181
        %v1204 = vmul.f32 %v1202, %v1182
        %v1205 = vadd.f32 %v1199, %v1203
        %v1206 = vadd.f32 %v1200, %v1204
        %s1207 = sld [smem:[#allocation2 + $0x29]]
        %v1208 = vstv %s1207
        %v1209 = vmul.f32 %v1208, %v1175
        %v1210 = vmul.f32 %v1208, %v1176
        %v1211 = vadd.f32 %v1012, %v1209
        %v1212 = vadd.f32 %v1013, %v1210
        %s1213 = sld [smem:[#allocation2 + $0x32]]
        %v1214 = vstv %s1213
        %v1215 = vmul.f32 %v1214, %v1177
        %v1216 = vmul.f32 %v1214, %v1178
        %v1217 = vadd.f32 %v1211, %v1215
        %v1218 = vadd.f32 %v1212, %v1216
        %s1219 = sld [smem:[#allocation2 + $0x3b]]
        %v1220 = vstv %s1219
        %v1221 = vmul.f32 %v1220, %v1179
        %v1222 = vmul.f32 %v1220, %v1180
        %v1223 = vadd.f32 %v1217, %v1221
        %v1224 = vadd.f32 %v1218, %v1222
        %s1225 = sld [smem:[#allocation2 + $0x44]]
        %v1226 = vstv %s1225
        %v1227 = vmul.f32 %v1226, %v1181
        %v1228 = vmul.f32 %v1226, %v1182
        %v1229 = vadd.f32 %v1223, %v1227
        %v1230 = vadd.f32 %v1224, %v1228
        %s1231 = sld [smem:[#allocation2 + $0x4d]]
        %v1232 = vstv %s1231
        %v1233 = vmul.f32 %v1232, %v1175
        %v1234 = vmul.f32 %v1232, %v1176
        %v1235 = vadd.f32 %v1076, %v1233
        %v1236 = vadd.f32 %v1077, %v1234
        %s1237 = sld [smem:[#allocation2 + $0x56]]
        %v1238 = vstv %s1237
        %v1239 = vmul.f32 %v1238, %v1177
        %v1240 = vmul.f32 %v1238, %v1178
        %v1241 = vadd.f32 %v1235, %v1239
        %v1242 = vadd.f32 %v1236, %v1240
        %s1243 = sld [smem:[#allocation2 + $0x5f]]
        %v1244 = vstv %s1243
        %v1245 = vmul.f32 %v1244, %v1179
        %v1246 = vmul.f32 %v1244, %v1180
        %v1247 = vadd.f32 %v1241, %v1245
        %v1248 = vadd.f32 %v1242, %v1246
        %s1249 = sld [smem:[#allocation2 + $0x68]]
        %v1250 = vstv %s1249
        %v1251 = vmul.f32 %v1250, %v1181
        %v1252 = vmul.f32 %v1250, %v1182
        %v1253 = vadd.f32 %v1247, %v1251
        %v1254 = vadd.f32 %v1248, %v1252
        %s1255 = sld [smem:[#allocation2 + $0x71]]
        %v1256 = vstv %s1255
        %v1257 = vmul.f32 %v1256, %v1175
        %v1258 = vmul.f32 %v1256, %v1176
        %v1259 = vadd.f32 %v1140, %v1257
        %v1260 = vadd.f32 %v1141, %v1258
        %s1261 = sld [smem:[#allocation2 + $0x7a]]
        %v1262 = vstv %s1261
        %v1263 = vmul.f32 %v1262, %v1177
        %v1264 = vmul.f32 %v1262, %v1178
        %v1265 = vadd.f32 %v1259, %v1263
        %v1266 = vadd.f32 %v1260, %v1264
        %s1267 = sld [smem:[#allocation2 + $0x83]]
        %v1268 = vstv %s1267
        %v1269 = vmul.f32 %v1268, %v1179
        %v1270 = vmul.f32 %v1268, %v1180
        %v1271 = vadd.f32 %v1265, %v1269
        %v1272 = vadd.f32 %v1266, %v1270
        %s1273 = sld [smem:[#allocation2 + $0x8c]]
        %v1274 = vstv %s1273
        %v1275 = vmul.f32 %v1274, %v1181
        %v1276 = vmul.f32 %v1274, %v1182
        %v1277 = vadd.f32 %v1271, %v1275
        %v1278 = vadd.f32 %v1272, %v1276
        %1279 = vrot.lane.b32.xlu0 %v309, 113
        %v1280 = vpop.permute.xlu0 %1279
        %1281 = vrot.lane.b32.xlu0 %v313, 113
        %v1282 = vpop.permute.xlu0 %1281
        %1283 = vrot.lane.b32.xlu0 %v317, 113
        %v1284 = vpop.permute.xlu0 %1283
        %1285 = vrot.lane.b32.xlu0 %v321, 113
        %v1286 = vpop.permute.xlu0 %1285
        %1287 = vrot.lane.b32.xlu0 %v325, 113
        %v1288 = vpop.permute.xlu0 %1287
        %1289 = vrot.lane.b32.xlu0 %v329, 113
        %v1290 = vpop.permute.xlu0 %1289
        %1291 = vrot.lane.b32.xlu0 %v333, 113
        %v1292 = vpop.permute.xlu0 %1291
        %1293 = vrot.lane.b32.xlu0 %v337, 113
        %v1294 = vpop.permute.xlu0 %1293
        %vm1295 = vcmask 924672
        %v1296 = vsel %vm1295, %v1280, %v1282
        %v1297 = vsel %vm1295, %v1284, %v1286
        %v1298 = vsel %vm1295, %v1288, %v1290
        %v1299 = vsel %vm1295, %v1292, %v1294
        %v1308 = vsel %vm1295, %v1282, 0.0
        %v1309 = vsel %vm1295, %v1286, 0.0
        %v1310 = vsel %vm1295, %v1290, 0.0
        %v1311 = vsel %vm1295, %v1294, 0.0
        %v1312 = vsel %vm373, %v1296, 0.0
        %v1313 = vsel %vm374, %v1308, 0.0
        %v1314 = vsel %vm373, %v1297, 0.0
        %v1315 = vsel %vm374, %v1309, 0.0
        %v1316 = vsel %vm373, %v1298, 0.0
        %v1317 = vsel %vm374, %v1310, 0.0
        %v1318 = vsel %vm373, %v1299, 0.0
        %v1319 = vsel %vm374, %v1311, 0.0
        %s1320 = sld [smem:[#allocation2 + $0x6]]
        %v1321 = vstv %s1320
        %v1322 = vmul.f32 %v1321, %v1312
        %v1323 = vmul.f32 %v1321, %v1313
        %v1324 = vadd.f32 %v1205, %v1322
        %v1325 = vadd.f32 %v1206, %v1323
        %s1326 = sld [smem:[#allocation2 + $0xf]]
        %v1327 = vstv %s1326
        %v1328 = vmul.f32 %v1327, %v1314
        %v1329 = vmul.f32 %v1327, %v1315
        %v1330 = vadd.f32 %v1324, %v1328
        %v1331 = vadd.f32 %v1325, %v1329
        %s1332 = sld [smem:[#allocation2 + $0x18]]
        %v1333 = vstv %s1332
        %v1334 = vmul.f32 %v1333, %v1316
        %v1335 = vmul.f32 %v1333, %v1317
        %v1336 = vadd.f32 %v1330, %v1334
        %v1337 = vadd.f32 %v1331, %v1335
        %s1338 = sld [smem:[#allocation2 + $0x21]]
        %v1339 = vstv %s1338
        %v1340 = vmul.f32 %v1339, %v1318
        %v1341 = vmul.f32 %v1339, %v1319
        %v1342 = vadd.f32 %v1336, %v1340
        %v1343 = vadd.f32 %v1337, %v1341
        %s1344 = sld [smem:[#allocation2 + $0x2a]]
        %v1345 = vstv %s1344
        %v1346 = vmul.f32 %v1345, %v1312
        %v1347 = vmul.f32 %v1345, %v1313
        %v1348 = vadd.f32 %v1229, %v1346
        %v1349 = vadd.f32 %v1230, %v1347
        %s1350 = sld [smem:[#allocation2 + $0x33]]
        %v1351 = vstv %s1350
        %v1352 = vmul.f32 %v1351, %v1314
        %v1353 = vmul.f32 %v1351, %v1315
        %v1354 = vadd.f32 %v1348, %v1352
        %v1355 = vadd.f32 %v1349, %v1353
        %s1356 = sld [smem:[#allocation2 + $0x3c]]
        %v1357 = vstv %s1356
        %v1358 = vmul.f32 %v1357, %v1316
        %v1359 = vmul.f32 %v1357, %v1317
        %v1360 = vadd.f32 %v1354, %v1358
        %v1361 = vadd.f32 %v1355, %v1359
        %s1362 = sld [smem:[#allocation2 + $0x45]]
        %v1363 = vstv %s1362
        %v1364 = vmul.f32 %v1363, %v1318
        %v1365 = vmul.f32 %v1363, %v1319
        %v1366 = vadd.f32 %v1360, %v1364
        %v1367 = vadd.f32 %v1361, %v1365
        %s1368 = sld [smem:[#allocation2 + $0x4e]]
        %v1369 = vstv %s1368
        %v1370 = vmul.f32 %v1369, %v1312
        %v1371 = vmul.f32 %v1369, %v1313
        %v1372 = vadd.f32 %v1253, %v1370
        %v1373 = vadd.f32 %v1254, %v1371
        %s1374 = sld [smem:[#allocation2 + $0x57]]
        %v1375 = vstv %s1374
        %v1376 = vmul.f32 %v1375, %v1314
        %v1377 = vmul.f32 %v1375, %v1315
        %v1378 = vadd.f32 %v1372, %v1376
        %v1379 = vadd.f32 %v1373, %v1377
        %s1380 = sld [smem:[#allocation2 + $0x60]]
        %v1381 = vstv %s1380
        %v1382 = vmul.f32 %v1381, %v1316
        %v1383 = vmul.f32 %v1381, %v1317
        %v1384 = vadd.f32 %v1378, %v1382
        %v1385 = vadd.f32 %v1379, %v1383
        %s1386 = sld [smem:[#allocation2 + $0x69]]
        %v1387 = vstv %s1386
        %v1388 = vmul.f32 %v1387, %v1318
        %v1389 = vmul.f32 %v1387, %v1319
        %v1390 = vadd.f32 %v1384, %v1388
        %v1391 = vadd.f32 %v1385, %v1389
        %s1392 = sld [smem:[#allocation2 + $0x72]]
        %v1393 = vstv %s1392
        %v1394 = vmul.f32 %v1393, %v1312
        %v1395 = vmul.f32 %v1393, %v1313
        %v1396 = vadd.f32 %v1277, %v1394
        %v1397 = vadd.f32 %v1278, %v1395
        %s1398 = sld [smem:[#allocation2 + $0x7b]]
        %v1399 = vstv %s1398
        %v1400 = vmul.f32 %v1399, %v1314
        %v1401 = vmul.f32 %v1399, %v1315
        %v1402 = vadd.f32 %v1396, %v1400
        %v1403 = vadd.f32 %v1397, %v1401
        %s1404 = sld [smem:[#allocation2 + $0x84]]
        %v1405 = vstv %s1404
        %v1406 = vmul.f32 %v1405, %v1316
        %v1407 = vmul.f32 %v1405, %v1317
        %v1408 = vadd.f32 %v1402, %v1406
        %v1409 = vadd.f32 %v1403, %v1407
        %s1410 = sld [smem:[#allocation2 + $0x8d]]
        %v1411 = vstv %s1410
        %v1412 = vmul.f32 %v1411, %v1318
        %v1413 = vmul.f32 %v1411, %v1319
        %v1414 = vadd.f32 %v1408, %v1412
        %v1415 = vadd.f32 %v1409, %v1413
        %1416 = vrot.lane.b32.xlu0 %v309, 112
        %v1417 = vpop.permute.xlu0 %1416
        %1418 = vrot.lane.b32.xlu0 %v313, 112
        %v1419 = vpop.permute.xlu0 %1418
        %1420 = vrot.lane.b32.xlu0 %v317, 112
        %v1421 = vpop.permute.xlu0 %1420
        %1422 = vrot.lane.b32.xlu0 %v321, 112
        %v1423 = vpop.permute.xlu0 %1422
        %1424 = vrot.lane.b32.xlu0 %v325, 112
        %v1425 = vpop.permute.xlu0 %1424
        %1426 = vrot.lane.b32.xlu0 %v329, 112
        %v1427 = vpop.permute.xlu0 %1426
        %1428 = vrot.lane.b32.xlu0 %v333, 112
        %v1429 = vpop.permute.xlu0 %1428
        %1430 = vrot.lane.b32.xlu0 %v337, 112
        %v1431 = vpop.permute.xlu0 %1430
        %vm1432 = vcmask 916480
        %v1433 = vsel %vm1432, %v1417, %v1419
        %v1434 = vsel %vm1432, %v1421, %v1423
        %v1435 = vsel %vm1432, %v1425, %v1427
        %v1436 = vsel %vm1432, %v1429, %v1431
        %v1445 = vsel %vm1432, %v1419, 0.0
        %v1446 = vsel %vm1432, %v1423, 0.0
        %v1447 = vsel %vm1432, %v1427, 0.0
        %v1448 = vsel %vm1432, %v1431, 0.0
        %s1449 = sld [smem:[#allocation2 + $0x7]]
        %v1450 = vstv %s1449
        %v1451 = vmul.f32 %v1450, %v1433
        %v1452 = vmul.f32 %v1450, %v1445
        %v1453 = vadd.f32 %v1342, %v1451
        %v1454 = vadd.f32 %v1343, %v1452
        %s1455 = sld [smem:[#allocation2 + $0x10]]
        %v1456 = vstv %s1455
        %v1457 = vmul.f32 %v1456, %v1434
        %v1458 = vmul.f32 %v1456, %v1446
        %v1459 = vadd.f32 %v1453, %v1457
        %v1460 = vadd.f32 %v1454, %v1458
        %s1461 = sld [smem:[#allocation2 + $0x19]]
        %v1462 = vstv %s1461
        %v1463 = vmul.f32 %v1462, %v1435
        %v1464 = vmul.f32 %v1462, %v1447
        %v1465 = vadd.f32 %v1459, %v1463
        %v1466 = vadd.f32 %v1460, %v1464
        %s1467 = sld [smem:[#allocation2 + $0x22]]
        %v1468 = vstv %s1467
        %v1469 = vmul.f32 %v1468, %v1436
        %v1470 = vmul.f32 %v1468, %v1448
        %v1471 = vadd.f32 %v1465, %v1469
        %v1472 = vadd.f32 %v1466, %v1470
        %s1473 = sld [smem:[#allocation2 + $0x2b]]
        %v1474 = vstv %s1473
        %v1475 = vmul.f32 %v1474, %v1433
        %v1476 = vmul.f32 %v1474, %v1445
        %v1477 = vadd.f32 %v1366, %v1475
        %v1478 = vadd.f32 %v1367, %v1476
        %s1479 = sld [smem:[#allocation2 + $0x34]]
        %v1480 = vstv %s1479
        %v1481 = vmul.f32 %v1480, %v1434
        %v1482 = vmul.f32 %v1480, %v1446
        %v1483 = vadd.f32 %v1477, %v1481
        %v1484 = vadd.f32 %v1478, %v1482
        %s1485 = sld [smem:[#allocation2 + $0x3d]]
        %v1486 = vstv %s1485
        %v1487 = vmul.f32 %v1486, %v1435
        %v1488 = vmul.f32 %v1486, %v1447
        %v1489 = vadd.f32 %v1483, %v1487
        %v1490 = vadd.f32 %v1484, %v1488
        %s1491 = sld [smem:[#allocation2 + $0x46]]
        %v1492 = vstv %s1491
        %v1493 = vmul.f32 %v1492, %v1436
        %v1494 = vmul.f32 %v1492, %v1448
        %v1495 = vadd.f32 %v1489, %v1493
        %v1496 = vadd.f32 %v1490, %v1494
        %s1497 = sld [smem:[#allocation2 + $0x4f]]
        %v1498 = vstv %s1497
        %v1499 = vmul.f32 %v1498, %v1433
        %v1500 = vmul.f32 %v1498, %v1445
        %v1501 = vadd.f32 %v1390, %v1499
        %v1502 = vadd.f32 %v1391, %v1500
        %s1503 = sld [smem:[#allocation2 + $0x58]]
        %v1504 = vstv %s1503
        %v1505 = vmul.f32 %v1504, %v1434
        %v1506 = vmul.f32 %v1504, %v1446
        %v1507 = vadd.f32 %v1501, %v1505
        %v1508 = vadd.f32 %v1502, %v1506
        %s1509 = sld [smem:[#allocation2 + $0x61]]
        %v1510 = vstv %s1509
        %v1511 = vmul.f32 %v1510, %v1435
        %v1512 = vmul.f32 %v1510, %v1447
        %v1513 = vadd.f32 %v1507, %v1511
        %v1514 = vadd.f32 %v1508, %v1512
        %s1515 = sld [smem:[#allocation2 + $0x6a]]
        %v1516 = vstv %s1515
        %v1517 = vmul.f32 %v1516, %v1436
        %v1518 = vmul.f32 %v1516, %v1448
        %v1519 = vadd.f32 %v1513, %v1517
        %v1520 = vadd.f32 %v1514, %v1518
        %s1521 = sld [smem:[#allocation2 + $0x73]]
        %v1522 = vstv %s1521
        %v1523 = vmul.f32 %v1522, %v1433
        %v1524 = vmul.f32 %v1522, %v1445
        %v1525 = vadd.f32 %v1414, %v1523
        %v1526 = vadd.f32 %v1415, %v1524
        %s1527 = sld [smem:[#allocation2 + $0x7c]]
        %v1528 = vstv %s1527
        %v1529 = vmul.f32 %v1528, %v1434
        %v1530 = vmul.f32 %v1528, %v1446
        %v1531 = vadd.f32 %v1525, %v1529
        %v1532 = vadd.f32 %v1526, %v1530
        %s1533 = sld [smem:[#allocation2 + $0x85]]
        %v1534 = vstv %s1533
        %v1535 = vmul.f32 %v1534, %v1435
        %v1536 = vmul.f32 %v1534, %v1447
        %v1537 = vadd.f32 %v1531, %v1535
        %v1538 = vadd.f32 %v1532, %v1536
        %s1539 = sld [smem:[#allocation2 + $0x8e]]
        %v1540 = vstv %s1539
        %v1541 = vmul.f32 %v1540, %v1436
        %v1542 = vmul.f32 %v1540, %v1448
        %v1543 = vadd.f32 %v1537, %v1541
        %v1544 = vadd.f32 %v1538, %v1542
        %1545 = vrot.lane.b32.xlu0 %v309, 111
        %v1546 = vpop.permute.xlu0 %1545
        %1547 = vrot.lane.b32.xlu0 %v313, 111
        %v1548 = vpop.permute.xlu0 %1547
        %1549 = vrot.lane.b32.xlu0 %v317, 111
        %v1550 = vpop.permute.xlu0 %1549
        %1551 = vrot.lane.b32.xlu0 %v321, 111
        %v1552 = vpop.permute.xlu0 %1551
        %1553 = vrot.lane.b32.xlu0 %v325, 111
        %v1554 = vpop.permute.xlu0 %1553
        %1555 = vrot.lane.b32.xlu0 %v329, 111
        %v1556 = vpop.permute.xlu0 %1555
        %1557 = vrot.lane.b32.xlu0 %v333, 111
        %v1558 = vpop.permute.xlu0 %1557
        %1559 = vrot.lane.b32.xlu0 %v337, 111
        %v1560 = vpop.permute.xlu0 %1559
        %vm1561 = vcmask 908288
        %v1562 = vsel %vm1561, %v1546, %v1548
        %v1563 = vsel %vm1561, %v1550, %v1552
        %v1564 = vsel %vm1561, %v1554, %v1556
        %v1565 = vsel %vm1561, %v1558, %v1560
        %v1574 = vsel %vm1561, %v1548, 0.0
        %v1575 = vsel %vm1561, %v1552, 0.0
        %v1576 = vsel %vm1561, %v1556, 0.0
        %v1577 = vsel %vm1561, %v1560, 0.0
        %v1578 = vsel %vm643, %v1562, 0.0
        %v1579 = vsel %vm644, %v1574, 0.0
        %v1580 = vsel %vm643, %v1563, 0.0
        %v1581 = vsel %vm644, %v1575, 0.0
        %v1582 = vsel %vm643, %v1564, 0.0
        %v1583 = vsel %vm644, %v1576, 0.0
        %v1584 = vsel %vm643, %v1565, 0.0
        %v1585 = vsel %vm644, %v1577, 0.0
        %s1586 = sld [smem:[#allocation2 + $0x8]]
        %v1587 = vstv %s1586
        %v1588 = vmul.f32 %v1587, %v1578
        %v1589 = vmul.f32 %v1587, %v1579
        %v1590 = vadd.f32 %v1471, %v1588
        %v1591 = vadd.f32 %v1472, %v1589
        %s1592 = sld [smem:[#allocation2 + $0x11]]
        %v1593 = vstv %s1592
        %v1594 = vmul.f32 %v1593, %v1580
        %v1595 = vmul.f32 %v1593, %v1581
        %v1596 = vadd.f32 %v1590, %v1594
        %v1597 = vadd.f32 %v1591, %v1595
        %s1598 = sld [smem:[#allocation2 + $0x1a]]
        %v1599 = vstv %s1598
        %v1600 = vmul.f32 %v1599, %v1582
        %v1601 = vmul.f32 %v1599, %v1583
        %v1602 = vadd.f32 %v1596, %v1600
        %v1603 = vadd.f32 %v1597, %v1601
        %s1604 = sld [smem:[#allocation2 + $0x23]]
        %v1605 = vstv %s1604
        %v1606 = vmul.f32 %v1605, %v1584
        %v1607 = vmul.f32 %v1605, %v1585
        %v1608 = vadd.f32 %v1602, %v1606
        %v1609 = vadd.f32 %v1603, %v1607
        %s1610 = sld [smem:[#allocation2 + $0x2c]]
        %v1611 = vstv %s1610
        %v1612 = vmul.f32 %v1611, %v1578
        %v1613 = vmul.f32 %v1611, %v1579
        %v1614 = vadd.f32 %v1495, %v1612
        %v1615 = vadd.f32 %v1496, %v1613
        %s1616 = sld [smem:[#allocation2 + $0x35]]
        %v1617 = vstv %s1616
        %v1618 = vmul.f32 %v1617, %v1580
        %v1619 = vmul.f32 %v1617, %v1581
        %v1620 = vadd.f32 %v1614, %v1618
        %v1621 = vadd.f32 %v1615, %v1619
        %s1622 = sld [smem:[#allocation2 + $0x3e]]
        %v1623 = vstv %s1622
        %v1624 = vmul.f32 %v1623, %v1582
        %v1625 = vmul.f32 %v1623, %v1583
        %v1626 = vadd.f32 %v1620, %v1624
        %v1627 = vadd.f32 %v1621, %v1625
        %s1628 = sld [smem:[#allocation2 + $0x47]]
        %v1629 = vstv %s1628
        %v1630 = vmul.f32 %v1629, %v1584
        %v1631 = vmul.f32 %v1629, %v1585
        %v1632 = vadd.f32 %v1626, %v1630
        %v1633 = vadd.f32 %v1627, %v1631
        %s1634 = sld [smem:[#allocation2 + $0x50]]
        %v1635 = vstv %s1634
        %v1636 = vmul.f32 %v1635, %v1578
        %v1637 = vmul.f32 %v1635, %v1579
        %v1638 = vadd.f32 %v1519, %v1636
        %v1639 = vadd.f32 %v1520, %v1637
        %s1640 = sld [smem:[#allocation2 + $0x59]]
        %v1641 = vstv %s1640
        %v1642 = vmul.f32 %v1641, %v1580
        %v1643 = vmul.f32 %v1641, %v1581
        %v1644 = vadd.f32 %v1638, %v1642
        %v1645 = vadd.f32 %v1639, %v1643
        %s1646 = sld [smem:[#allocation2 + $0x62]]
        %v1647 = vstv %s1646
        %v1648 = vmul.f32 %v1647, %v1582
        %v1649 = vmul.f32 %v1647, %v1583
        %v1650 = vadd.f32 %v1644, %v1648
        %v1651 = vadd.f32 %v1645, %v1649
        %s1652 = sld [smem:[#allocation2 + $0x6b]]
        %v1653 = vstv %s1652
        %v1654 = vmul.f32 %v1653, %v1584
        %v1655 = vmul.f32 %v1653, %v1585
        %v1656 = vadd.f32 %v1650, %v1654
        %v1657 = vadd.f32 %v1651, %v1655
        %s1658 = sld [smem:[#allocation2 + $0x74]]
        %v1659 = vstv %s1658
        %v1660 = vmul.f32 %v1659, %v1578
        %v1661 = vmul.f32 %v1659, %v1579
        %v1662 = vadd.f32 %v1543, %v1660
        %v1663 = vadd.f32 %v1544, %v1661
        %s1664 = sld [smem:[#allocation2 + $0x7d]]
        %v1665 = vstv %s1664
        %v1666 = vmul.f32 %v1665, %v1580
        %v1667 = vmul.f32 %v1665, %v1581
        %v1668 = vadd.f32 %v1662, %v1666
        %v1669 = vadd.f32 %v1663, %v1667
        %s1670 = sld [smem:[#allocation2 + $0x86]]
        %v1671 = vstv %s1670
        %v1672 = vmul.f32 %v1671, %v1582
        %v1673 = vmul.f32 %v1671, %v1583
        %v1674 = vadd.f32 %v1668, %v1672
        %v1675 = vadd.f32 %v1669, %v1673
        %s1676 = sld [smem:[#allocation2 + $0x8f]]
        %v1677 = vstv %s1676
        %v1678 = vmul.f32 %v1677, %v1584
        %v1679 = vmul.f32 %v1677, %v1585
        %v1680 = vadd.f32 %v1674, %v1678
        %v1681 = vadd.f32 %v1675, %v1679
        %1690 = vrot.lane.b32.xlu0 %v1608, 17
        %v1691 = vpop.permute.xlu0 %1690
        %1692 = vrot.lane.b32.xlu0 %v1609, 17
        %v1693 = vpop.permute.xlu0 %1692
        %1694 = vrot.lane.b32.xlu0 %v1632, 17
        %v1695 = vpop.permute.xlu0 %1694
        %1696 = vrot.lane.b32.xlu0 %v1633, 17
        %v1697 = vpop.permute.xlu0 %1696
        %1698 = vrot.lane.b32.xlu0 %v1656, 17
        %v1699 = vpop.permute.xlu0 %1698
        %1700 = vrot.lane.b32.xlu0 %v1657, 17
        %v1701 = vpop.permute.xlu0 %1700
        %1702 = vrot.lane.b32.xlu0 %v1680, 17
        %v1703 = vpop.permute.xlu0 %1702
        %1704 = vrot.lane.b32.xlu0 %v1681, 17
        %v1705 = vpop.permute.xlu0 %1704
        %v1706 = vsel %vm354, %v1691, %v1693
        %v1707 = vsel %vm354, %v1695, %v1697
        %v1708 = vsel %vm354, %v1699, %v1701
        %v1709 = vsel %vm354, %v1703, %v1705
        %v1718 = vsel %vm354, 0.0, %v1691
        %v1719 = vsel %vm354, 0.0, %v1695
        %v1720 = vsel %vm354, 0.0, %v1699
        %v1721 = vsel %vm354, 0.0, %v1703
        %v1722 = vsel %vm373, %v1718, 0.0
        %v1723 = vsel %vm374, %v1706, 0.0
        %v1724 = vsel %vm373, %v1719, 0.0
        %v1725 = vsel %vm374, %v1707, 0.0
        %v1726 = vsel %vm373, %v1720, 0.0
        %v1727 = vsel %vm374, %v1708, 0.0
        %v1728 = vsel %vm373, %v1721, 0.0
        %v1729 = vsel %vm374, %v1709, 0.0
        %v1730 = vmul.f32 %v1722, -1.0
        %v1731 = vmul.f32 %v1723, -1.0
        %v1732 = vmul.f32 %v1724, -1.0
        %v1733 = vmul.f32 %v1725, -1.0
        %v1734 = vmul.f32 %v1726, -1.0
        %v1735 = vmul.f32 %v1727, -1.0
        %v1736 = vmul.f32 %v1728, -1.0
        %v1737 = vmul.f32 %v1729, -1.0
        %v1738 = vadd.f32 %v1730, 0.0
        %v1739 = vadd.f32 %v1731, 0.0
        %v1740 = vadd.f32 %v1732, 0.0
        %v1741 = vadd.f32 %v1733, 0.0
        %v1742 = vadd.f32 %v1734, 0.0
        %v1743 = vadd.f32 %v1735, 0.0
        %v1744 = vadd.f32 %v1736, 0.0
        %v1745 = vadd.f32 %v1737, 0.0
        %v1746 = vmul.f32 %v1722, -2.0
        %v1747 = vmul.f32 %v1723, -2.0
        %v1748 = vmul.f32 %v1724, -2.0
        %v1749 = vmul.f32 %v1725, -2.0
        %v1750 = vmul.f32 %v1726, -2.0
        %v1751 = vmul.f32 %v1727, -2.0
        %v1752 = vmul.f32 %v1728, -2.0
        %v1753 = vmul.f32 %v1729, -2.0
        %v1754 = vadd.f32 %v1746, 0.0
        %v1755 = vadd.f32 %v1747, 0.0
        %v1756 = vadd.f32 %v1748, 0.0
        %v1757 = vadd.f32 %v1749, 0.0
        %v1758 = vadd.f32 %v1750, 0.0
        %v1759 = vadd.f32 %v1751, 0.0
        %v1760 = vadd.f32 %v1752, 0.0
        %v1761 = vadd.f32 %v1753, 0.0
        %1762 = vrot.lane.b32.xlu0 %v1608, 16
        %v1763 = vpop.permute.xlu0 %1762
        %1764 = vrot.lane.b32.xlu0 %v1609, 16
        %v1765 = vpop.permute.xlu0 %1764
        %1766 = vrot.lane.b32.xlu0 %v1632, 16
        %v1767 = vpop.permute.xlu0 %1766
        %1768 = vrot.lane.b32.xlu0 %v1633, 16
        %v1769 = vpop.permute.xlu0 %1768
        %1770 = vrot.lane.b32.xlu0 %v1656, 16
        %v1771 = vpop.permute.xlu0 %1770
        %1772 = vrot.lane.b32.xlu0 %v1657, 16
        %v1773 = vpop.permute.xlu0 %1772
        %1774 = vrot.lane.b32.xlu0 %v1680, 16
        %v1775 = vpop.permute.xlu0 %1774
        %1776 = vrot.lane.b32.xlu0 %v1681, 16
        %v1777 = vpop.permute.xlu0 %1776
        %v1778 = vsel %vm495, %v1763, %v1765
        %v1779 = vsel %vm495, %v1767, %v1769
        %v1780 = vsel %vm495, %v1771, %v1773
        %v1781 = vsel %vm495, %v1775, %v1777
        %v1790 = vsel %vm495, 0.0, %v1763
        %v1791 = vsel %vm495, 0.0, %v1767
        %v1792 = vsel %vm495, 0.0, %v1771
        %v1793 = vsel %vm495, 0.0, %v1775
        %v1794 = vmul.f32 %v1790, -2.0
        %v1795 = vmul.f32 %v1778, -2.0
        %v1796 = vmul.f32 %v1791, -2.0
        %v1797 = vmul.f32 %v1779, -2.0
        %v1798 = vmul.f32 %v1792, -2.0
        %v1799 = vmul.f32 %v1780, -2.0
        %v1800 = vmul.f32 %v1793, -2.0
        %v1801 = vmul.f32 %v1781, -2.0
        %v1802 = vadd.f32 %v1738, %v1794
        %v1803 = vadd.f32 %v1739, %v1795
        %v1804 = vadd.f32 %v1740, %v1796
        %v1805 = vadd.f32 %v1741, %v1797
        %v1806 = vadd.f32 %v1742, %v1798
        %v1807 = vadd.f32 %v1743, %v1799
        %v1808 = vadd.f32 %v1744, %v1800
        %v1809 = vadd.f32 %v1745, %v1801
        %v1810 = vmul.f32 %v1790, -1.0
        %v1811 = vmul.f32 %v1778, -1.0
        %v1812 = vmul.f32 %v1791, -1.0
        %v1813 = vmul.f32 %v1779, -1.0
        %v1814 = vmul.f32 %v1792, -1.0
        %v1815 = vmul.f32 %v1780, -1.0
        %v1816 = vmul.f32 %v1793, -1.0
        %v1817 = vmul.f32 %v1781, -1.0
        %v1818 = vadd.f32 %v1754, %v1810
        %v1819 = vadd.f32 %v1755, %v1811
        %v1820 = vadd.f32 %v1756, %v1812
        %v1821 = vadd.f32 %v1757, %v1813
        %v1822 = vadd.f32 %v1758, %v1814
        %v1823 = vadd.f32 %v1759, %v1815
        %v1824 = vadd.f32 %v1760, %v1816
        %v1825 = vadd.f32 %v1761, %v1817
        %v1826 = vadd.f32 %v1790, 0.0
        %v1827 = vadd.f32 %v1778, 0.0
        %v1828 = vadd.f32 %v1791, 0.0
        %v1829 = vadd.f32 %v1779, 0.0
        %v1830 = vadd.f32 %v1792, 0.0
        %v1831 = vadd.f32 %v1780, 0.0
        %v1832 = vadd.f32 %v1793, 0.0
        %v1833 = vadd.f32 %v1781, 0.0
        %1834 = vrot.lane.b32.xlu0 %v1608, 15
        %v1835 = vpop.permute.xlu0 %1834
        %1836 = vrot.lane.b32.xlu0 %v1609, 15
        %v1837 = vpop.permute.xlu0 %1836
        %1838 = vrot.lane.b32.xlu0 %v1632, 15
        %v1839 = vpop.permute.xlu0 %1838
        %1840 = vrot.lane.b32.xlu0 %v1633, 15
        %v1841 = vpop.permute.xlu0 %1840
        %1842 = vrot.lane.b32.xlu0 %v1656, 15
        %v1843 = vpop.permute.xlu0 %1842
        %1844 = vrot.lane.b32.xlu0 %v1657, 15
        %v1845 = vpop.permute.xlu0 %1844
        %1846 = vrot.lane.b32.xlu0 %v1680, 15
        %v1847 = vpop.permute.xlu0 %1846
        %1848 = vrot.lane.b32.xlu0 %v1681, 15
        %v1849 = vpop.permute.xlu0 %1848
        %v1850 = vsel %vm624, %v1835, %v1837
        %v1851 = vsel %vm624, %v1839, %v1841
        %v1852 = vsel %vm624, %v1843, %v1845
        %v1853 = vsel %vm624, %v1847, %v1849
        %v1862 = vsel %vm624, 0.0, %v1835
        %v1863 = vsel %vm624, 0.0, %v1839
        %v1864 = vsel %vm624, 0.0, %v1843
        %v1865 = vsel %vm624, 0.0, %v1847
        %v1866 = vsel %vm643, %v1862, 0.0
        %v1867 = vsel %vm644, %v1850, 0.0
        %v1868 = vsel %vm643, %v1863, 0.0
        %v1869 = vsel %vm644, %v1851, 0.0
        %v1870 = vsel %vm643, %v1864, 0.0
        %v1871 = vsel %vm644, %v1852, 0.0
        %v1872 = vsel %vm643, %v1865, 0.0
        %v1873 = vsel %vm644, %v1853, 0.0
        %v1874 = vadd.f32 %v1738, %v1866
        %v1875 = vadd.f32 %v1739, %v1867
        %v1876 = vadd.f32 %v1740, %v1868
        %v1877 = vadd.f32 %v1741, %v1869
        %v1878 = vadd.f32 %v1742, %v1870
        %v1879 = vadd.f32 %v1743, %v1871
        %v1880 = vadd.f32 %v1744, %v1872
        %v1881 = vadd.f32 %v1745, %v1873
        %v1882 = vmul.f32 %v1866, -1.0
        %v1883 = vmul.f32 %v1867, -1.0
        %v1884 = vmul.f32 %v1868, -1.0
        %v1885 = vmul.f32 %v1869, -1.0
        %v1886 = vmul.f32 %v1870, -1.0
        %v1887 = vmul.f32 %v1871, -1.0
        %v1888 = vmul.f32 %v1872, -1.0
        %v1889 = vmul.f32 %v1873, -1.0
        %v1890 = vadd.f32 %v1802, %v1882
        %v1891 = vadd.f32 %v1803, %v1883
        %v1892 = vadd.f32 %v1804, %v1884
        %v1893 = vadd.f32 %v1805, %v1885
        %v1894 = vadd.f32 %v1806, %v1886
        %v1895 = vadd.f32 %v1807, %v1887
        %v1896 = vadd.f32 %v1808, %v1888
        %v1897 = vadd.f32 %v1809, %v1889
        %v1898 = vmul.f32 %v1866, 2.0
        %v1899 = vmul.f32 %v1867, 2.0
        %v1900 = vmul.f32 %v1868, 2.0
        %v1901 = vmul.f32 %v1869, 2.0
        %v1902 = vmul.f32 %v1870, 2.0
        %v1903 = vmul.f32 %v1871, 2.0
        %v1904 = vmul.f32 %v1872, 2.0
        %v1905 = vmul.f32 %v1873, 2.0
        %v1906 = vadd.f32 %v1826, %v1898
        %v1907 = vadd.f32 %v1827, %v1899
        %v1908 = vadd.f32 %v1828, %v1900
        %v1909 = vadd.f32 %v1829, %v1901
        %v1910 = vadd.f32 %v1830, %v1902
        %v1911 = vadd.f32 %v1831, %v1903
        %v1912 = vadd.f32 %v1832, %v1904
        %v1913 = vadd.f32 %v1833, %v1905
        %1914 = vrot.lane.b32.xlu0 %v1608, 1
        %v1915 = vpop.permute.xlu0 %1914
        %1916 = vrot.lane.b32.xlu0 %v1609, 1
        %v1917 = vpop.permute.xlu0 %1916
        %1918 = vrot.lane.b32.xlu0 %v1632, 1
        %v1919 = vpop.permute.xlu0 %1918
        %1920 = vrot.lane.b32.xlu0 %v1633, 1
        %v1921 = vpop.permute.xlu0 %1920
        %1922 = vrot.lane.b32.xlu0 %v1656, 1
        %v1923 = vpop.permute.xlu0 %1922
        %1924 = vrot.lane.b32.xlu0 %v1657, 1
        %v1925 = vpop.permute.xlu0 %1924
        %1926 = vrot.lane.b32.xlu0 %v1680, 1
        %v1927 = vpop.permute.xlu0 %1926
        %1928 = vrot.lane.b32.xlu0 %v1681, 1
        %v1929 = vpop.permute.xlu0 %1928
        %v1930 = vsel %vm765, %v1915, %v1917
        %v1931 = vsel %vm765, %v1919, %v1921
        %v1932 = vsel %vm765, %v1923, %v1925
        %v1933 = vsel %vm765, %v1927, %v1929
        %v1942 = vsel %vm765, 0.0, %v1915
        %v1943 = vsel %vm765, 0.0, %v1919
        %v1944 = vsel %vm765, 0.0, %v1923
        %v1945 = vsel %vm765, 0.0, %v1927
        %v1946 = vsel %vm373, %v1942, 0.0
        %v1947 = vsel %vm374, %v1930, 0.0
        %v1948 = vsel %vm373, %v1943, 0.0
        %v1949 = vsel %vm374, %v1931, 0.0
        %v1950 = vsel %vm373, %v1944, 0.0
        %v1951 = vsel %vm374, %v1932, 0.0
        %v1952 = vsel %vm373, %v1945, 0.0
        %v1953 = vsel %vm374, %v1933, 0.0
        %v1954 = vmul.f32 %v1946, -2.0
        %v1955 = vmul.f32 %v1947, -2.0
        %v1956 = vmul.f32 %v1948, -2.0
        %v1957 = vmul.f32 %v1949, -2.0
        %v1958 = vmul.f32 %v1950, -2.0
        %v1959 = vmul.f32 %v1951, -2.0
        %v1960 = vmul.f32 %v1952, -2.0
        %v1961 = vmul.f32 %v1953, -2.0
        %v1962 = vadd.f32 %v1874, %v1954
        %v1963 = vadd.f32 %v1875, %v1955
        %v1964 = vadd.f32 %v1876, %v1956
        %v1965 = vadd.f32 %v1877, %v1957
        %v1966 = vadd.f32 %v1878, %v1958
        %v1967 = vadd.f32 %v1879, %v1959
        %v1968 = vadd.f32 %v1880, %v1960
        %v1969 = vadd.f32 %v1881, %v1961
        %v1970 = vmul.f32 %v1946, -1.0
        %v1971 = vmul.f32 %v1947, -1.0
        %v1972 = vmul.f32 %v1948, -1.0
        %v1973 = vmul.f32 %v1949, -1.0
        %v1974 = vmul.f32 %v1950, -1.0
        %v1975 = vmul.f32 %v1951, -1.0
        %v1976 = vmul.f32 %v1952, -1.0
        %v1977 = vmul.f32 %v1953, -1.0
        %v1978 = vadd.f32 %v1818, %v1970
        %v1979 = vadd.f32 %v1819, %v1971
        %v1980 = vadd.f32 %v1820, %v1972
        %v1981 = vadd.f32 %v1821, %v1973
        %v1982 = vadd.f32 %v1822, %v1974
        %v1983 = vadd.f32 %v1823, %v1975
        %v1984 = vadd.f32 %v1824, %v1976
        %v1985 = vadd.f32 %v1825, %v1977
        %v1986 = vadd.f32 %v1906, %v1970
        %v1987 = vadd.f32 %v1907, %v1971
        %v1988 = vadd.f32 %v1908, %v1972
        %v1989 = vadd.f32 %v1909, %v1973
        %v1990 = vadd.f32 %v1910, %v1974
        %v1991 = vadd.f32 %v1911, %v1975
        %v1992 = vadd.f32 %v1912, %v1976
        %v1993 = vadd.f32 %v1913, %v1977
        %1994 = vrot.lane.b32.xlu0 %v1608, 127
        %v1995 = vpop.permute.xlu0 %1994
        %1996 = vrot.lane.b32.xlu0 %v1609, 127
        %v1997 = vpop.permute.xlu0 %1996
        %1998 = vrot.lane.b32.xlu0 %v1632, 127
        %v1999 = vpop.permute.xlu0 %1998
        %2000 = vrot.lane.b32.xlu0 %v1633, 127
        %v2001 = vpop.permute.xlu0 %2000
        %2002 = vrot.lane.b32.xlu0 %v1656, 127
        %v2003 = vpop.permute.xlu0 %2002
        %2004 = vrot.lane.b32.xlu0 %v1657, 127
        %v2005 = vpop.permute.xlu0 %2004
        %2006 = vrot.lane.b32.xlu0 %v1680, 127
        %v2007 = vpop.permute.xlu0 %2006
        %2008 = vrot.lane.b32.xlu0 %v1681, 127
        %v2009 = vpop.permute.xlu0 %2008
        %v2010 = vsel %vm1158, %v1995, %v1997
        %v2011 = vsel %vm1158, %v1999, %v2001
        %v2012 = vsel %vm1158, %v2003, %v2005
        %v2013 = vsel %vm1158, %v2007, %v2009
        %v2022 = vsel %vm1158, %v1997, 0.0
        %v2023 = vsel %vm1158, %v2001, 0.0
        %v2024 = vsel %vm1158, %v2005, 0.0
        %v2025 = vsel %vm1158, %v2009, 0.0
        %v2026 = vsel %vm643, %v2010, 0.0
        %v2027 = vsel %vm644, %v2022, 0.0
        %v2028 = vsel %vm643, %v2011, 0.0
        %v2029 = vsel %vm644, %v2023, 0.0
        %v2030 = vsel %vm643, %v2012, 0.0
        %v2031 = vsel %vm644, %v2024, 0.0
        %v2032 = vsel %vm643, %v2013, 0.0
        %v2033 = vsel %vm644, %v2025, 0.0
        %v2034 = vmul.f32 %v2026, 2.0
        %v2035 = vmul.f32 %v2027, 2.0
        %v2036 = vmul.f32 %v2028, 2.0
        %v2037 = vmul.f32 %v2029, 2.0
        %v2038 = vmul.f32 %v2030, 2.0
        %v2039 = vmul.f32 %v2031, 2.0
        %v2040 = vmul.f32 %v2032, 2.0
        %v2041 = vmul.f32 %v2033, 2.0
        %v2042 = vadd.f32 %v1962, %v2034
        %v2043 = vadd.f32 %v1963, %v2035
        %v2044 = vadd.f32 %v1964, %v2036
        %v2045 = vadd.f32 %v1965, %v2037
        %v2046 = vadd.f32 %v1966, %v2038
        %v2047 = vadd.f32 %v1967, %v2039
        %v2048 = vadd.f32 %v1968, %v2040
        %v2049 = vadd.f32 %v1969, %v2041
        %v2050 = vadd.f32 %v1978, %v2026
        %v2051 = vadd.f32 %v1979, %v2027
        %v2052 = vadd.f32 %v1980, %v2028
        %v2053 = vadd.f32 %v1981, %v2029
        %v2054 = vadd.f32 %v1982, %v2030
        %v2055 = vadd.f32 %v1983, %v2031
        %v2056 = vadd.f32 %v1984, %v2032
        %v2057 = vadd.f32 %v1985, %v2033
        %v2058 = vadd.f32 %v1986, %v2026
        %v2059 = vadd.f32 %v1987, %v2027
        %v2060 = vadd.f32 %v1988, %v2028
        %v2061 = vadd.f32 %v1989, %v2029
        %v2062 = vadd.f32 %v1990, %v2030
        %v2063 = vadd.f32 %v1991, %v2031
        %v2064 = vadd.f32 %v1992, %v2032
        %v2065 = vadd.f32 %v1993, %v2033
        %2066 = vrot.lane.b32.xlu0 %v1608, 113
        %v2067 = vpop.permute.xlu0 %2066
        %2068 = vrot.lane.b32.xlu0 %v1609, 113
        %v2069 = vpop.permute.xlu0 %2068
        %2070 = vrot.lane.b32.xlu0 %v1632, 113
        %v2071 = vpop.permute.xlu0 %2070
        %2072 = vrot.lane.b32.xlu0 %v1633, 113
        %v2073 = vpop.permute.xlu0 %2072
        %2074 = vrot.lane.b32.xlu0 %v1656, 113
        %v2075 = vpop.permute.xlu0 %2074
        %2076 = vrot.lane.b32.xlu0 %v1657, 113
        %v2077 = vpop.permute.xlu0 %2076
        %2078 = vrot.lane.b32.xlu0 %v1680, 113
        %v2079 = vpop.permute.xlu0 %2078
        %2080 = vrot.lane.b32.xlu0 %v1681, 113
        %v2081 = vpop.permute.xlu0 %2080
        %v2082 = vsel %vm1295, %v2067, %v2069
        %v2083 = vsel %vm1295, %v2071, %v2073
        %v2084 = vsel %vm1295, %v2075, %v2077
        %v2085 = vsel %vm1295, %v2079, %v2081
        %v2094 = vsel %vm1295, %v2069, 0.0
        %v2095 = vsel %vm1295, %v2073, 0.0
        %v2096 = vsel %vm1295, %v2077, 0.0
        %v2097 = vsel %vm1295, %v2081, 0.0
        %v2098 = vsel %vm373, %v2082, 0.0
        %v2099 = vsel %vm374, %v2094, 0.0
        %v2100 = vsel %vm373, %v2083, 0.0
        %v2101 = vsel %vm374, %v2095, 0.0
        %v2102 = vsel %vm373, %v2084, 0.0
        %v2103 = vsel %vm374, %v2096, 0.0
        %v2104 = vsel %vm373, %v2085, 0.0
        %v2105 = vsel %vm374, %v2097, 0.0
        %v2106 = vmul.f32 %v2098, -1.0
        %v2107 = vmul.f32 %v2099, -1.0
        %v2108 = vmul.f32 %v2100, -1.0
        %v2109 = vmul.f32 %v2101, -1.0
        %v2110 = vmul.f32 %v2102, -1.0
        %v2111 = vmul.f32 %v2103, -1.0
        %v2112 = vmul.f32 %v2104, -1.0
        %v2113 = vmul.f32 %v2105, -1.0
        %v2114 = vadd.f32 %v2042, %v2106
        %v2115 = vadd.f32 %v2043, %v2107
        %v2116 = vadd.f32 %v2044, %v2108
        %v2117 = vadd.f32 %v2045, %v2109
        %v2118 = vadd.f32 %v2046, %v2110
        %v2119 = vadd.f32 %v2047, %v2111
        %v2120 = vadd.f32 %v2048, %v2112
        %v2121 = vadd.f32 %v2049, %v2113
        %v2122 = vadd.f32 %v1890, %v2098
        %v2123 = vadd.f32 %v1891, %v2099
        %v2124 = vadd.f32 %v1892, %v2100
        %v2125 = vadd.f32 %v1893, %v2101
        %v2126 = vadd.f32 %v1894, %v2102
        %v2127 = vadd.f32 %v1895, %v2103
        %v2128 = vadd.f32 %v1896, %v2104
        %v2129 = vadd.f32 %v1897, %v2105
        %v2130 = vmul.f32 %v2098, -2.0
        %v2131 = vmul.f32 %v2099, -2.0
        %v2132 = vmul.f32 %v2100, -2.0
        %v2133 = vmul.f32 %v2101, -2.0
        %v2134 = vmul.f32 %v2102, -2.0
        %v2135 = vmul.f32 %v2103, -2.0
        %v2136 = vmul.f32 %v2104, -2.0
        %v2137 = vmul.f32 %v2105, -2.0
        %v2138 = vadd.f32 %v2058, %v2130
        %v2139 = vadd.f32 %v2059, %v2131
        %v2140 = vadd.f32 %v2060, %v2132
        %v2141 = vadd.f32 %v2061, %v2133
        %v2142 = vadd.f32 %v2062, %v2134
        %v2143 = vadd.f32 %v2063, %v2135
        %v2144 = vadd.f32 %v2064, %v2136
        %v2145 = vadd.f32 %v2065, %v2137
        %2146 = vrot.lane.b32.xlu0 %v1608, 112
        %v2147 = vpop.permute.xlu0 %2146
        %2148 = vrot.lane.b32.xlu0 %v1609, 112
        %v2149 = vpop.permute.xlu0 %2148
        %2150 = vrot.lane.b32.xlu0 %v1632, 112
        %v2151 = vpop.permute.xlu0 %2150
        %2152 = vrot.lane.b32.xlu0 %v1633, 112
        %v2153 = vpop.permute.xlu0 %2152
        %2154 = vrot.lane.b32.xlu0 %v1656, 112
        %v2155 = vpop.permute.xlu0 %2154
        %2156 = vrot.lane.b32.xlu0 %v1657, 112
        %v2157 = vpop.permute.xlu0 %2156
        %2158 = vrot.lane.b32.xlu0 %v1680, 112
        %v2159 = vpop.permute.xlu0 %2158
        %2160 = vrot.lane.b32.xlu0 %v1681, 112
        %v2161 = vpop.permute.xlu0 %2160
        %v2162 = vsel %vm1432, %v2147, %v2149
        %v2163 = vsel %vm1432, %v2151, %v2153
        %v2164 = vsel %vm1432, %v2155, %v2157
        %v2165 = vsel %vm1432, %v2159, %v2161
        %v2174 = vsel %vm1432, %v2149, 0.0
        %v2175 = vsel %vm1432, %v2153, 0.0
        %v2176 = vsel %vm1432, %v2157, 0.0
        %v2177 = vsel %vm1432, %v2161, 0.0
        %v2178 = vmul.f32 %v2162, 2.0
        %v2179 = vmul.f32 %v2174, 2.0
        %v2180 = vmul.f32 %v2163, 2.0
        %v2181 = vmul.f32 %v2175, 2.0
        %v2182 = vmul.f32 %v2164, 2.0
        %v2183 = vmul.f32 %v2176, 2.0
        %v2184 = vmul.f32 %v2165, 2.0
        %v2185 = vmul.f32 %v2177, 2.0
        %v2186 = vadd.f32 %v2122, %v2178
        %v2187 = vadd.f32 %v2123, %v2179
        %v2188 = vadd.f32 %v2124, %v2180
        %v2189 = vadd.f32 %v2125, %v2181
        %v2190 = vadd.f32 %v2126, %v2182
        %v2191 = vadd.f32 %v2127, %v2183
        %v2192 = vadd.f32 %v2128, %v2184
        %v2193 = vadd.f32 %v2129, %v2185
        %v2194 = vadd.f32 %v2050, %v2162
        %v2195 = vadd.f32 %v2051, %v2174
        %v2196 = vadd.f32 %v2052, %v2163
        %v2197 = vadd.f32 %v2053, %v2175
        %v2198 = vadd.f32 %v2054, %v2164
        %v2199 = vadd.f32 %v2055, %v2176
        %v2200 = vadd.f32 %v2056, %v2165
        %v2201 = vadd.f32 %v2057, %v2177
        %v2202 = vmul.f32 %v2162, -1.0
        %v2203 = vmul.f32 %v2174, -1.0
        %v2204 = vmul.f32 %v2163, -1.0
        %v2205 = vmul.f32 %v2175, -1.0
        %v2206 = vmul.f32 %v2164, -1.0
        %v2207 = vmul.f32 %v2176, -1.0
        %v2208 = vmul.f32 %v2165, -1.0
        %v2209 = vmul.f32 %v2177, -1.0
        %v2210 = vadd.f32 %v2138, %v2202
        %v2211 = vadd.f32 %v2139, %v2203
        %v2212 = vadd.f32 %v2140, %v2204
        %v2213 = vadd.f32 %v2141, %v2205
        %v2214 = vadd.f32 %v2142, %v2206
        %v2215 = vadd.f32 %v2143, %v2207
        %v2216 = vadd.f32 %v2144, %v2208
        %v2217 = vadd.f32 %v2145, %v2209
        %2218 = vrot.lane.b32.xlu0 %v1608, 111
        %v2219 = vpop.permute.xlu0 %2218
        %2220 = vrot.lane.b32.xlu0 %v1609, 111
        %v2221 = vpop.permute.xlu0 %2220
        %2222 = vrot.lane.b32.xlu0 %v1632, 111
        %v2223 = vpop.permute.xlu0 %2222
        %2224 = vrot.lane.b32.xlu0 %v1633, 111
        %v2225 = vpop.permute.xlu0 %2224
        %2226 = vrot.lane.b32.xlu0 %v1656, 111
        %v2227 = vpop.permute.xlu0 %2226
        %2228 = vrot.lane.b32.xlu0 %v1657, 111
        %v2229 = vpop.permute.xlu0 %2228
        %2230 = vrot.lane.b32.xlu0 %v1680, 111
        %v2231 = vpop.permute.xlu0 %2230
        %2232 = vrot.lane.b32.xlu0 %v1681, 111
        %v2233 = vpop.permute.xlu0 %2232
        %v2234 = vsel %vm1561, %v2219, %v2221
        %v2235 = vsel %vm1561, %v2223, %v2225
        %v2236 = vsel %vm1561, %v2227, %v2229
        %v2237 = vsel %vm1561, %v2231, %v2233
        %v2246 = vsel %vm1561, %v2221, 0.0
        %v2247 = vsel %vm1561, %v2225, 0.0
        %v2248 = vsel %vm1561, %v2229, 0.0
        %v2249 = vsel %vm1561, %v2233, 0.0
        %v2250 = vsel %vm643, %v2234, 0.0
        %v2251 = vsel %vm644, %v2246, 0.0
        %v2252 = vsel %vm643, %v2235, 0.0
        %v2253 = vsel %vm644, %v2247, 0.0
        %v2254 = vsel %vm643, %v2236, 0.0
        %v2255 = vsel %vm644, %v2248, 0.0
        %v2256 = vsel %vm643, %v2237, 0.0
        %v2257 = vsel %vm644, %v2249, 0.0
        %v2258 = vadd.f32 %v2114, %v2250
        %v2259 = vadd.f32 %v2115, %v2251
        %v2260 = vadd.f32 %v2116, %v2252
        %v2261 = vadd.f32 %v2117, %v2253
        %v2262 = vadd.f32 %v2118, %v2254
        %v2263 = vadd.f32 %v2119, %v2255
        %v2264 = vadd.f32 %v2120, %v2256
        %v2265 = vadd.f32 %v2121, %v2257
        %v2266 = vadd.f32 %v2186, %v2250
        %v2267 = vadd.f32 %v2187, %v2251
        %v2268 = vadd.f32 %v2188, %v2252
        %v2269 = vadd.f32 %v2189, %v2253
        %v2270 = vadd.f32 %v2190, %v2254
        %v2271 = vadd.f32 %v2191, %v2255
        %v2272 = vadd.f32 %v2192, %v2256
        %v2273 = vadd.f32 %v2193, %v2257
        %v2274 = vmul.f32 %v2250, 2.0
        %v2275 = vmul.f32 %v2251, 2.0
        %v2276 = vmul.f32 %v2252, 2.0
        %v2277 = vmul.f32 %v2253, 2.0
        %v2278 = vmul.f32 %v2254, 2.0
        %v2279 = vmul.f32 %v2255, 2.0
        %v2280 = vmul.f32 %v2256, 2.0
        %v2281 = vmul.f32 %v2257, 2.0
        %v2282 = vadd.f32 %v2194, %v2274
        %v2283 = vadd.f32 %v2195, %v2275
        %v2284 = vadd.f32 %v2196, %v2276
        %v2285 = vadd.f32 %v2197, %v2277
        %v2286 = vadd.f32 %v2198, %v2278
        %v2287 = vadd.f32 %v2199, %v2279
        %v2288 = vadd.f32 %v2200, %v2280
        %v2289 = vadd.f32 %v2201, %v2281
        %v2290 = vand.u32 2147483647, %v2258
        %v2291 = vand.u32 2147483647, %v2259
        %v2292 = vand.u32 2147483647, %v2260
        %v2293 = vand.u32 2147483647, %v2261
        %v2294 = vand.u32 2147483647, %v2262
        %v2295 = vand.u32 2147483647, %v2263
        %v2296 = vand.u32 2147483647, %v2264
        %v2297 = vand.u32 2147483647, %v2265
        %v2298 = vand.u32 2147483647, %v2266
        %v2299 = vand.u32 2147483647, %v2267
        %v2300 = vand.u32 2147483647, %v2268
        %v2301 = vand.u32 2147483647, %v2269
        %v2302 = vand.u32 2147483647, %v2270
        %v2303 = vand.u32 2147483647, %v2271
        %v2304 = vand.u32 2147483647, %v2272
        %v2305 = vand.u32 2147483647, %v2273
        %v2306 = vmax.f32 %v2290, %v2298
        %v2307 = vmax.f32 %v2291, %v2299
        %v2308 = vmax.f32 %v2292, %v2300
        %v2309 = vmax.f32 %v2293, %v2301
        %v2310 = vmax.f32 %v2294, %v2302
        %v2311 = vmax.f32 %v2295, %v2303
        %v2312 = vmax.f32 %v2296, %v2304
        %v2313 = vmax.f32 %v2297, %v2305
        %v2314 = vand.u32 2147483647, %v2282
        %v2315 = vand.u32 2147483647, %v2283
        %v2316 = vand.u32 2147483647, %v2284
        %v2317 = vand.u32 2147483647, %v2285
        %v2318 = vand.u32 2147483647, %v2286
        %v2319 = vand.u32 2147483647, %v2287
        %v2320 = vand.u32 2147483647, %v2288
        %v2321 = vand.u32 2147483647, %v2289
        %v2322 = vmax.f32 %v2306, %v2314
        %v2323 = vmax.f32 %v2307, %v2315
        %v2324 = vmax.f32 %v2308, %v2316
        %v2325 = vmax.f32 %v2309, %v2317
        %v2326 = vmax.f32 %v2310, %v2318
        %v2327 = vmax.f32 %v2311, %v2319
        %v2328 = vmax.f32 %v2312, %v2320
        %v2329 = vmax.f32 %v2313, %v2321
        %v2330 = vand.u32 2147483647, %v2210
        %v2331 = vand.u32 2147483647, %v2211
        %v2332 = vand.u32 2147483647, %v2212
        %v2333 = vand.u32 2147483647, %v2213
        %v2334 = vand.u32 2147483647, %v2214
        %v2335 = vand.u32 2147483647, %v2215
        %v2336 = vand.u32 2147483647, %v2216
        %v2337 = vand.u32 2147483647, %v2217
        %v2338 = vmax.f32 %v2322, %v2330
        %v2339 = vmax.f32 %v2323, %v2331
        %v2340 = vmax.f32 %v2324, %v2332
        %v2341 = vmax.f32 %v2325, %v2333
        %v2342 = vmax.f32 %v2326, %v2334
        %v2343 = vmax.f32 %v2327, %v2335
        %v2344 = vmax.f32 %v2328, %v2336
        %v2345 = vmax.f32 %v2329, %v2337
        %vm2346 = vcmask 1040384
        %v2347 = vsel %vm2346, %v2338, 0.0
        %v2348 = vsel %vm2346, %v2340, 0.0
        %v2349 = vadd.f32 %v2347, %v2348
        %v2350 = vsel %vm2346, %v2342, 0.0
        %v2351 = vadd.f32 %v2349, %v2350
        %v2352 = vsel %vm2346, %v2344, 0.0
        %v2353 = vadd.f32 %v2351, %v2352
        %v2354 = vsel %vm2346, %v2339, 0.0
        %v2355 = vsel %vm2346, %v2341, 0.0
        %v2356 = vadd.f32 %v2354, %v2355
        %v2357 = vsel %vm2346, %v2343, 0.0
        %v2358 = vadd.f32 %v2356, %v2357
        %v2359 = vsel %vm2346, %v2345, 0.0
        %v2360 = vadd.f32 %v2358, %v2359
        %v2361 = vmul.f32 %v2353, 0.25
        %v2362 = vmul.f32 %v2360, 0.25
        %v2363 = vsel %vm2346, %v2338, -inf
        %v2364 = vsel %vm2346, %v2340, -inf
        %v2365 = vsel %vm2346, %v2342, -inf
        %v2366 = vmax.f32 %v2363, %v2365
        %v2367 = vsel %vm2346, %v2344, -inf
        %v2368 = vmax.f32 %v2364, %v2367
        %v2369 = vmax.f32 %v2366, %v2368
        %v2370 = vsel %vm2346, %v2339, -inf
        %v2371 = vsel %vm2346, %v2341, -inf
        %v2372 = vsel %vm2346, %v2343, -inf
        %v2373 = vmax.f32 %v2370, %v2372
        %v2374 = vsel %vm2346, %v2345, -inf
        %v2375 = vmax.f32 %v2371, %v2374
        %v2376 = vmax.f32 %v2373, %v2375
        %v2377 = vadd.f32 %v2361, %v2369
        %v2378 = vadd.f32 %v2362, %v2376
        %s2379 = sld [smem:[#allocation8]]
        %v2380 = vstv %s2379
        %v2381 = vmul.f32 %v2377, %v2380
        %v2382 = vmul.f32 %v2378, %v2380
        %s2383 = sld [smem:[#allocation8 + $0x1]]
        %v2384 = vstv %s2383
        %v2385 = vadd.f32 %v2381, %v2384
        %v2386 = vadd.f32 %v2382, %v2384
        %v2387 = vxor.u32 %v2385, 2147483648
        %v2388 = vxor.u32 %v2386, 2147483648
        %v2389 = vmul.f32 %v2387, 1.442695
        %v2390 = vpow.pop %v2389
        %v2391 = vmul.f32 %v2388, 1.442695
        %v2392 = vpow.pop %v2391
        %v2393 = vadd.f32 %v2390, 1.0
        %v2394 = vadd.f32 %v2392, 1.0
        %v2395 = vrcp.pop %v2393
        %v2396 = vmul.f32 1.0, %v2395
        %v2397 = vrcp.pop %v2394
        %v2398 = vmul.f32 1.0, %v2397
        %v2399 = vld [vmem:[%s226] sm:$0xff]
        %v2400 = vlaneseq
        %v2401 = vshrl.u32 %v2400, 7
        %v2402 = vsub.s32 0, %v2401
        %v2403 = vrot.slane %v2396, %v2402
        %v2404 = vlaneseq
        %v2405 = vshrl.u32 %v2404, 7
        %v2406 = vsub.s32 0, %v2405
        %v2407 = vrot.slane %v2398, %v2406
        %v2410 = vcombine.low %v2403, %v2407
        %v2412 = vmul.f32 %v2399, %v2410
        %2413 = vst [vmem:[%s251] sm:$0xff] %v2412
        %s2414 = sand.u32 %s121, 1
        %s2415 = scalar_lea.sflag [#allocation4], %s2414
        %s2416 = sand.u32 %s121, 1
        %s2417 = smul.addr %s2416, 8
        %s2418 = scalar_lea.vmem [#allocation11], %s2417
        // Predicated region
        $region53: #{tpu_custom_call.1} parent=35 // pred_check
          %p2419 = pneg %p131
        $region54: #{tpu_custom_call.1} parent=35 // pred_check_branch
          %2421 = sbr.rel (%p2419) target = $region56
        $region55: #{tpu_custom_call.1} parent=35 // pred_region
          %s2423 = ssub.s32 128, 128
          %2424 = vsyncadd %s2415, %s2423
          %s2425 = smul.addr %s24, 2
          %s2426 = smul.addr %s2425, 64
          %s2427 = scalar_lea.hbm %s4, %s2426
          %s2429 = sshll.u32 %s2418, 4
          %s2430 = int_to_ptr.vmem [resolvable:$true] %s2429
          %2432 = dma.vmem_to_hbm [thread:$0]  %s2430, 128, %s2427, %s2415
        $region56: #{tpu_custom_call.1} parent=35 // pred_fallthru
          _
      $region36: #{tpu_custom_call.1} parent=5 // pred_fallthru
        _
      %p2433 = scmp.le.s32.totalorder 2, %s19
      // Predicated region
      $region57: #{tpu_custom_call.1} parent=5 // pred_check
        %p2434 = pneg %p2433
      $region58: #{tpu_custom_call.1} parent=5 // pred_check_branch
        %2436 = sbr.rel (%p2434) target = $region60
      $region59: #{tpu_custom_call.1} parent=5 // pred_region
        %s2437 = ssub.s32 %s19, 2
        // Predicated region
        $region61: #{tpu_custom_call.1} parent=59 // pred_check
          %p2438 = pneg %p137
        $region62: #{tpu_custom_call.1} parent=59 // pred_check_branch
          %2440 = sbr.rel (%p2438) target = $region64
        $region63: #{tpu_custom_call.1} parent=59 // pred_region
          %s2441 = sand.u32 %s122, 1
          %s2442 = scalar_lea.sflag [#allocation4], %s2441
          %s2443 = sand.u32 %s122, 1
          %s2444 = smul.addr %s2443, 8
          %s2445 = scalar_lea.vmem [#allocation11], %s2444
          %2446 = dma.done %s2442, 128
        $region64: #{tpu_custom_call.1} parent=59 // pred_fallthru
          _
      $region60: #{tpu_custom_call.1} parent=5 // pred_fallthru
        _
    $region6: #{tpu_custom_call.1} parent=1 // loop_footer
      %s23 = sadd.s32 1, %s19
    $region7: #{tpu_custom_call.1} parent=1 // loop_footer_branch
      %18 = sbr.rel target = $region3
    $region8: #{tpu_custom_call.1} parent=1 // loop_exit
      _
    %2447 = vsyncpa [#allocation3], 1
    %s2448 = scalar_lea.sflag [#allocation3], 1
    %2449 = vsyncpa %s2448, 1
    %2450 = vsyncpa [#allocation4], 1
    %s2451 = scalar_lea.sflag [#allocation4], 1
    %2452 = vsyncpa %s2451, 1
    %2453 = vsyncpa [#allocation5], 1
    %s2454 = scalar_lea.sflag [#allocation5], 1
    %2455 = vsyncpa %s2454, 1
    %2456 = vsyncpa [#allocation6], 1
    %s2457 = scalar_lea.sflag [#allocation6], 1
    %2458 = vsyncpa %s2457, 1
    %2459 = vsyncpa [#allocation9], 1

</llo_original>
